<compile_context>
chip_gen: v6e
topology: v6e:2x2x1
jax: 0.10.0
libtpu: 0.0.40
codegen_flags: <defaults>
</compile_context>

<pallas_src>
import jax
import jax.numpy as jnp
import numpy as np
from jax.experimental import pallas as pl
from jax.experimental.pallas import tpu as pltpu


# --------------------------- bias packing (one VMEM operand) -------------------
def _pack_bias(segs):
    """Pack 1-row vectors into one (1, K) f32 array; each segment 128-lane aligned."""
    offsets = {}
    parts = []
    off = 0
    for name, a in segs:
        v = jnp.asarray(a, jnp.float32).reshape(-1)
        n = int(v.shape[0])
        pad = (-n) % 128
        if pad:
            v = jnp.concatenate([v, jnp.zeros((pad,), jnp.float32)])
        offsets[name] = (off, n)
        parts.append(v)
        off += n + pad
    return jnp.concatenate(parts).reshape(1, -1), offsets


# --------------------------------- kernel --------------------------------------
def _make_kernel(n_total, tile_n, offsets):
    f32 = jnp.float32
    bf16 = jnp.bfloat16
    need_mask = (n_total % tile_n) != 0   # pick tile_n | N to avoid per-tile mask work

    def kernel(x_ref, rad_ref, w0_ref, w1_ref, w2_ref, wab_ref,
               wd0_ref, wd1_ref, wfuse_ref, wfa_ref,
               wc1_ref, wc2_ref, wc3_ref, bias_ref,
               out_ref, m_sc, l_sc, acc_sc):
        t = pl.program_id(1)

        def bseg(name):
            off, n = offsets[name]
            return bias_ref[:, off:off + n]

        # ------ per-batch accumulator init (patch-tile axis is the reduction) ---
        @pl.when(t == 0)
        def _():
            m_sc[...] = jnp.full(m_sc.shape, -jnp.inf, m_sc.dtype)
            l_sc[...] = jnp.zeros(l_sc.shape, l_sc.dtype)
            acc_sc[...] = jnp.zeros(acc_sc.shape, acc_sc.dtype)

        # ------ PorpoiseAMIL backbone: flattened 2-D bf16 matmuls, f32 acc ------
        # x stays f32 in HBM; cast the resident tile here (hidden under the MXU).
        xt = x_ref[0].astype(bf16)                                  # (TILE_N, 512) bf16
        h = jnp.dot(xt, w0_ref[...], preferred_element_type=f32) + bseg("b0")
        h = jnp.maximum(h, 0.0).astype(bf16)
        h = jnp.dot(h, w1_ref[...], preferred_element_type=f32) + bseg("b1")
        h = jnp.maximum(h, 0.0).astype(bf16)
        h = jnp.dot(h, w2_ref[...], preferred_element_type=f32) + bseg("b2")
        h = jnp.maximum(h, 0.0)                                     # (TILE_N, 64) f32

        # ------ gated attention: fused bf16 a/b projection, VPU score reduce ----
        ab = jnp.dot(h.astype(bf16), wab_ref[...],
                     preferred_element_type=f32) + bseg("bab")      # (TILE_N, 32)
        a = jnp.tanh(ab[:, :16])
        g = jax.nn.sigmoid(ab[:, 16:32])
        s = jnp.sum(a * g * bseg("wc"), axis=-1, keepdims=True) + bseg("bc")  # (TILE_N,1)

        if need_mask:  # last partial tile: mask padded patch rows
            rem = n_total - t * tile_n
            valid = jax.lax.broadcasted_iota(jnp.int32, (tile_n, 1), 0) < rem
            h = jnp.where(valid, h, 0.0)
            s = jnp.where(valid, s, -jnp.inf)

        # ------ online softmax over the patch axis + MXU attention pooling ------
        m_prev = m_sc[...]
        m_new = jnp.maximum(m_prev, jnp.max(s, axis=0, keepdims=True))
        alpha = jnp.exp(m_prev - m_new)
        p = jnp.exp(s - m_new)                                      # (TILE_N, 1)
        l_sc[...] = alpha * l_sc[...] + jnp.sum(p, axis=0, keepdims=True)
        # N-reduction rides the MXU K dim: ones(1,TILE_N) @ (p*h) -> (1, 64)
        pooled = jnp.dot(jnp.ones((1, tile_n), f32), p * h,
                         preferred_element_type=f32)
        acc_sc[...] = alpha * acc_sc[...] + pooled
        m_sc[...] = m_new

        # ------ tail: DeepSurv + fused fusion heads + classifier (last tile) ----
        @pl.when(t == pl.num_programs(1) - 1)
        def _():
            M = acc_sc[...] / l_sc[...]                               # (1, 64) exact

            rad = rad_ref[0]                                          # (1, 16)
            r = jnp.maximum(jnp.dot(rad, wd0_ref[...],
                                    preferred_element_type=f32) + bseg("bd0"), 0.0)
            r = jnp.maximum(jnp.dot(r, wd1_ref[...],
                                    preferred_element_type=f32) + bseg("bd1"), 0.0)

            # one (1,128)@(128,256) matmul = patho_cat | rad_cat | patho_single | rad_single
            mr = jnp.concatenate([M, r], axis=1)                      # (1, 128)
            f = jnp.dot(mr, wfuse_ref[...], preferred_element_type=f32) + bseg("bfuse")
            pc = jax.nn.sigmoid(f[:, 0:64])
            rc = jax.nn.sigmoid(f[:, 64:128])
            ps = jnp.maximum(f[:, 128:192], 0.0)
            rs = jnp.maximum(f[:, 192:256], 0.0)

            # shared fusion_attn applied to both branches in one (2,64) matmul
            z = jnp.concatenate([pc * ps, rc * rs], axis=0)           # (2, 64)
            za = jnp.maximum(jnp.dot(z, wfa_ref[...],
                                     preferred_element_type=f32) + bseg("bfa"), 0.0)
            cin = jnp.concatenate([za[0:1, :], za[1:2, :]], axis=1)   # (1, 128)

            c = jnp.maximum(jnp.dot(cin, wc1_ref[...],
                                    preferred_element_type=f32) + bseg("bc1"), 0.0)
            c = jnp.maximum(jnp.dot(c, wc2_ref[...],
                                    preferred_element_type=f32) + bseg("bc2"), 0.0)
            out_ref[0] = jnp.dot(c, wc3_ref[...],
                                 preferred_element_type=f32) + bseg("bc3")

    return kernel


# --------------------------------- wrapper -------------------------------------
def late_mmf_adv(x, rad, params, *, tile_n=1024):
    """Pallas forward of LateMMFAdv. x: (B,N,512) patches, rad: (B,16) clinical."""
    B, N, Din = x.shape
    assert Din == 512 and N >= 1
    f32, bf16 = jnp.float32, jnp.bfloat16

    (w0, b0, w1, b1, w2, b2, wa, ba, wb, bb, wc_, bc_, wd0, bd0, wd1, bd1,
     wpc, bpc, wps, bps, wrc, brc, wrs, brs, wfa, bfa,
     wc1, bc1, wc2, bc2, wc3, bc3) = params
    n_classes = int(wc3.shape[-1])

    tile_n = min(tile_n, N)
    assert tile_n == N or tile_n % 8 == 0, "tile_n must be a multiple of 8 (or == N)"
    num_t = pl.cdiv(N, tile_n)

    # ---- weight fusion / packing (layout plumbing done once, outside kernel) ---
    wab = jnp.concatenate([wa, wb], axis=1).astype(bf16)                # (64, 32) bf16
    z64 = jnp.zeros((64, 64), f32)
    wfuse = jnp.concatenate([
        jnp.concatenate([wpc[:64], wrc[:64], wps, z64], axis=1),        # rows for M
        jnp.concatenate([wpc[64:], wrc[64:], z64, wrs], axis=1),        # rows for r
    ], axis=0)                                                          # (128, 256)

    bias_pack, offsets = _pack_bias([
        ("b0", b0), ("b1", b1), ("b2", b2),
        ("bab", jnp.concatenate([ba, bb], axis=1)),
        ("bc", bc_), ("wc", wc_),           # attention score weight lives here too
        ("bd0", bd0), ("bd1", bd1),
        ("bfuse", jnp.concatenate([bpc, brc, bps, brs], axis=1)),
        ("bfa", bfa), ("bc1", bc1), ("bc2", bc2), ("bc3", bc3),
    ])

    rad3 = rad.reshape(B, 1, -1).astype(f32)
    args = (x, rad3,                                                    # x NOT pre-cast
            w0.astype(bf16), w1.astype(bf16), w2.astype(bf16),
            wab, wd0, wd1, wfuse, wfa, wc1, wc2, wc3, bias_pack)

    def full_spec(a):
        return pl.BlockSpec(a.shape, lambda b, t: (0,) * a.ndim)

    in_specs = [
        pl.BlockSpec((1, tile_n, 512), lambda b, t: (b, t, 0)),     # x: streamed f32
        pl.BlockSpec((1, 1, rad3.shape[-1]), lambda b, t: (b, 0, 0)),
    ] + [full_spec(a) for a in args[2:]]

    out_specs = pl.BlockSpec((1, 1, n_classes), lambda b, t: (b, 0, 0))

    flops = 2 * B * N * (512 * 384 + 384 * 256 + 256 * 64 + 64 * 32 + 16 + 64)
    flops += 2 * B * (16 * 32 + 32 * 64 + 128 * 256 + 2 * 64 * 64
                      + 128 * 64 + 64 * 32 + 32 * n_classes)
    bytes_accessed = sum(int(a.size) * a.dtype.itemsize for a in args)
    bytes_accessed += B * n_classes * 4
    cost = pl.CostEstimate(flops=int(flops),
                           transcendentals=int(B * N * 34 + B * 300),
                           bytes_accessed=int(bytes_accessed))

    # Tile-derived scoped-VMEM budget: double-buffered f32 x tile + backbone
    # intermediates + (2x-buffered) weights / bias / compiler scratch slack.
    vmem_limit_bytes = int(min(
        (12 << 20) + 2 * tile_n * 512 * 4 + tile_n * 8 * 1024,
        48 << 20))

    kernel = _make_kernel(N, tile_n, offsets)

    out3 = pl.pallas_call(
        kernel,
        out_shape=jax.ShapeDtypeStruct((B, 1, n_classes), f32),
        grid_spec=pltpu.PrefetchScalarGridSpec(
            num_scalar_prefetch=0,
            grid=(B, num_t),
            in_specs=in_specs,
            out_specs=out_specs,
            scratch_shapes=[
                pltpu.VMEM((1, 1), f32),    # running max
                pltpu.VMEM((1, 1), f32),    # running sum
                pltpu.VMEM((1, 64), f32),   # running attn-weighted h
            ],
        ),
        compiler_params=pltpu.CompilerParams(
            dimension_semantics=("parallel", "arbitrary"),
            vmem_limit_bytes=vmem_limit_bytes),
        cost_estimate=cost,
    )(*args)
    return out3.reshape(B, n_classes)


# --------------------------- parameter construction ---------------------------
def _linear(key, fan_in, fan_out):
    kw, kb = jax.random.split(key)
    w = jax.random.normal(kw, (fan_in, fan_out), jnp.float32) / jnp.sqrt(float(fan_in))
    b = 0.01 * jax.random.normal(kb, (1, fan_out), jnp.float32)
    return w, b


def make_params(key, n_classes=2):
    keys = jax.random.split(key, 16)
    w0, b0 = _linear(keys[0], 512, 384)       # PorpoiseAMIL fc stack
    w1, b1 = _linear(keys[1], 384, 256)
    w2, b2 = _linear(keys[2], 256, 64)
    wa, ba = _linear(keys[3], 64, 16)         # Attn_Net_Gated (L=64, D=16)
    wb, bb = _linear(keys[4], 64, 16)
    wc_, bc_ = _linear(keys[5], 16, 1)
    wd0, bd0 = _linear(keys[6], 16, 32)       # DeepSurv dims [16, 32, 64]
    wd1, bd1 = _linear(keys[7], 32, 64)
    wpc, bpc = _linear(keys[8], 128, 64)      # fusion_patho_cat
    wps, bps = _linear(keys[9], 64, 64)       # fusion_patho_single
    wrc, brc = _linear(keys[10], 128, 64)     # fusion_rad_cat
    wrs, brs = _linear(keys[11], 64, 64)      # fusion_rad_single
    wfa, bfa = _linear(keys[12], 64, 64)      # fusion_attn (shared)
    wc1, bc1 = _linear(keys[13], 128, 64)     # classifier
    wc2, bc2 = _linear(keys[14], 64, 32)
    wc3, bc3 = _linear(keys[15], 32, n_classes)
    return [w0, b0, w1, b1, w2, b2, wa, ba, wb, bb, wc_, bc_, wd0, bd0, wd1, bd1,
            wpc, bpc, wps, bps, wrc, brc, wrs, brs, wfa, bfa,
            wc1, bc1, wc2, bc2, wc3, bc3]


# --------------------------- pure-JAX reference --------------------------------
def reference(x, rad, params):
    """Matches the kernel's numerics: bf16 backbone + attn-projection matmuls, f32 acc.
    (Intentional bf16 deviation from the f32 PyTorch model; expect ~1e-3 rel. diff.)"""
    (w0, b0, w1, b1, w2, b2, wa, ba, wb, bb, wc_, bc_, wd0, bd0, wd1, bd1,
     wpc, bpc, wps, bps, wrc, brc, wrs, brs, wfa, bfa,
     wc1, bc1, wc2, bc2, wc3, bc3) = params
    f32, bf16 = jnp.float32, jnp.bfloat16
    relu = lambda v: jnp.maximum(v, 0.0)
    mm16 = lambda a, w: jnp.einsum('bnd,de->bne', a.astype(bf16), w.astype(bf16),
                                   preferred_element_type=f32)
    h = relu(mm16(x, w0) + b0)
    h = relu(mm16(h, w1) + b1)
    h = relu(mm16(h, w2) + b2)                               # (B,N,64) f32
    a = jnp.tanh(mm16(h, wa) + ba)
    g = jax.nn.sigmoid(mm16(h, wb) + bb)
    scores = jnp.einsum('bnd,de->bne', a * g, wc_) + bc_
    attn = jax.nn.softmax(scores, axis=1)
    M = jnp.sum(attn * h, axis=1)                            # (B,64)
    r = relu(rad @ wd0 + bd0)
    r = relu(r @ wd1 + bd1)
    cat = jnp.concatenate([M, r], axis=1)
    patho_cat = jax.nn.sigmoid(cat @ wpc + bpc)
    patho_single = relu(M @ wps + bps)
    patho_attn = relu((patho_cat * patho_single) @ wfa + bfa)
    rad_cat = jax.nn.sigmoid(cat @ wrc + brc)
    rad_single = relu(r @ wrs + brs)
    rad_attn = relu((rad_cat * rad_single) @ wfa + bfa)
    c = relu(jnp.concatenate([patho_attn, rad_attn], axis=1) @ wc1 + bc1)
    c = relu(c @ wc2 + bc2)
    return c @ wc3 + bc3


if __name__ == "__main__":
    key = jax.random.PRNGKey(0)
    k_x, k_r, k_p = jax.random.split(key, 3)

    B, N, n_classes = 2, 256, 2          # small demo shapes; kernel tiles patches
    x = jax.random.normal(k_x, (B, N, 512), jnp.float32)   # data1: patch features
    rad = jax.random.normal(k_r, (B, 16), jnp.float32)     # data2: clinical feats

    params = make_params(k_p, n_classes=n_classes)

    # tile_n=64 -> 4 patch tiles per bag: exercises the streamed online-softmax path.
    out = jax.block_until_ready(late_mmf_adv(x, rad, params, tile_n=64))
    assert out.shape == (B, n_classes), out.shape

    ref = reference(x, rad, params)
    np.testing.assert_allclose(np.asarray(out), np.asarray(ref), rtol=1e-2, atol=1e-2)

    print("KERNEL_OK")
</pallas_src>

<mosaic_0001>
module attributes {stable_mosaic.version = 11 : i64} {
  func.func @kernel(%arg0: i32, %arg1: i32, %arg2: memref<1x64x512xf32, #tpu.memory_space<vmem>>, %arg3: memref<1x1x16xf32, #tpu.memory_space<vmem>>, %arg4: memref<512x384xbf16, #tpu.memory_space<vmem>>, %arg5: memref<384x256xbf16, #tpu.memory_space<vmem>>, %arg6: memref<256x64xbf16, #tpu.memory_space<vmem>>, %arg7: memref<64x32xbf16, #tpu.memory_space<vmem>>, %arg8: memref<16x32xf32, #tpu.memory_space<vmem>>, %arg9: memref<32x64xf32, #tpu.memory_space<vmem>>, %arg10: memref<128x256xf32, #tpu.memory_space<vmem>>, %arg11: memref<64x64xf32, #tpu.memory_space<vmem>>, %arg12: memref<128x64xf32, #tpu.memory_space<vmem>>, %arg13: memref<64x32xf32, #tpu.memory_space<vmem>>, %arg14: memref<32x2xf32, #tpu.memory_space<vmem>>, %arg15: memref<1x2176xf32, #tpu.memory_space<vmem>>, %arg16: memref<1x1x2xf32, #tpu.memory_space<vmem>>, %arg17: memref<1x1xf32, #tpu.memory_space<vmem>>, %arg18: memref<1x1xf32, #tpu.memory_space<vmem>>, %arg19: memref<1x64xf32, #tpu.memory_space<vmem>>) attributes {dimension_semantics = [#tpu.dimension_semantics<parallel>, #tpu.dimension_semantics<arbitrary>], iteration_bounds = array<i64: 2, 4>, scalar_prefetch = 0 : i64, scratch_operands = 3 : i64, tpu.core_type = #tpu.core_type<tc>, window_params = [{transform_indices = @transform_0, window_bounds = array<i64: 1, 64, 512>}, {transform_indices = @transform_1, window_bounds = array<i64: 1, 1, 16>}, {pipeline_mode = #tpu.pipeline_mode<synchronous>, transform_indices = @transform_2, window_bounds = array<i64: 512, 384>}, {pipeline_mode = #tpu.pipeline_mode<synchronous>, transform_indices = @transform_3, window_bounds = array<i64: 384, 256>}, {pipeline_mode = #tpu.pipeline_mode<synchronous>, transform_indices = @transform_4, window_bounds = array<i64: 256, 64>}, {pipeline_mode = #tpu.pipeline_mode<synchronous>, transform_indices = @transform_5, window_bounds = array<i64: 64, 32>}, {pipeline_mode = #tpu.pipeline_mode<synchronous>, transform_indices = @transform_6, window_bounds = array<i64: 16, 32>}, {pipeline_mode = #tpu.pipeline_mode<synchronous>, transform_indices = @transform_7, window_bounds = array<i64: 32, 64>}, {pipeline_mode = #tpu.pipeline_mode<synchronous>, transform_indices = @transform_8, window_bounds = array<i64: 128, 256>}, {pipeline_mode = #tpu.pipeline_mode<synchronous>, transform_indices = @transform_9, window_bounds = array<i64: 64, 64>}, {pipeline_mode = #tpu.pipeline_mode<synchronous>, transform_indices = @transform_10, window_bounds = array<i64: 128, 64>}, {pipeline_mode = #tpu.pipeline_mode<synchronous>, transform_indices = @transform_11, window_bounds = array<i64: 64, 32>}, {pipeline_mode = #tpu.pipeline_mode<synchronous>, transform_indices = @transform_12, window_bounds = array<i64: 32, 2>}, {pipeline_mode = #tpu.pipeline_mode<synchronous>, transform_indices = @transform_13, window_bounds = array<i64: 1, 2176>}, {transform_indices = @transform_14, window_bounds = array<i64: 1, 1, 2>}]} {
    %c0_i32 = arith.constant 0 : i32
    %0 = arith.cmpi eq, %arg1, %c0_i32 : i32
    %1 = arith.extui %0 : i1 to i32
    %c0_i32_0 = arith.constant 0 : i32
    %2 = arith.cmpi ne, %1, %c0_i32_0 : i32
    scf.if %2 {
      %cst_43 = arith.constant 0xFF800000 : f32
      %80 = vector.broadcast %cst_43 : f32 to vector<1x1xf32>
      %c0_44 = arith.constant 0 : index
      %c0_45 = arith.constant 0 : index
      %81 = vector.load %arg17[%c0_44, %c0_45] : memref<1x1xf32, #tpu.memory_space<vmem>>, vector<1x1xf32>
      tpu.vector_store %arg17[%c0_44, %c0_45], %80 {strides = array<i32>} : memref<1x1xf32, #tpu.memory_space<vmem>>, vector<1x1xf32>,
      %cst_46 = arith.constant 0.000000e+00 : f32
      %82 = vector.broadcast %cst_46 : f32 to vector<1x1xf32>
      %c0_47 = arith.constant 0 : index
      %c0_48 = arith.constant 0 : index
      %83 = vector.load %arg18[%c0_47, %c0_48] : memref<1x1xf32, #tpu.memory_space<vmem>>, vector<1x1xf32>
      tpu.vector_store %arg18[%c0_47, %c0_48], %82 {strides = array<i32>} : memref<1x1xf32, #tpu.memory_space<vmem>>, vector<1x1xf32>,
      %cst_49 = arith.constant 0.000000e+00 : f32
      %84 = vector.broadcast %cst_49 : f32 to vector<1x64xf32>
      %c0_50 = arith.constant 0 : index
      %c0_51 = arith.constant 0 : index
      %85 = vector.load %arg19[%c0_50, %c0_51] : memref<1x64xf32, #tpu.memory_space<vmem>>, vector<1x64xf32>
      tpu.vector_store %arg19[%c0_50, %c0_51], %84 {strides = array<i32>} : memref<1x64xf32, #tpu.memory_space<vmem>>, vector<1x64xf32>,
    } else {
    }
    %c0 = arith.constant 0 : index
    %c0_1 = arith.constant 0 : index
    %c0_2 = arith.constant 0 : index
    %3 = vector.load %arg2[%c0, %c0_1, %c0_2] : memref<1x64x512xf32, #tpu.memory_space<vmem>>, vector<1x64x512xf32>
    %4 = vector.shape_cast %3 : vector<1x64x512xf32> to vector<64x512xf32>
    %5 = arith.truncf %4 : vector<64x512xf32> to vector<64x512xbf16>
    %c0_3 = arith.constant 0 : index
    %c0_4 = arith.constant 0 : index
    %6 = vector.load %arg4[%c0_3, %c0_4] : memref<512x384xbf16, #tpu.memory_space<vmem>>, vector<512x384xbf16>
    %cst = arith.constant dense<0.000000e+00> : vector<64x384xf32>
    %7 = tpu.matmul %5, %6, %cst {dimension_numbers = #tpu.dot_dimension_numbers<[1], [0], [0], [1], [0, 0, 1, 1], [], []>} : vector<64x512xbf16>, vector<512x384xbf16>, vector<64x384xf32> -> vector<64x384xf32>
    %c0_5 = arith.constant 0 : index
    %c0_6 = arith.constant 0 : index
    %8 = vector.load %arg15[%c0_5, %c0_6] : memref<1x2176xf32, #tpu.memory_space<vmem>>, vector<1x384xf32>
    %9 = vector.broadcast %8 : vector<1x384xf32> to vector<64x384xf32>
    %10 = arith.addf %7, %9 : vector<64x384xf32>
    %cst_7 = arith.constant 0.000000e+00 : f32
    %11 = vector.broadcast %cst_7 : f32 to vector<64x384xf32>
    %12 = arith.maximumf %10, %11 : vector<64x384xf32>
    %13 = arith.truncf %12 : vector<64x384xf32> to vector<64x384xbf16>
    %c0_8 = arith.constant 0 : index
    %c0_9 = arith.constant 0 : index
    %14 = vector.load %arg5[%c0_8, %c0_9] : memref<384x256xbf16, #tpu.memory_space<vmem>>, vector<384x256xbf16>
    %cst_10 = arith.constant dense<0.000000e+00> : vector<64x256xf32>
    %15 = tpu.matmul %13, %14, %cst_10 {dimension_numbers = #tpu.dot_dimension_numbers<[1], [0], [0], [1], [0, 0, 1, 1], [], []>} : vector<64x384xbf16>, vector<384x256xbf16>, vector<64x256xf32> -> vector<64x256xf32>
    %c0_11 = arith.constant 0 : index
    %c384 = arith.constant 384 : index
    %16 = vector.load %arg15[%c0_11, %c384] : memref<1x2176xf32, #tpu.memory_space<vmem>>, vector<1x256xf32>
    %17 = vector.broadcast %16 : vector<1x256xf32> to vector<64x256xf32>
    %18 = arith.addf %15, %17 : vector<64x256xf32>
    %cst_12 = arith.constant 0.000000e+00 : f32
    %19 = vector.broadcast %cst_12 : f32 to vector<64x256xf32>
    %20 = arith.maximumf %18, %19 : vector<64x256xf32>
    %21 = arith.truncf %20 : vector<64x256xf32> to vector<64x256xbf16>
    %c0_13 = arith.constant 0 : index
    %c0_14 = arith.constant 0 : index
    %22 = vector.load %arg6[%c0_13, %c0_14] : memref<256x64xbf16, #tpu.memory_space<vmem>>, vector<256x64xbf16>
    %cst_15 = arith.constant dense<0.000000e+00> : vector<64x64xf32>
    %23 = tpu.matmul %21, %22, %cst_15 {dimension_numbers = #tpu.dot_dimension_numbers<[1], [0], [0], [1], [0, 0, 1, 1], [], []>} : vector<64x256xbf16>, vector<256x64xbf16>, vector<64x64xf32> -> vector<64x64xf32>
    %c0_16 = arith.constant 0 : index
    %c640 = arith.constant 640 : index
    %24 = vector.load %arg15[%c0_16, %c640] : memref<1x2176xf32, #tpu.memory_space<vmem>>, vector<1x64xf32>
    %25 = vector.broadcast %24 : vector<1x64xf32> to vector<64x64xf32>
    %26 = arith.addf %23, %25 : vector<64x64xf32>
    %cst_17 = arith.constant 0.000000e+00 : f32
    %27 = vector.broadcast %cst_17 : f32 to vector<64x64xf32>
    %28 = arith.maximumf %26, %27 : vector<64x64xf32>
    %29 = arith.truncf %28 : vector<64x64xf32> to vector<64x64xbf16>
    %c0_18 = arith.constant 0 : index
    %c0_19 = arith.constant 0 : index
    %30 = vector.load %arg7[%c0_18, %c0_19] : memref<64x32xbf16, #tpu.memory_space<vmem>>, vector<64x32xbf16>
    %cst_20 = arith.constant dense<0.000000e+00> : vector<64x32xf32>
    %31 = tpu.matmul %29, %30, %cst_20 {dimension_numbers = #tpu.dot_dimension_numbers<[1], [0], [0], [1], [0, 0, 1, 1], [], []>} : vector<64x64xbf16>, vector<64x32xbf16>, vector<64x32xf32> -> vector<64x32xf32>
    %c0_21 = arith.constant 0 : index
    %c768 = arith.constant 768 : index
    %32 = vector.load %arg15[%c0_21, %c768] : memref<1x2176xf32, #tpu.memory_space<vmem>>, vector<1x32xf32>
    %33 = vector.broadcast %32 : vector<1x32xf32> to vector<64x32xf32>
    %34 = arith.addf %31, %33 : vector<64x32xf32>
    %35 = vector.extract_strided_slice %34 {offsets = [0, 0], sizes = [64, 16], strides = [1, 1]} : vector<64x32xf32> to vector<64x16xf32>
    %36 = math.tanh %35 : vector<64x16xf32>
    %37 = vector.extract_strided_slice %34 {offsets = [0, 16], sizes = [64, 16], strides = [1, 1]} : vector<64x32xf32> to vector<64x16xf32>
    %38 = arith.negf %37 : vector<64x16xf32>
    %39 = math.exp %38 : vector<64x16xf32>
    %cst_22 = arith.constant 1.000000e+00 : f32
    %40 = vector.broadcast %cst_22 : f32 to vector<64x16xf32>
    %41 = arith.addf %40, %39 : vector<64x16xf32>
    %42 = arith.divf %40, %41 : vector<64x16xf32>
    %43 = arith.mulf %36, %42 : vector<64x16xf32>
    %c0_23 = arith.constant 0 : index
    %c1024 = arith.constant 1024 : index
    %44 = vector.load %arg15[%c0_23, %c1024] : memref<1x2176xf32, #tpu.memory_space<vmem>>, vector<1x16xf32>
    %45 = vector.broadcast %44 : vector<1x16xf32> to vector<64x16xf32>
    %46 = arith.mulf %43, %45 : vector<64x16xf32>
    %cst_24 = arith.constant dense<0.000000e+00> : vector<64xf32>
    %47 = vector.multi_reduction <add>, %46, %cst_24 [1] : vector<64x16xf32> to vector<64xf32>
    %48 = vector.shape_cast %47 : vector<64xf32> to vector<64x1xf32>
    %c0_25 = arith.constant 0 : index
    %c896 = arith.constant 896 : index
    %49 = vector.load %arg15[%c0_25, %c896] : memref<1x2176xf32, #tpu.memory_space<vmem>>, vector<1x1xf32>
    %50 = vector.broadcast %49 : vector<1x1xf32> to vector<64x1xf32>
    %51 = arith.addf %48, %50 : vector<64x1xf32>
    %c0_26 = arith.constant 0 : index
    %c0_27 = arith.constant 0 : index
    %52 = vector.load %arg17[%c0_26, %c0_27] : memref<1x1xf32, #tpu.memory_space<vmem>>, vector<1x1xf32>
    %cst_28 = arith.constant dense<0xFF800000> : vector<1xf32>
    %53 = vector.multi_reduction <maximumf>, %51, %cst_28 [0] : vector<64x1xf32> to vector<1xf32>
    %54 = vector.shape_cast %53 : vector<1xf32> to vector<1x1xf32>
    %55 = arith.maximumf %52, %54 : vector<1x1xf32>
    %56 = arith.subf %52, %55 : vector<1x1xf32>
    %57 = math.exp %56 : vector<1x1xf32>
    %58 = vector.broadcast %55 : vector<1x1xf32> to vector<64x1xf32>
    %59 = arith.subf %51, %58 : vector<64x1xf32>
    %60 = math.exp %59 : vector<64x1xf32>
    %c0_29 = arith.constant 0 : index
    %c0_30 = arith.constant 0 : index
    %61 = vector.load %arg18[%c0_29, %c0_30] : memref<1x1xf32, #tpu.memory_space<vmem>>, vector<1x1xf32>
    %62 = arith.mulf %57, %61 : vector<1x1xf32>
    %cst_31 = arith.constant dense<0.000000e+00> : vector<1xf32>
    %63 = vector.multi_reduction <add>, %60, %cst_31 [0] : vector<64x1xf32> to vector<1xf32>
    %64 = vector.shape_cast %63 : vector<1xf32> to vector<1x1xf32>
    %65 = arith.addf %62, %64 : vector<1x1xf32>
    %c0_32 = arith.constant 0 : index
    %c0_33 = arith.constant 0 : index
    %66 = vector.load %arg18[%c0_32, %c0_33] : memref<1x1xf32, #tpu.memory_space<vmem>>, vector<1x1xf32>
    tpu.vector_store %arg18[%c0_32, %c0_33], %65 {strides = array<i32>} : memref<1x1xf32, #tpu.memory_space<vmem>>, vector<1x1xf32>,
    %cst_34 = arith.constant 1.000000e+00 : f32
    %67 = vector.broadcast %cst_34 : f32 to vector<1x64xf32>
    %68 = vector.broadcast %60 : vector<64x1xf32> to vector<64x64xf32>
    %69 = arith.mulf %68, %28 : vector<64x64xf32>
    %cst_35 = arith.constant dense<0.000000e+00> : vector<1x64xf32>
    %70 = tpu.matmul %67, %69, %cst_35 {dimension_numbers = #tpu.dot_dimension_numbers<[1], [0], [0], [1], [0, 0, 1, 1], [], []>} : vector<1x64xf32>, vector<64x64xf32>, vector<1x64xf32> -> vector<1x64xf32>
    %c0_36 = arith.constant 0 : index
    %c0_37 = arith.constant 0 : index
    %71 = vector.load %arg19[%c0_36, %c0_37] : memref<1x64xf32, #tpu.memory_space<vmem>>, vector<1x64xf32>
    %72 = vector.broadcast %57 : vector<1x1xf32> to vector<1x64xf32>
    %73 = arith.mulf %72, %71 : vector<1x64xf32>
    %74 = arith.addf %73, %70 : vector<1x64xf32>
    %c0_38 = arith.constant 0 : index
    %c0_39 = arith.constant 0 : index
    %75 = vector.load %arg19[%c0_38, %c0_39] : memref<1x64xf32, #tpu.memory_space<vmem>>, vector<1x64xf32>
    tpu.vector_store %arg19[%c0_38, %c0_39], %74 {strides = array<i32>} : memref<1x64xf32, #tpu.memory_space<vmem>>, vector<1x64xf32>,
    %c0_40 = arith.constant 0 : index
    %c0_41 = arith.constant 0 : index
    %76 = vector.load %arg17[%c0_40, %c0_41] : memref<1x1xf32, #tpu.memory_space<vmem>>, vector<1x1xf32>
    tpu.vector_store %arg17[%c0_40, %c0_41], %55 {strides = array<i32>} : memref<1x1xf32, #tpu.memory_space<vmem>>, vector<1x1xf32>,
    %c3_i32 = arith.constant 3 : i32
    %77 = arith.cmpi eq, %arg1, %c3_i32 : i32
    %78 = arith.extui %77 : i1 to i32
    %c0_i32_42 = arith.constant 0 : i32
    %79 = arith.cmpi ne, %78, %c0_i32_42 : i32
    scf.if %79 {
      %c0_43 = arith.constant 0 : index
      %c0_44 = arith.constant 0 : index
      %80 = vector.load %arg19[%c0_43, %c0_44] : memref<1x64xf32, #tpu.memory_space<vmem>>, vector<1x64xf32>
      %c0_45 = arith.constant 0 : index
      %c0_46 = arith.constant 0 : index
      %81 = vector.load %arg18[%c0_45, %c0_46] : memref<1x1xf32, #tpu.memory_space<vmem>>, vector<1x1xf32>
      %82 = vector.broadcast %81 : vector<1x1xf32> to vector<1x64xf32>
      %83 = arith.divf %80, %82 : vector<1x64xf32>
      %c0_47 = arith.constant 0 : index
      %c0_48 = arith.constant 0 : index
      %c0_49 = arith.constant 0 : index
      %84 = vector.load %arg3[%c0_47, %c0_48, %c0_49] : memref<1x1x16xf32, #tpu.memory_space<vmem>>, vector<1x1x16xf32>
      %85 = vector.shape_cast %84 : vector<1x1x16xf32> to vector<1x16xf32>
      %c0_50 = arith.constant 0 : index
      %c0_51 = arith.constant 0 : index
      %86 = vector.load %arg8[%c0_50, %c0_51] : memref<16x32xf32, #tpu.memory_space<vmem>>, vector<16x32xf32>
      %cst_52 = arith.constant dense<0.000000e+00> : vector<1x32xf32>
      %87 = tpu.matmul %85, %86, %cst_52 {dimension_numbers = #tpu.dot_dimension_numbers<[1], [0], [0], [1], [0, 0, 1, 1], [], []>} : vector<1x16xf32>, vector<16x32xf32>, vector<1x32xf32> -> vector<1x32xf32>
      %c0_53 = arith.constant 0 : index
      %c1152 = arith.constant 1152 : index
      %88 = vector.load %arg15[%c0_53, %c1152] : memref<1x2176xf32, #tpu.memory_space<vmem>>, vector<1x32xf32>
      %89 = arith.addf %87, %88 : vector<1x32xf32>
      %cst_54 = arith.constant 0.000000e+00 : f32
      %90 = vector.broadcast %cst_54 : f32 to vector<1x32xf32>
      %91 = arith.maximumf %89, %90 : vector<1x32xf32>
      %c0_55 = arith.constant 0 : index
      %c0_56 = arith.constant 0 : index
      %92 = vector.load %arg9[%c0_55, %c0_56] : memref<32x64xf32, #tpu.memory_space<vmem>>, vector<32x64xf32>
      %cst_57 = arith.constant dense<0.000000e+00> : vector<1x64xf32>
      %93 = tpu.matmul %91, %92, %cst_57 {dimension_numbers = #tpu.dot_dimension_numbers<[1], [0], [0], [1], [0, 0, 1, 1], [], []>} : vector<1x32xf32>, vector<32x64xf32>, vector<1x64xf32> -> vector<1x64xf32>
      %c0_58 = arith.constant 0 : index
      %c1280 = arith.constant 1280 : index
      %94 = vector.load %arg15[%c0_58, %c1280] : memref<1x2176xf32, #tpu.memory_space<vmem>>, vector<1x64xf32>
      %95 = arith.addf %93, %94 : vector<1x64xf32>
      %cst_59 = arith.constant 0.000000e+00 : f32
      %96 = vector.broadcast %cst_59 : f32 to vector<1x64xf32>
      %97 = arith.maximumf %95, %96 : vector<1x64xf32>
      %98 = tpu.concatenate %83, %97 in 1 : vector<1x64xf32>, vector<1x64xf32> -> vector<1x128xf32>
      %c0_60 = arith.constant 0 : index
      %c0_61 = arith.constant 0 : index
      %99 = vector.load %arg10[%c0_60, %c0_61] : memref<128x256xf32, #tpu.memory_space<vmem>>, vector<128x256xf32>
      %cst_62 = arith.constant dense<0.000000e+00> : vector<1x256xf32>
      %100 = tpu.matmul %98, %99, %cst_62 {dimension_numbers = #tpu.dot_dimension_numbers<[1], [0], [0], [1], [0, 0, 1, 1], [], []>} : vector<1x128xf32>, vector<128x256xf32>, vector<1x256xf32> -> vector<1x256xf32>
      %c0_63 = arith.constant 0 : index
      %c1408 = arith.constant 1408 : index
      %101 = vector.load %arg15[%c0_63, %c1408] : memref<1x2176xf32, #tpu.memory_space<vmem>>, vector<1x256xf32>
      %102 = arith.addf %100, %101 : vector<1x256xf32>
      %103 = vector.extract_strided_slice %102 {offsets = [0, 0], sizes = [1, 64], strides = [1, 1]} : vector<1x256xf32> to vector<1x64xf32>
      %104 = arith.negf %103 : vector<1x64xf32>
      %105 = math.exp %104 : vector<1x64xf32>
      %cst_64 = arith.constant 1.000000e+00 : f32
      %106 = vector.broadcast %cst_64 : f32 to vector<1x64xf32>
      %107 = arith.addf %106, %105 : vector<1x64xf32>
      %108 = arith.divf %106, %107 : vector<1x64xf32>
      %109 = vector.extract_strided_slice %102 {offsets = [0, 64], sizes = [1, 64], strides = [1, 1]} : vector<1x256xf32> to vector<1x64xf32>
      %110 = arith.negf %109 : vector<1x64xf32>
      %111 = math.exp %110 : vector<1x64xf32>
      %cst_65 = arith.constant 1.000000e+00 : f32
      %112 = vector.broadcast %cst_65 : f32 to vector<1x64xf32>
      %113 = arith.addf %112, %111 : vector<1x64xf32>
      %114 = arith.divf %112, %113 : vector<1x64xf32>
      %115 = vector.extract_strided_slice %102 {offsets = [0, 128], sizes = [1, 64], strides = [1, 1]} : vector<1x256xf32> to vector<1x64xf32>
      %cst_66 = arith.constant 0.000000e+00 : f32
      %116 = vector.broadcast %cst_66 : f32 to vector<1x64xf32>
      %117 = arith.maximumf %115, %116 : vector<1x64xf32>
      %118 = vector.extract_strided_slice %102 {offsets = [0, 192], sizes = [1, 64], strides = [1, 1]} : vector<1x256xf32> to vector<1x64xf32>
      %cst_67 = arith.constant 0.000000e+00 : f32
      %119 = vector.broadcast %cst_67 : f32 to vector<1x64xf32>
      %120 = arith.maximumf %118, %119 : vector<1x64xf32>
      %121 = arith.mulf %108, %117 : vector<1x64xf32>
      %122 = arith.mulf %114, %120 : vector<1x64xf32>
      %123 = tpu.concatenate %121, %122 in 0 : vector<1x64xf32>, vector<1x64xf32> -> vector<2x64xf32>
      %c0_68 = arith.constant 0 : index
      %c0_69 = arith.constant 0 : index
      %124 = vector.load %arg11[%c0_68, %c0_69] : memref<64x64xf32, #tpu.memory_space<vmem>>, vector<64x64xf32>
      %cst_70 = arith.constant dense<0.000000e+00> : vector<2x64xf32>
      %125 = tpu.matmul %123, %124, %cst_70 {dimension_numbers = #tpu.dot_dimension_numbers<[1], [0], [0], [1], [0, 0, 1, 1], [], []>} : vector<2x64xf32>, vector<64x64xf32>, vector<2x64xf32> -> vector<2x64xf32>
      %c0_71 = arith.constant 0 : index
      %c1664 = arith.constant 1664 : index
      %126 = vector.load %arg15[%c0_71, %c1664] : memref<1x2176xf32, #tpu.memory_space<vmem>>, vector<1x64xf32>
      %127 = vector.broadcast %126 : vector<1x64xf32> to vector<2x64xf32>
      %128 = arith.addf %125, %127 : vector<2x64xf32>
      %cst_72 = arith.constant 0.000000e+00 : f32
      %129 = vector.broadcast %cst_72 : f32 to vector<2x64xf32>
      %130 = arith.maximumf %128, %129 : vector<2x64xf32>
      %131 = vector.extract_strided_slice %130 {offsets = [0, 0], sizes = [1, 64], strides = [1, 1]} : vector<2x64xf32> to vector<1x64xf32>
      %132 = vector.extract_strided_slice %130 {offsets = [1, 0], sizes = [1, 64], strides = [1, 1]} : vector<2x64xf32> to vector<1x64xf32>
      %133 = tpu.concatenate %131, %132 in 1 : vector<1x64xf32>, vector<1x64xf32> -> vector<1x128xf32>
      %c0_73 = arith.constant 0 : index
      %c0_74 = arith.constant 0 : index
      %134 = vector.load %arg12[%c0_73, %c0_74] : memref<128x64xf32, #tpu.memory_space<vmem>>, vector<128x64xf32>
      %cst_75 = arith.constant dense<0.000000e+00> : vector<1x64xf32>
      %135 = tpu.matmul %133, %134, %cst_75 {dimension_numbers = #tpu.dot_dimension_numbers<[1], [0], [0], [1], [0, 0, 1, 1], [], []>} : vector<1x128xf32>, vector<128x64xf32>, vector<1x64xf32> -> vector<1x64xf32>
      %c0_76 = arith.constant 0 : index
      %c1792 = arith.constant 1792 : index
      %136 = vector.load %arg15[%c0_76, %c1792] : memref<1x2176xf32, #tpu.memory_space<vmem>>, vector<1x64xf32>
      %137 = arith.addf %135, %136 : vector<1x64xf32>
      %cst_77 = arith.constant 0.000000e+00 : f32
      %138 = vector.broadcast %cst_77 : f32 to vector<1x64xf32>
      %139 = arith.maximumf %137, %138 : vector<1x64xf32>
      %c0_78 = arith.constant 0 : index
      %c0_79 = arith.constant 0 : index
      %140 = vector.load %arg13[%c0_78, %c0_79] : memref<64x32xf32, #tpu.memory_space<vmem>>, vector<64x32xf32>
      %cst_80 = arith.constant dense<0.000000e+00> : vector<1x32xf32>
      %141 = tpu.matmul %139, %140, %cst_80 {dimension_numbers = #tpu.dot_dimension_numbers<[1], [0], [0], [1], [0, 0, 1, 1], [], []>} : vector<1x64xf32>, vector<64x32xf32>, vector<1x32xf32> -> vector<1x32xf32>
      %c0_81 = arith.constant 0 : index
      %c1920 = arith.constant 1920 : index
      %142 = vector.load %arg15[%c0_81, %c1920] : memref<1x2176xf32, #tpu.memory_space<vmem>>, vector<1x32xf32>
      %143 = arith.addf %141, %142 : vector<1x32xf32>
      %cst_82 = arith.constant 0.000000e+00 : f32
      %144 = vector.broadcast %cst_82 : f32 to vector<1x32xf32>
      %145 = arith.maximumf %143, %144 : vector<1x32xf32>
      %c0_83 = arith.constant 0 : index
      %c0_84 = arith.constant 0 : index
      %146 = vector.load %arg14[%c0_83, %c0_84] : memref<32x2xf32, #tpu.memory_space<vmem>>, vector<32x2xf32>
      %cst_85 = arith.constant dense<0.000000e+00> : vector<1x2xf32>
      %147 = tpu.matmul %145, %146, %cst_85 {dimension_numbers = #tpu.dot_dimension_numbers<[1], [0], [0], [1], [0, 0, 1, 1], [], []>} : vector<1x32xf32>, vector<32x2xf32>, vector<1x2xf32> -> vector<1x2xf32>
      %c0_86 = arith.constant 0 : index
      %c2048 = arith.constant 2048 : index
      %148 = vector.load %arg15[%c0_86, %c2048] : memref<1x2176xf32, #tpu.memory_space<vmem>>, vector<1x2xf32>
      %149 = arith.addf %147, %148 : vector<1x2xf32>
      %c0_87 = arith.constant 0 : index
      %c0_88 = arith.constant 0 : index
      %c0_89 = arith.constant 0 : index
      %150 = vector.load %arg16[%c0_87, %c0_88, %c0_89] : memref<1x1x2xf32, #tpu.memory_space<vmem>>, vector<1x1x2xf32>
      %151 = vector.shape_cast %150 : vector<1x1x2xf32> to vector<1x2xf32>
      %152 = vector.shape_cast %149 : vector<1x2xf32> to vector<1x1x2xf32>
      tpu.vector_store %arg16[%c0_87, %c0_88, %c0_89], %152 {strides = array<i32>} : memref<1x1x2xf32, #tpu.memory_space<vmem>>, vector<1x1x2xf32>,
    } else {
    }
    return
  }
  func.func @transform_0(%arg0: i32, %arg1: i32) -> (i32, i32, i32) {
    %c0_i32 = arith.constant 0 : i32
    %c0_i32_0 = arith.constant 0 : i32
    return %arg0, %arg1, %c0_i32 : i32, i32, i32
  }
  func.func @transform_1(%arg0: i32, %arg1: i32) -> (i32, i32, i32) {
    %c0_i32 = arith.constant 0 : i32
    %c0_i32_0 = arith.constant 0 : i32
    %c0_i32_1 = arith.constant 0 : i32
    return %arg0, %c0_i32, %c0_i32_0 : i32, i32, i32
  }
  func.func @transform_2(%arg0: i32, %arg1: i32) -> (i32, i32) {
    %c0_i32 = arith.constant 0 : i32
    %c0_i32_0 = arith.constant 0 : i32
    %c0_i32_1 = arith.constant 0 : i32
    return %c0_i32, %c0_i32_0 : i32, i32
  }
  func.func @transform_3(%arg0: i32, %arg1: i32) -> (i32, i32) {
    %c0_i32 = arith.constant 0 : i32
    %c0_i32_0 = arith.constant 0 : i32
    %c0_i32_1 = arith.constant 0 : i32
    return %c0_i32, %c0_i32_0 : i32, i32
  }
  func.func @transform_4(%arg0: i32, %arg1: i32) -> (i32, i32) {
    %c0_i32 = arith.constant 0 : i32
    %c0_i32_0 = arith.constant 0 : i32
    %c0_i32_1 = arith.constant 0 : i32
    return %c0_i32, %c0_i32_0 : i32, i32
  }
  func.func @transform_5(%arg0: i32, %arg1: i32) -> (i32, i32) {
    %c0_i32 = arith.constant 0 : i32
    %c0_i32_0 = arith.constant 0 : i32
    %c0_i32_1 = arith.constant 0 : i32
    return %c0_i32, %c0_i32_0 : i32, i32
  }
  func.func @transform_6(%arg0: i32, %arg1: i32) -> (i32, i32) {
    %c0_i32 = arith.constant 0 : i32
    %c0_i32_0 = arith.constant 0 : i32
    %c0_i32_1 = arith.constant 0 : i32
    return %c0_i32, %c0_i32_0 : i32, i32
  }
  func.func @transform_7(%arg0: i32, %arg1: i32) -> (i32, i32) {
    %c0_i32 = arith.constant 0 : i32
    %c0_i32_0 = arith.constant 0 : i32
    %c0_i32_1 = arith.constant 0 : i32
    return %c0_i32, %c0_i32_0 : i32, i32
  }
  func.func @transform_8(%arg0: i32, %arg1: i32) -> (i32, i32) {
    %c0_i32 = arith.constant 0 : i32
    %c0_i32_0 = arith.constant 0 : i32
    %c0_i32_1 = arith.constant 0 : i32
    return %c0_i32, %c0_i32_0 : i32, i32
  }
  func.func @transform_9(%arg0: i32, %arg1: i32) -> (i32, i32) {
    %c0_i32 = arith.constant 0 : i32
    %c0_i32_0 = arith.constant 0 : i32
    %c0_i32_1 = arith.constant 0 : i32
    return %c0_i32, %c0_i32_0 : i32, i32
  }
  func.func @transform_10(%arg0: i32, %arg1: i32) -> (i32, i32) {
    %c0_i32 = arith.constant 0 : i32
    %c0_i32_0 = arith.constant 0 : i32
    %c0_i32_1 = arith.constant 0 : i32
    return %c0_i32, %c0_i32_0 : i32, i32
  }
  func.func @transform_11(%arg0: i32, %arg1: i32) -> (i32, i32) {
    %c0_i32 = arith.constant 0 : i32
    %c0_i32_0 = arith.constant 0 : i32
    %c0_i32_1 = arith.constant 0 : i32
    return %c0_i32, %c0_i32_0 : i32, i32
  }
  func.func @transform_12(%arg0: i32, %arg1: i32) -> (i32, i32) {
    %c0_i32 = arith.constant 0 : i32
    %c0_i32_0 = arith.constant 0 : i32
    %c0_i32_1 = arith.constant 0 : i32
    return %c0_i32, %c0_i32_0 : i32, i32
  }
  func.func @transform_13(%arg0: i32, %arg1: i32) -> (i32, i32) {
    %c0_i32 = arith.constant 0 : i32
    %c0_i32_0 = arith.constant 0 : i32
    %c0_i32_1 = arith.constant 0 : i32
    return %c0_i32, %c0_i32_0 : i32, i32
  }
  func.func @transform_14(%arg0: i32, %arg1: i32) -> (i32, i32, i32) {
    %c0_i32 = arith.constant 0 : i32
    %c0_i32_0 = arith.constant 0 : i32
    %c0_i32_1 = arith.constant 0 : i32
    return %arg0, %c0_i32, %c0_i32_0 : i32, i32, i32
  }
}

</mosaic_0001>

<llo_original>
// kernel: tpu_custom_call.1
$region0: #{tpu_custom_call.1}
  #allocation0 [shape = 'u32[]', space=smem, size = 0x4, offset = 0x4, fixed_abs, tag = 'smem constant byte address 0x4 - core index']
  #allocation1 [shape = 'u32[144,128]{1,0:T(1,128)}', space=vmem, size = 0x12000, scoped, tag = 'internal scratch']
  #allocation2 [shape = 'f32[1,1]{1,0:T(1,128)}', space=vmem, size = 0x200, scoped, tag = 'scratch operand']
  #allocation3 [shape = 'f32[1,1]{1,0:T(1,128)}', space=vmem, size = 0x200, scoped, tag = 'scratch operand']
  #allocation4 [shape = 'f32[1,64]{1,0:T(1,128)}', space=vmem, size = 0x200, scoped, tag = 'scratch operand']
  %s0 = inlined_call_operand.hbm [shape: f32[2,256,512], index: 0, kind: input, shape index: {}]
  %s1 = inlined_call_operand.hbm [shape: f32[2,1,16], index: 1, kind: input, shape index: {}]
  %s2 = inlined_call_operand.hbm [shape: bf16[512,384], index: 2, kind: input, shape index: {}]
  %s3 = inlined_call_operand.vmem [shape: bf16[384,256], index: 3, kind: input, shape index: {}]
  %s4 = inlined_call_operand.vmem [shape: bf16[256,64], index: 4, kind: input, shape index: {}]
  %s5 = inlined_call_operand.vmem [shape: bf16[64,32], index: 5, kind: input, shape index: {}]
  %s6 = inlined_call_operand.hbm [shape: f32[16,32], index: 6, kind: input, shape index: {}]
  %s7 = inlined_call_operand.hbm [shape: f32[32,64], index: 7, kind: input, shape index: {}]
  %s8 = inlined_call_operand.hbm [shape: f32[128,256], index: 8, kind: input, shape index: {}]
  %s9 = inlined_call_operand.vmem [shape: f32[64,64], index: 9, kind: input, shape index: {}]
  %s10 = inlined_call_operand.vmem [shape: f32[128,64], index: 10, kind: input, shape index: {}]
  %s11 = inlined_call_operand.vmem [shape: f32[64,32], index: 11, kind: input, shape index: {}]
  %s12 = inlined_call_operand.vmem [shape: f32[32,2], index: 12, kind: input, shape index: {}]
  %s13 = inlined_call_operand.hbm [shape: f32[1,2176], index: 13, kind: input, shape index: {}]
  %s14 = inlined_call_operand.hbm [shape: f32[2,1,2], index: 14, kind: output, shape index: {}]
  %s15 = sld [smem:[#allocation0]]
  $region125: #{tpu_custom_call.1} parent=0
    _
  %s17 = ssub.s32 1, %s15
  %s18 = scalar_select 0, %s17, %s15
  $region1: #{tpu_custom_call.1} parent=0
    #allocation5 [shape = 'u8[262144]{0}', space=vmem, size = 0x40000, scoped, tag = 'input window, operand 0']
    #allocation6 [shape = 's32[2]{0}', space=sflag, size = 0x8, scoped, tag = 'scoped memory for tpu_custom_call.1']
    #allocation7 [shape = 's32[2]{0}', space=sflag, size = 0x8, scoped, tag = 'scoped memory for tpu_custom_call.1']
    #allocation8 [shape = 'u8[1024]{0}', space=vmem, size = 0x400, scoped, tag = 'input window, operand 1']
    #allocation9 [shape = 's32[2]{0}', space=sflag, size = 0x8, scoped, tag = 'scoped memory for tpu_custom_call.1']
    #allocation10 [shape = 'u8[393216]{0}', space=vmem, size = 0x60000, scoped, tag = 'input window, operand 2, single buffered']
    #allocation11 [shape = 'u8[8192]{0}', space=vmem, size = 0x2000, scoped, tag = 'input window, operand 6, single buffered']
    #allocation12 [shape = 's32[1]{0}', space=sflag, size = 0x4, scoped, tag = 'scoped memory for tpu_custom_call.1']
    #allocation13 [shape = 'u8[16384]{0}', space=vmem, size = 0x4000, scoped, tag = 'input window, operand 7, single buffered']
    #allocation14 [shape = 'u8[131072]{0}', space=vmem, size = 0x20000, scoped, tag = 'input window, operand 8, single buffered']
    #allocation15 [shape = 's32[1]{0}', space=sflag, size = 0x4, scoped, tag = 'scoped memory for tpu_custom_call.1']
    #allocation16 [shape = 'u8[8704]{0}', space=vmem, size = 0x2400, scoped, tag = 'input window, operand 13, single buffered']
    #allocation17 [shape = 'u8[1024]{0}', space=vmem, size = 0x400, scoped, tag = 'output window, operand 0']
    %19 = vsyncpa [#allocation6], 0
    %s20 = scalar_lea.sflag [#allocation6], 1
    %21 = vsyncpa %s20, 0
    %22 = vsyncpa [#allocation9], 0
    %s23 = scalar_lea.sflag [#allocation9], 1
    %24 = vsyncpa %s23, 0
    %25 = vsyncpa [#allocation12], 0
    %26 = vsyncpa [#allocation15], 0
    %27 = vsyncpa [#allocation7], 0
    %s28 = scalar_lea.sflag [#allocation7], 1
    %29 = vsyncpa %s28, 0
    loop: start=0, step=1, limit=10
    $region2: #{tpu_custom_call.1} parent=1 // loop_pre_header
      _
    $region3: #{tpu_custom_call.1} parent=1 // loop_header
      %s31 = sphi 0, %s35
      %p32 = scmp.ge.s32.totalorder %s31, 10
      %s38 = sphi 0, %s50
      %s39 = sphi 0, %s46
      %s40 = sphi 0, %s38
      %s41 = sphi 0, %s39
      %s42 = sphi 0, %s40
      %s43 = sphi 0, %s41
      %s55 = sphi 0, %s57
      %s58 = sphi 0, %s55
      %s59 = sphi 0, %s58
      %s75 = sphi 0, %s59
      %s81 = sphi 0, %s83
      %s84 = sphi 0, %s81
      %s85 = sphi 0, %s84
      %s101 = sphi 0, %s85
      %s105 = sphi 0, %s105
      %s107 = sphi 0, %s105
      %s108 = sphi 0, %s107
      %s122 = sphi 0, %s108
      %s126 = sphi 0, %s126
      %s128 = sphi 0, %s126
      %s129 = sphi 0, %s128
      %s143 = sphi 0, %s129
      %s147 = sphi 0, %s147
      %s149 = sphi 0, %s147
      %s150 = sphi 0, %s149
      %s164 = sphi 0, %s150
      %s168 = sphi 0, %s168
      %s170 = sphi 0, %s168
      %s171 = sphi 0, %s170
      %s185 = sphi 0, %s171
      %s189 = sphi 0, %s189
      %s191 = sphi 0, %s189
      %s192 = sphi 0, %s191
      %s206 = sphi 0, %s192
      %s210 = sphi 0, %s210
      %s212 = sphi 0, %s210
      %s213 = sphi 0, %s212
      %s227 = sphi 0, %s213
      %s231 = sphi 0, %s231
      %s233 = sphi 0, %s231
      %s234 = sphi 0, %s233
      %s248 = sphi 0, %s234
      %s252 = sphi 0, %s252
      %s254 = sphi 0, %s252
      %s255 = sphi 0, %s254
      %s269 = sphi 0, %s255
      %s273 = sphi 0, %s273
      %s275 = sphi 0, %s273
      %s276 = sphi 0, %s275
      %s290 = sphi 0, %s276
      %s294 = sphi 0, %s294
      %s296 = sphi 0, %s294
      %s297 = sphi 0, %s296
      %s311 = sphi 0, %s297
      %s315 = sphi 0, %s315
      %s317 = sphi 0, %s315
      %s318 = sphi 0, %s317
      %s332 = sphi 0, %s318
      %s336 = sphi 0, %s336
      %s338 = sphi 0, %s336
      %s339 = sphi 0, %s338
      %s353 = sphi 0, %s339
      %s359 = sphi 0, %s361
      %s362 = sphi 0, %s359
      %s363 = sphi 0, %s362
      %s379 = sphi 0, %s363
    $region4: #{tpu_custom_call.1} parent=1 // loop_header_branch
      %34 = sbr.rel (%p32) target = $region8
    $region5: #{tpu_custom_call.1} parent=1 // loop_body
      %s36 = ssub.s32 %s31, 1
      %s37 = ssub.s32 %s31, 2
      %s44 = sadd.s32 1, %s39
      %p45 = scmp.ge.s32.totalorder %s44, 4
      %s46 = scalar_select %p45, 0, %s44
      %s47 = sadd.s32 1, %s38
      %s48 = scalar_select %p45, %s47, %s38
      %p49 = scmp.ge.s32.totalorder %s48, 2
      %s50 = scalar_select %p49, 0, %s48
      %s51 = ssub.s32 %s38, %s50
      %s52 = ssub.s32 %s39, %s46
      %s53 = sor.u32 %s51, %s52
      %p54 = scmp.eq.s32.totalorder %s53, 0
      %s56 = sadd.s32 %s55, 1
      %s57 = scalar_select %p54, %s55, %s56
      %p60 = pneg %p54
      %p61 = scmp.eq.s32.totalorder %s31, 7
      %p62 = por %p60, %p61
      %p63 = scmp.ne.s32.totalorder %s55, %s58
      %p64 = scmp.eq.s32.totalorder %s31, 0
      %p65 = por %p63, %p64
      %p66 = scmp.ne.s32.totalorder %s55, %s58
      %p67 = scmp.eq.s32.totalorder %s36, 7
      %p68 = por %p66, %p67
      %p69 = scmp.ne.s32.totalorder %s58, %s59
      %p70 = scmp.eq.s32.totalorder %s36, 0
      %p71 = por %p69, %p70
      %p72 = scmp.ne.s32.totalorder %s58, %s59
      %p73 = scmp.eq.s32.totalorder %s37, 7
      %p74 = por %p72, %p73
      %p76 = scmp.ne.s32.totalorder %s59, %s75
      %p77 = scmp.eq.s32.totalorder %s37, 0
      %p78 = por %p76, %p77
      %s79 = ssub.s32 %s38, %s50
      %p80 = scmp.eq.s32.totalorder %s79, 0
      %s82 = sadd.s32 %s81, 1
      %s83 = scalar_select %p80, %s81, %s82
      %p86 = pneg %p80
      %p87 = scmp.eq.s32.totalorder %s31, 7
      %p88 = por %p86, %p87
      %p89 = scmp.ne.s32.totalorder %s81, %s84
      %p90 = scmp.eq.s32.totalorder %s31, 0
      %p91 = por %p89, %p90
      %p92 = scmp.ne.s32.totalorder %s81, %s84
      %p93 = scmp.eq.s32.totalorder %s36, 7
      %p94 = por %p92, %p93
      %p95 = scmp.ne.s32.totalorder %s84, %s85
      %p96 = scmp.eq.s32.totalorder %s36, 0
      %p97 = por %p95, %p96
      %p98 = scmp.ne.s32.totalorder %s84, %s85
      %p99 = scmp.eq.s32.totalorder %s37, 7
      %p100 = por %p98, %p99
      %p102 = scmp.ne.s32.totalorder %s85, %s101
      %p103 = scmp.eq.s32.totalorder %s37, 0
      %p104 = por %p102, %p103
      %s106 = sadd.s32 %s105, 1
      %p109 = scmp.eq.s32.totalorder %s31, 7
      %p110 = scmp.ne.s32.totalorder %s105, %s107
      %p111 = scmp.eq.s32.totalorder %s31, 0
      %p112 = por %p110, %p111
      %p113 = scmp.ne.s32.totalorder %s105, %s107
      %p114 = scmp.eq.s32.totalorder %s36, 7
      %p115 = por %p113, %p114
      %p116 = scmp.ne.s32.totalorder %s107, %s108
      %p117 = scmp.eq.s32.totalorder %s36, 0
      %p118 = por %p116, %p117
      %p119 = scmp.ne.s32.totalorder %s107, %s108
      %p120 = scmp.eq.s32.totalorder %s37, 7
      %p121 = por %p119, %p120
      %p123 = scmp.ne.s32.totalorder %s108, %s122
      %p124 = scmp.eq.s32.totalorder %s37, 0
      %p125 = por %p123, %p124
      %s127 = sadd.s32 %s126, 1
      %p130 = scmp.eq.s32.totalorder %s31, 7
      %p131 = scmp.ne.s32.totalorder %s126, %s128
      %p132 = scmp.eq.s32.totalorder %s31, 0
      %p133 = por %p131, %p132
      %p134 = scmp.ne.s32.totalorder %s126, %s128
      %p135 = scmp.eq.s32.totalorder %s36, 7
      %p136 = por %p134, %p135
      %p137 = scmp.ne.s32.totalorder %s128, %s129
      %p138 = scmp.eq.s32.totalorder %s36, 0
      %p139 = por %p137, %p138
      %p140 = scmp.ne.s32.totalorder %s128, %s129
      %p141 = scmp.eq.s32.totalorder %s37, 7
      %p142 = por %p140, %p141
      %p144 = scmp.ne.s32.totalorder %s129, %s143
      %p145 = scmp.eq.s32.totalorder %s37, 0
      %p146 = por %p144, %p145
      %s148 = sadd.s32 %s147, 1
      %p151 = scmp.eq.s32.totalorder %s31, 7
      %p152 = scmp.ne.s32.totalorder %s147, %s149
      %p153 = scmp.eq.s32.totalorder %s31, 0
      %p154 = por %p152, %p153
      %p155 = scmp.ne.s32.totalorder %s147, %s149
      %p156 = scmp.eq.s32.totalorder %s36, 7
      %p157 = por %p155, %p156
      %p158 = scmp.ne.s32.totalorder %s149, %s150
      %p159 = scmp.eq.s32.totalorder %s36, 0
      %p160 = por %p158, %p159
      %p161 = scmp.ne.s32.totalorder %s149, %s150
      %p162 = scmp.eq.s32.totalorder %s37, 7
      %p163 = por %p161, %p162
      %p165 = scmp.ne.s32.totalorder %s150, %s164
      %p166 = scmp.eq.s32.totalorder %s37, 0
      %p167 = por %p165, %p166
      %s169 = sadd.s32 %s168, 1
      %p172 = scmp.eq.s32.totalorder %s31, 7
      %p173 = scmp.ne.s32.totalorder %s168, %s170
      %p174 = scmp.eq.s32.totalorder %s31, 0
      %p175 = por %p173, %p174
      %p176 = scmp.ne.s32.totalorder %s168, %s170
      %p177 = scmp.eq.s32.totalorder %s36, 7
      %p178 = por %p176, %p177
      %p179 = scmp.ne.s32.totalorder %s170, %s171
      %p180 = scmp.eq.s32.totalorder %s36, 0
      %p181 = por %p179, %p180
      %p182 = scmp.ne.s32.totalorder %s170, %s171
      %p183 = scmp.eq.s32.totalorder %s37, 7
      %p184 = por %p182, %p183
      %p186 = scmp.ne.s32.totalorder %s171, %s185
      %p187 = scmp.eq.s32.totalorder %s37, 0
      %p188 = por %p186, %p187
      %s190 = sadd.s32 %s189, 1
      %p193 = scmp.eq.s32.totalorder %s31, 7
      %p194 = scmp.ne.s32.totalorder %s189, %s191
      %p195 = scmp.eq.s32.totalorder %s31, 0
      %p196 = por %p194, %p195
      %p197 = scmp.ne.s32.totalorder %s189, %s191
      %p198 = scmp.eq.s32.totalorder %s36, 7
      %p199 = por %p197, %p198
      %p200 = scmp.ne.s32.totalorder %s191, %s192
      %p201 = scmp.eq.s32.totalorder %s36, 0
      %p202 = por %p200, %p201
      %p203 = scmp.ne.s32.totalorder %s191, %s192
      %p204 = scmp.eq.s32.totalorder %s37, 7
      %p205 = por %p203, %p204
      %p207 = scmp.ne.s32.totalorder %s192, %s206
      %p208 = scmp.eq.s32.totalorder %s37, 0
      %p209 = por %p207, %p208
      %s211 = sadd.s32 %s210, 1
      %p214 = scmp.eq.s32.totalorder %s31, 7
      %p215 = scmp.ne.s32.totalorder %s210, %s212
      %p216 = scmp.eq.s32.totalorder %s31, 0
      %p217 = por %p215, %p216
      %p218 = scmp.ne.s32.totalorder %s210, %s212
      %p219 = scmp.eq.s32.totalorder %s36, 7
      %p220 = por %p218, %p219
      %p221 = scmp.ne.s32.totalorder %s212, %s213
      %p222 = scmp.eq.s32.totalorder %s36, 0
      %p223 = por %p221, %p222
      %p224 = scmp.ne.s32.totalorder %s212, %s213
      %p225 = scmp.eq.s32.totalorder %s37, 7
      %p226 = por %p224, %p225
      %p228 = scmp.ne.s32.totalorder %s213, %s227
      %p229 = scmp.eq.s32.totalorder %s37, 0
      %p230 = por %p228, %p229
      %s232 = sadd.s32 %s231, 1
      %p235 = scmp.eq.s32.totalorder %s31, 7
      %p236 = scmp.ne.s32.totalorder %s231, %s233
      %p237 = scmp.eq.s32.totalorder %s31, 0
      %p238 = por %p236, %p237
      %p239 = scmp.ne.s32.totalorder %s231, %s233
      %p240 = scmp.eq.s32.totalorder %s36, 7
      %p241 = por %p239, %p240
      %p242 = scmp.ne.s32.totalorder %s233, %s234
      %p243 = scmp.eq.s32.totalorder %s36, 0
      %p244 = por %p242, %p243
      %p245 = scmp.ne.s32.totalorder %s233, %s234
      %p246 = scmp.eq.s32.totalorder %s37, 7
      %p247 = por %p245, %p246
      %p249 = scmp.ne.s32.totalorder %s234, %s248
      %p250 = scmp.eq.s32.totalorder %s37, 0
      %p251 = por %p249, %p250
      %s253 = sadd.s32 %s252, 1
      %p256 = scmp.eq.s32.totalorder %s31, 7
      %p257 = scmp.ne.s32.totalorder %s252, %s254
      %p258 = scmp.eq.s32.totalorder %s31, 0
      %p259 = por %p257, %p258
      %p260 = scmp.ne.s32.totalorder %s252, %s254
      %p261 = scmp.eq.s32.totalorder %s36, 7
      %p262 = por %p260, %p261
      %p263 = scmp.ne.s32.totalorder %s254, %s255
      %p264 = scmp.eq.s32.totalorder %s36, 0
      %p265 = por %p263, %p264
      %p266 = scmp.ne.s32.totalorder %s254, %s255
      %p267 = scmp.eq.s32.totalorder %s37, 7
      %p268 = por %p266, %p267
      %p270 = scmp.ne.s32.totalorder %s255, %s269
      %p271 = scmp.eq.s32.totalorder %s37, 0
      %p272 = por %p270, %p271
      %s274 = sadd.s32 %s273, 1
      %p277 = scmp.eq.s32.totalorder %s31, 7
      %p278 = scmp.ne.s32.totalorder %s273, %s275
      %p279 = scmp.eq.s32.totalorder %s31, 0
      %p280 = por %p278, %p279
      %p281 = scmp.ne.s32.totalorder %s273, %s275
      %p282 = scmp.eq.s32.totalorder %s36, 7
      %p283 = por %p281, %p282
      %p284 = scmp.ne.s32.totalorder %s275, %s276
      %p285 = scmp.eq.s32.totalorder %s36, 0
      %p286 = por %p284, %p285
      %p287 = scmp.ne.s32.totalorder %s275, %s276
      %p288 = scmp.eq.s32.totalorder %s37, 7
      %p289 = por %p287, %p288
      %p291 = scmp.ne.s32.totalorder %s276, %s290
      %p292 = scmp.eq.s32.totalorder %s37, 0
      %p293 = por %p291, %p292
      %s295 = sadd.s32 %s294, 1
      %p298 = scmp.eq.s32.totalorder %s31, 7
      %p299 = scmp.ne.s32.totalorder %s294, %s296
      %p300 = scmp.eq.s32.totalorder %s31, 0
      %p301 = por %p299, %p300
      %p302 = scmp.ne.s32.totalorder %s294, %s296
      %p303 = scmp.eq.s32.totalorder %s36, 7
      %p304 = por %p302, %p303
      %p305 = scmp.ne.s32.totalorder %s296, %s297
      %p306 = scmp.eq.s32.totalorder %s36, 0
      %p307 = por %p305, %p306
      %p308 = scmp.ne.s32.totalorder %s296, %s297
      %p309 = scmp.eq.s32.totalorder %s37, 7
      %p310 = por %p308, %p309
      %p312 = scmp.ne.s32.totalorder %s297, %s311
      %p313 = scmp.eq.s32.totalorder %s37, 0
      %p314 = por %p312, %p313
      %s316 = sadd.s32 %s315, 1
      %p319 = scmp.eq.s32.totalorder %s31, 7
      %p320 = scmp.ne.s32.totalorder %s315, %s317
      %p321 = scmp.eq.s32.totalorder %s31, 0
      %p322 = por %p320, %p321
      %p323 = scmp.ne.s32.totalorder %s315, %s317
      %p324 = scmp.eq.s32.totalorder %s36, 7
      %p325 = por %p323, %p324
      %p326 = scmp.ne.s32.totalorder %s317, %s318
      %p327 = scmp.eq.s32.totalorder %s36, 0
      %p328 = por %p326, %p327
      %p329 = scmp.ne.s32.totalorder %s317, %s318
      %p330 = scmp.eq.s32.totalorder %s37, 7
      %p331 = por %p329, %p330
      %p333 = scmp.ne.s32.totalorder %s318, %s332
      %p334 = scmp.eq.s32.totalorder %s37, 0
      %p335 = por %p333, %p334
      %s337 = sadd.s32 %s336, 1
      %p340 = scmp.eq.s32.totalorder %s31, 7
      %p341 = scmp.ne.s32.totalorder %s336, %s338
      %p342 = scmp.eq.s32.totalorder %s31, 0
      %p343 = por %p341, %p342
      %p344 = scmp.ne.s32.totalorder %s336, %s338
      %p345 = scmp.eq.s32.totalorder %s36, 7
      %p346 = por %p344, %p345
      %p347 = scmp.ne.s32.totalorder %s338, %s339
      %p348 = scmp.eq.s32.totalorder %s36, 0
      %p349 = por %p347, %p348
      %p350 = scmp.ne.s32.totalorder %s338, %s339
      %p351 = scmp.eq.s32.totalorder %s37, 7
      %p352 = por %p350, %p351
      %p354 = scmp.ne.s32.totalorder %s339, %s353
      %p355 = scmp.eq.s32.totalorder %s37, 0
      %p356 = por %p354, %p355
      %s357 = ssub.s32 %s38, %s50
      %p358 = scmp.eq.s32.totalorder %s357, 0
      %s360 = sadd.s32 %s359, 1
      %s361 = scalar_select %p358, %s359, %s360
      %p364 = pneg %p358
      %p365 = scmp.eq.s32.totalorder %s31, 7
      %p366 = por %p364, %p365
      %p367 = scmp.ne.s32.totalorder %s359, %s362
      %p368 = scmp.eq.s32.totalorder %s31, 0
      %p369 = por %p367, %p368
      %p370 = scmp.ne.s32.totalorder %s359, %s362
      %p371 = scmp.eq.s32.totalorder %s36, 7
      %p372 = por %p370, %p371
      %p373 = scmp.ne.s32.totalorder %s362, %s363
      %p374 = scmp.eq.s32.totalorder %s36, 0
      %p375 = por %p373, %p374
      %p376 = scmp.ne.s32.totalorder %s362, %s363
      %p377 = scmp.eq.s32.totalorder %s37, 7
      %p378 = por %p376, %p377
      %p380 = scmp.ne.s32.totalorder %s363, %s379
      %p381 = scmp.eq.s32.totalorder %s37, 0
      %p382 = por %p380, %p381
      %p383 = scmp.le.s32.totalorder 1, %s31
      %p384 = scmp.lt.s32.totalorder %s31, 9
      %p385 = pnand %p383, %p384
      %p386 = pneg %p385
      // Predicated region
      $region9: #{tpu_custom_call.1} parent=5 // pred_check
        _
      $region10: #{tpu_custom_call.1} parent=5 // pred_check_branch
        %388 = sbr.rel (%p385) target = $region12
      $region11: #{tpu_custom_call.1} parent=5 // pred_region
        %s389 = ssub.s32 %s31, 1
        // Predicated region
        $region13: #{tpu_custom_call.1} parent=11 // pred_check
          %p390 = pneg %p118
        $region14: #{tpu_custom_call.1} parent=11 // pred_check_branch
          %392 = sbr.rel (%p390) target = $region16
        $region15: #{tpu_custom_call.1} parent=11 // pred_region
          %s394 = ssub.s32 12288, 12288
          %395 = vsyncadd [#allocation9], %s394
          %s396 = sshll.u32 [#allocation10], 4
          %s397 = int_to_ptr.vmem [resolvable:$true] %s396
          %402 = dma.hbm_to_vmem [thread:$0]  %s2, 12288, %s397, [#allocation9], 192, 192, 12
        $region16: #{tpu_custom_call.1} parent=11 // pred_fallthru
          _
        // Predicated region
        $region17: #{tpu_custom_call.1} parent=11 // pred_check
          %p403 = pneg %p139
        $region18: #{tpu_custom_call.1} parent=11 // pred_check_branch
          %405 = sbr.rel (%p403) target = $region20
        $region19: #{tpu_custom_call.1} parent=11 // pred_region
          _
        $region20: #{tpu_custom_call.1} parent=11 // pred_fallthru
          _
        // Predicated region
        $region21: #{tpu_custom_call.1} parent=11 // pred_check
          %p406 = pneg %p160
        $region22: #{tpu_custom_call.1} parent=11 // pred_check_branch
          %408 = sbr.rel (%p406) target = $region24
        $region23: #{tpu_custom_call.1} parent=11 // pred_region
          _
        $region24: #{tpu_custom_call.1} parent=11 // pred_fallthru
          _
        // Predicated region
        $region25: #{tpu_custom_call.1} parent=11 // pred_check
          %p409 = pneg %p181
        $region26: #{tpu_custom_call.1} parent=11 // pred_check_branch
          %411 = sbr.rel (%p409) target = $region28
        $region27: #{tpu_custom_call.1} parent=11 // pred_region
          _
        $region28: #{tpu_custom_call.1} parent=11 // pred_fallthru
          _
        // Predicated region
        $region29: #{tpu_custom_call.1} parent=11 // pred_check
          %p412 = pneg %p202
        $region30: #{tpu_custom_call.1} parent=11 // pred_check_branch
          %414 = sbr.rel (%p412) target = $region32
        $region31: #{tpu_custom_call.1} parent=11 // pred_region
          %s416 = ssub.s32 256, 256
          %417 = vsyncadd [#allocation12], %s416
          %s418 = sshll.u32 [#allocation11], 4
          %s419 = int_to_ptr.vmem [resolvable:$true] %s418
          %424 = dma.hbm_to_vmem [thread:$0]  %s6, 256, %s419, [#allocation12], 128, 128, 8
        $region32: #{tpu_custom_call.1} parent=11 // pred_fallthru
          _
        // Predicated region
        $region33: #{tpu_custom_call.1} parent=11 // pred_check
          %p425 = pneg %p223
        $region34: #{tpu_custom_call.1} parent=11 // pred_check_branch
          %427 = sbr.rel (%p425) target = $region36
        $region35: #{tpu_custom_call.1} parent=11 // pred_region
          %s429 = ssub.s32 512, 512
          %430 = vsyncadd [#allocation12], %s429
          %s431 = sshll.u32 [#allocation13], 4
          %s432 = int_to_ptr.vmem [resolvable:$true] %s431
          %437 = dma.hbm_to_vmem [thread:$0]  %s7, 512, %s432, [#allocation12], 128, 128, 8
        $region36: #{tpu_custom_call.1} parent=11 // pred_fallthru
          _
        // Predicated region
        $region37: #{tpu_custom_call.1} parent=11 // pred_check
          %p438 = pneg %p244
        $region38: #{tpu_custom_call.1} parent=11 // pred_check_branch
          %440 = sbr.rel (%p438) target = $region40
        $region39: #{tpu_custom_call.1} parent=11 // pred_region
          %s442 = ssub.s32 4096, 4096
          %443 = vsyncadd [#allocation15], %s442
          %s444 = sshll.u32 [#allocation14], 4
          %s445 = int_to_ptr.vmem [resolvable:$true] %s444
          %450 = dma.hbm_to_vmem [thread:$0]  %s8, 4096, %s445, [#allocation15], 256, 256, 16
        $region40: #{tpu_custom_call.1} parent=11 // pred_fallthru
          _
        // Predicated region
        $region41: #{tpu_custom_call.1} parent=11 // pred_check
          %p451 = pneg %p265
        $region42: #{tpu_custom_call.1} parent=11 // pred_check_branch
          %453 = sbr.rel (%p451) target = $region44
        $region43: #{tpu_custom_call.1} parent=11 // pred_region
          _
        $region44: #{tpu_custom_call.1} parent=11 // pred_fallthru
          _
        // Predicated region
        $region45: #{tpu_custom_call.1} parent=11 // pred_check
          %p454 = pneg %p286
        $region46: #{tpu_custom_call.1} parent=11 // pred_check_branch
          %456 = sbr.rel (%p454) target = $region48
        $region47: #{tpu_custom_call.1} parent=11 // pred_region
          _
        $region48: #{tpu_custom_call.1} parent=11 // pred_fallthru
          _
        // Predicated region
        $region49: #{tpu_custom_call.1} parent=11 // pred_check
          %p457 = pneg %p307
        $region50: #{tpu_custom_call.1} parent=11 // pred_check_branch
          %459 = sbr.rel (%p457) target = $region52
        $region51: #{tpu_custom_call.1} parent=11 // pred_region
          _
        $region52: #{tpu_custom_call.1} parent=11 // pred_fallthru
          _
        // Predicated region
        $region53: #{tpu_custom_call.1} parent=11 // pred_check
          %p460 = pneg %p328
        $region54: #{tpu_custom_call.1} parent=11 // pred_check_branch
          %462 = sbr.rel (%p460) target = $region56
        $region55: #{tpu_custom_call.1} parent=11 // pred_region
          _
        $region56: #{tpu_custom_call.1} parent=11 // pred_fallthru
          _
        // Predicated region
        $region57: #{tpu_custom_call.1} parent=11 // pred_check
          %p463 = pneg %p349
        $region58: #{tpu_custom_call.1} parent=11 // pred_check_branch
          %465 = sbr.rel (%p463) target = $region60
        $region59: #{tpu_custom_call.1} parent=11 // pred_region
          %s467 = ssub.s32 272, 272
          %468 = vsyncadd [#allocation15], %s467
          %s470 = sshll.u32 [#allocation16], 4
          %s471 = int_to_ptr.vmem [resolvable:$true] %s470
          %473 = dma.hbm_to_vmem [thread:$0]  %s13, 272, %s471, [#allocation15]
        $region60: #{tpu_custom_call.1} parent=11 // pred_fallthru
          _
      $region12: #{tpu_custom_call.1} parent=5 // pred_fallthru
        _
      %p474 = scmp.lt.s32.totalorder %s31, 8
      // Predicated region
      $region61: #{tpu_custom_call.1} parent=5 // pred_check
        %p475 = pneg %p474
      $region62: #{tpu_custom_call.1} parent=5 // pred_check_branch
        %477 = sbr.rel (%p475) target = $region64
      $region63: #{tpu_custom_call.1} parent=5 // pred_region
        // Predicated region
        $region65: #{tpu_custom_call.1} parent=63 // pred_check
          %p478 = pneg %p65
        $region66: #{tpu_custom_call.1} parent=63 // pred_check_branch
          %480 = sbr.rel (%p478) target = $region68
        $region67: #{tpu_custom_call.1} parent=63 // pred_region
          %s481 = sand.u32 %s55, 1
          %s482 = scalar_lea.sflag [#allocation6], %s481
          %s483 = sand.u32 %s55, 1
          %s484 = smul.addr %s483, 256
          %s485 = scalar_lea.vmem [#allocation5], %s484
          %s486 = smul.u32 8, %s39
          %s488 = ssub.s32 4096, 4096
          %489 = vsyncadd %s482, %s488
          %s490 = smul.addr %s486, 4
          %s491 = smul.addr %s38, 128
          %s492 = sadd.s32 %s490, %s491
          %s493 = smul.addr %s492, 128
          %s494 = scalar_lea.hbm %s0, %s493
          %s495 = sshll.u32 %s485, 4
          %s496 = int_to_ptr.vmem [resolvable:$true] %s495
          %501 = dma.hbm_to_vmem [thread:$0]  %s494, 4096, %s496, %s482, 512, 512, 32
        $region68: #{tpu_custom_call.1} parent=63 // pred_fallthru
          _
        // Predicated region
        $region69: #{tpu_custom_call.1} parent=63 // pred_check
          %p502 = pneg %p91
        $region70: #{tpu_custom_call.1} parent=63 // pred_check_branch
          %504 = sbr.rel (%p502) target = $region72
        $region71: #{tpu_custom_call.1} parent=63 // pred_region
          %s505 = sand.u32 %s31, 1
          %s506 = scalar_lea.sflag [#allocation9], %s505
          %s507 = sand.u32 %s81, 1
          %s508 = scalar_lea.vmem [#allocation8], %s507
          %s510 = ssub.s32 16, 16
          %511 = vsyncadd %s506, %s510
          %s512 = smul.addr %s38, 16
          %s513 = scalar_lea.hbm %s1, %s512
          %s515 = sshll.u32 %s508, 4
          %s516 = int_to_ptr.vmem [resolvable:$true] %s515
          %518 = dma.hbm_to_vmem [thread:$0]  %s513, 16, %s516, %s506
        $region72: #{tpu_custom_call.1} parent=63 // pred_fallthru
          _
      $region64: #{tpu_custom_call.1} parent=5 // pred_fallthru
        _
      %p519 = scmp.le.s32.totalorder 1, %s31
      %p520 = scmp.lt.s32.totalorder %s31, 9
      %p521 = pnand %p519, %p520
      %p522 = pneg %p521
      // Predicated region
      $region73: #{tpu_custom_call.1} parent=5 // pred_check
        _
      $region74: #{tpu_custom_call.1} parent=5 // pred_check_branch
        %524 = sbr.rel (%p521) target = $region76
      $region75: #{tpu_custom_call.1} parent=5 // pred_region
        %s525 = ssub.s32 %s31, 1
        %s526 = sand.u32 %s58, 1
        %s527 = scalar_lea.sflag [#allocation6], %s526
        %s528 = sand.u32 %s58, 1
        %s529 = smul.addr %s528, 256
        %s530 = scalar_lea.vmem [#allocation5], %s529
        // Predicated region
        $region77: #{tpu_custom_call.1} parent=75 // pred_check
          %p531 = pneg %p71
        $region78: #{tpu_custom_call.1} parent=75 // pred_check_branch
          %533 = sbr.rel (%p531) target = $region80
        $region79: #{tpu_custom_call.1} parent=75 // pred_region
          %534 = dma.done %s527, 4096
        $region80: #{tpu_custom_call.1} parent=75 // pred_fallthru
          _
        %s535 = sand.u32 %s36, 1
        %s536 = scalar_lea.sflag [#allocation9], %s535
        %s537 = sand.u32 %s84, 1
        %s538 = scalar_lea.vmem [#allocation8], %s537
        // Predicated region
        $region81: #{tpu_custom_call.1} parent=75 // pred_check
          %p539 = pneg %p97
        $region82: #{tpu_custom_call.1} parent=75 // pred_check_branch
          %541 = sbr.rel (%p539) target = $region84
        $region83: #{tpu_custom_call.1} parent=75 // pred_region
          %542 = dma.done %s536, 16
        $region84: #{tpu_custom_call.1} parent=75 // pred_fallthru
          _
        // Predicated region
        $region85: #{tpu_custom_call.1} parent=75 // pred_check
          %p543 = pneg %p118
        $region86: #{tpu_custom_call.1} parent=75 // pred_check_branch
          %545 = sbr.rel (%p543) target = $region88
        $region87: #{tpu_custom_call.1} parent=75 // pred_region
          %546 = dma.done [#allocation9], 12288
        $region88: #{tpu_custom_call.1} parent=75 // pred_fallthru
          _
        // Predicated region
        $region89: #{tpu_custom_call.1} parent=75 // pred_check
          %p547 = pneg %p202
        $region90: #{tpu_custom_call.1} parent=75 // pred_check_branch
          %549 = sbr.rel (%p547) target = $region92
        $region91: #{tpu_custom_call.1} parent=75 // pred_region
          %550 = dma.done [#allocation12], 256
        $region92: #{tpu_custom_call.1} parent=75 // pred_fallthru
          _
        // Predicated region
        $region93: #{tpu_custom_call.1} parent=75 // pred_check
          %p551 = pneg %p223
        $region94: #{tpu_custom_call.1} parent=75 // pred_check_branch
          %553 = sbr.rel (%p551) target = $region96
        $region95: #{tpu_custom_call.1} parent=75 // pred_region
          %554 = dma.done [#allocation12], 512
        $region96: #{tpu_custom_call.1} parent=75 // pred_fallthru
          _
        // Predicated region
        $region97: #{tpu_custom_call.1} parent=75 // pred_check
          %p555 = pneg %p244
        $region98: #{tpu_custom_call.1} parent=75 // pred_check_branch
          %557 = sbr.rel (%p555) target = $region100
        $region99: #{tpu_custom_call.1} parent=75 // pred_region
          %558 = dma.done [#allocation15], 4096
        $region100: #{tpu_custom_call.1} parent=75 // pred_fallthru
          _
        // Predicated region
        $region101: #{tpu_custom_call.1} parent=75 // pred_check
          %p559 = pneg %p349
        $region102: #{tpu_custom_call.1} parent=75 // pred_check_branch
          %561 = sbr.rel (%p559) target = $region104
        $region103: #{tpu_custom_call.1} parent=75 // pred_region
          %562 = dma.done [#allocation15], 272
        $region104: #{tpu_custom_call.1} parent=75 // pred_fallthru
          _
        %s563 = sand.u32 %s58, 1
        %s564 = scalar_lea.sflag [#allocation6], %s563
        %s565 = sand.u32 %s58, 1
        %s566 = smul.addr %s565, 256
        %s567 = scalar_lea.vmem [#allocation5], %s566
        %p568 = pneg %p71
        %p569 = pneg %p68
        %s570 = sand.u32 %s36, 1
        %s571 = scalar_lea.sflag [#allocation9], %s570
        %s572 = sand.u32 %s84, 1
        %s573 = scalar_lea.vmem [#allocation8], %s572
        %p574 = pneg %p97
        %p575 = pneg %p94
        %p576 = pneg %p118
        %p577 = pneg %p115
        %p578 = pneg %p139
        %p579 = pneg %p136
        %p580 = pneg %p160
        %p581 = pneg %p157
        %p582 = pneg %p181
        %p583 = pneg %p178
        %p584 = pneg %p202
        %p585 = pneg %p199
        %p586 = pneg %p223
        %p587 = pneg %p220
        %p588 = pneg %p244
        %p589 = pneg %p241
        %p590 = pneg %p265
        %p591 = pneg %p262
        %p592 = pneg %p286
        %p593 = pneg %p283
        %p594 = pneg %p307
        %p595 = pneg %p304
        %p596 = pneg %p328
        %p597 = pneg %p325
        %p598 = pneg %p349
        %p599 = pneg %p346
        %p600 = pneg %p375
        %p601 = pneg %p372
        %s602 = sand.u32 %s362, 1
        %s603 = scalar_lea.sflag [#allocation7], %s602
        %s604 = sand.u32 %s362, 1
        %s605 = scalar_lea.vmem [#allocation17], %s604
        %s606 = smul.u32 8, %s41
        %p608 = scmp.eq.s32.totalorder %s41, 0
        // Predicated region
        $region105: #{tpu_custom_call.1} parent=75 // pred_check
          %p609 = pneg %p608
        $region106: #{tpu_custom_call.1} parent=75 // pred_check_branch
          %611 = sbr.rel (%p609) target = $region108
        $region107: #{tpu_custom_call.1} parent=75 // pred_region
          %vm612 = vcmask 0
          %613 = vst.msk [vmem:[#allocation2] sm:$0x1] %vm612, -inf
          %614 = vst.msk [vmem:[#allocation3] sm:$0x1] %vm612, 0.0
          %vm615 = vcmask 516096
          %616 = vst.msk [vmem:[#allocation4] sm:$0x1] %vm615, 0.0
        $region108: #{tpu_custom_call.1} parent=75 // pred_fallthru
          _
        %v617 = vld [vmem:[%s530] sm:$0xff]
        %v618 = vld [vmem:[%s530 + $0x8] sm:$0xff]
        %v619 = vld [vmem:[%s530 + $0x10] sm:$0xff]
        %v620 = vld [vmem:[%s530 + $0x18] sm:$0xff]
        %v621 = vld [vmem:[%s530 + $0x20] sm:$0xff]
        %v622 = vld [vmem:[%s530 + $0x28] sm:$0xff]
        %v623 = vld [vmem:[%s530 + $0x30] sm:$0xff]
        %v624 = vld [vmem:[%s530 + $0x38] sm:$0xff]
        %v625 = vld [vmem:[%s530 + $0x40] sm:$0xff]
        %v626 = vld [vmem:[%s530 + $0x48] sm:$0xff]
        %v627 = vld [vmem:[%s530 + $0x50] sm:$0xff]
        %v628 = vld [vmem:[%s530 + $0x58] sm:$0xff]
        %v629 = vld [vmem:[%s530 + $0x60] sm:$0xff]
        %v630 = vld [vmem:[%s530 + $0x68] sm:$0xff]
        %v631 = vld [vmem:[%s530 + $0x70] sm:$0xff]
        %v632 = vld [vmem:[%s530 + $0x78] sm:$0xff]
        %v633 = vld [vmem:[%s530 + $0x80] sm:$0xff]
        %v634 = vld [vmem:[%s530 + $0x88] sm:$0xff]
        %v635 = vld [vmem:[%s530 + $0x90] sm:$0xff]
        %v636 = vld [vmem:[%s530 + $0x98] sm:$0xff]
        %v637 = vld [vmem:[%s530 + $0xa0] sm:$0xff]
        %v638 = vld [vmem:[%s530 + $0xa8] sm:$0xff]
        %v639 = vld [vmem:[%s530 + $0xb0] sm:$0xff]
        %v640 = vld [vmem:[%s530 + $0xb8] sm:$0xff]
        %v641 = vld [vmem:[%s530 + $0xc0] sm:$0xff]
        %v642 = vld [vmem:[%s530 + $0xc8] sm:$0xff]
        %v643 = vld [vmem:[%s530 + $0xd0] sm:$0xff]
        %v644 = vld [vmem:[%s530 + $0xd8] sm:$0xff]
        %v645 = vld [vmem:[%s530 + $0xe0] sm:$0xff]
        %v646 = vld [vmem:[%s530 + $0xe8] sm:$0xff]
        %v647 = vld [vmem:[%s530 + $0xf0] sm:$0xff]
        %v648 = vld [vmem:[%s530 + $0xf8] sm:$0xff]
        %v649 = vpack.c.bf16 %v621, %v617
        %v650 = vpack.c.bf16 %v622, %v618
        %v651 = vpack.c.bf16 %v623, %v619
        %v652 = vpack.c.bf16 %v624, %v620
        %v653 = vpack.c.bf16 %v629, %v625
        %v654 = vpack.c.bf16 %v630, %v626
        %v655 = vpack.c.bf16 %v631, %v627
        %v656 = vpack.c.bf16 %v632, %v628
        %v657 = vpack.c.bf16 %v637, %v633
        %v658 = vpack.c.bf16 %v638, %v634
        %v659 = vpack.c.bf16 %v639, %v635
        %v660 = vpack.c.bf16 %v640, %v636
        %v661 = vpack.c.bf16 %v645, %v641
        %v662 = vpack.c.bf16 %v646, %v642
        %v663 = vpack.c.bf16 %v647, %v643
        %v664 = vpack.c.bf16 %v648, %v644
        %v665 = vld [vmem:[#allocation10] sm:$0xff]
        %v666 = vld [vmem:[#allocation10 + $0x8] sm:$0xf]
        %v667 = vld [vmem:[#allocation10 + $0xc] sm:$0xff]
        %v668 = vld [vmem:[#allocation10 + $0x14] sm:$0xf]
        %v669 = vld [vmem:[#allocation10 + $0x18] sm:$0xff]
        %v670 = vld [vmem:[#allocation10 + $0x20] sm:$0xf]
        %v671 = vld [vmem:[#allocation10 + $0x24] sm:$0xff]
        %v672 = vld [vmem:[#allocation10 + $0x2c] sm:$0xf]
        %v673 = vld [vmem:[#allocation10 + $0x30] sm:$0xff]
        %v674 = vld [vmem:[#allocation10 + $0x38] sm:$0xf]
        %v675 = vld [vmem:[#allocation10 + $0x3c] sm:$0xff]
        %v676 = vld [vmem:[#allocation10 + $0x44] sm:$0xf]
        %v677 = vld [vmem:[#allocation10 + $0x48] sm:$0xff]
        %v678 = vld [vmem:[#allocation10 + $0x50] sm:$0xf]
        %v679 = vld [vmem:[#allocation10 + $0x54] sm:$0xff]
        %v680 = vld [vmem:[#allocation10 + $0x5c] sm:$0xf]
        %v681 = vld [vmem:[#allocation10 + $0x60] sm:$0xff]
        %v682 = vld [vmem:[#allocation10 + $0x68] sm:$0xf]
        %v683 = vld [vmem:[#allocation10 + $0x6c] sm:$0xff]
        %v684 = vld [vmem:[#allocation10 + $0x74] sm:$0xf]
        %v685 = vld [vmem:[#allocation10 + $0x78] sm:$0xff]
        %v686 = vld [vmem:[#allocation10 + $0x80] sm:$0xf]
        %v687 = vld [vmem:[#allocation10 + $0x84] sm:$0xff]
        %v688 = vld [vmem:[#allocation10 + $0x8c] sm:$0xf]
        %v689 = vld [vmem:[#allocation10 + $0x90] sm:$0xff]
        %v690 = vld [vmem:[#allocation10 + $0x98] sm:$0xf]
        %v691 = vld [vmem:[#allocation10 + $0x9c] sm:$0xff]
        %v692 = vld [vmem:[#allocation10 + $0xa4] sm:$0xf]
        %v693 = vld [vmem:[#allocation10 + $0xa8] sm:$0xff]
        %v694 = vld [vmem:[#allocation10 + $0xb0] sm:$0xf]
        %v695 = vld [vmem:[#allocation10 + $0xb4] sm:$0xff]
        %v696 = vld [vmem:[#allocation10 + $0xbc] sm:$0xf]
        %v697 = vld [vmem:[#allocation10 + $0xc0] sm:$0xff]
        %v698 = vld [vmem:[#allocation10 + $0xc8] sm:$0xf]
        %v699 = vld [vmem:[#allocation10 + $0xcc] sm:$0xff]
        %v700 = vld [vmem:[#allocation10 + $0xd4] sm:$0xf]
        %v701 = vld [vmem:[#allocation10 + $0xd8] sm:$0xff]
        %v702 = vld [vmem:[#allocation10 + $0xe0] sm:$0xf]
        %v703 = vld [vmem:[#allocation10 + $0xe4] sm:$0xff]
        %v704 = vld [vmem:[#allocation10 + $0xec] sm:$0xf]
        %v705 = vld [vmem:[#allocation10 + $0xf0] sm:$0xff]
        %v706 = vld [vmem:[#allocation10 + $0xf8] sm:$0xf]
        %v707 = vld [vmem:[#allocation10 + $0xfc] sm:$0xff]
        %v708 = vld [vmem:[#allocation10 + $0x104] sm:$0xf]
        %v709 = vld [vmem:[#allocation10 + $0x108] sm:$0xff]
        %v710 = vld [vmem:[#allocation10 + $0x110] sm:$0xf]
        %v711 = vld [vmem:[#allocation10 + $0x114] sm:$0xff]
        %v712 = vld [vmem:[#allocation10 + $0x11c] sm:$0xf]
        %v713 = vld [vmem:[#allocation10 + $0x120] sm:$0xff]
        %v714 = vld [vmem:[#allocation10 + $0x128] sm:$0xf]
        %v715 = vld [vmem:[#allocation10 + $0x12c] sm:$0xff]
        %v716 = vld [vmem:[#allocation10 + $0x134] sm:$0xf]
        %v717 = vld [vmem:[#allocation10 + $0x138] sm:$0xff]
        %v718 = vld [vmem:[#allocation10 + $0x140] sm:$0xf]
        %v719 = vld [vmem:[#allocation10 + $0x144] sm:$0xff]
        %v720 = vld [vmem:[#allocation10 + $0x14c] sm:$0xf]
        %v721 = vld [vmem:[#allocation10 + $0x150] sm:$0xff]
        %v722 = vld [vmem:[#allocation10 + $0x158] sm:$0xf]
        %v723 = vld [vmem:[#allocation10 + $0x15c] sm:$0xff]
        %v724 = vld [vmem:[#allocation10 + $0x164] sm:$0xf]
        %v725 = vld [vmem:[#allocation10 + $0x168] sm:$0xff]
        %v726 = vld [vmem:[#allocation10 + $0x170] sm:$0xf]
        %v727 = vld [vmem:[#allocation10 + $0x174] sm:$0xff]
        %v728 = vld [vmem:[#allocation10 + $0x17c] sm:$0xf]
        %v729 = vld [vmem:[#allocation10 + $0x180] sm:$0xff]
        %v730 = vld [vmem:[#allocation10 + $0x188] sm:$0xf]
        %v731 = vld [vmem:[#allocation10 + $0x18c] sm:$0xff]
        %v732 = vld [vmem:[#allocation10 + $0x194] sm:$0xf]
        %v733 = vld [vmem:[#allocation10 + $0x198] sm:$0xff]
        %v734 = vld [vmem:[#allocation10 + $0x1a0] sm:$0xf]
        %v735 = vld [vmem:[#allocation10 + $0x1a4] sm:$0xff]
        %v736 = vld [vmem:[#allocation10 + $0x1ac] sm:$0xf]
        %v737 = vld [vmem:[#allocation10 + $0x1b0] sm:$0xff]
        %v738 = vld [vmem:[#allocation10 + $0x1b8] sm:$0xf]
        %v739 = vld [vmem:[#allocation10 + $0x1bc] sm:$0xff]
        %v740 = vld [vmem:[#allocation10 + $0x1c4] sm:$0xf]
        %v741 = vld [vmem:[#allocation10 + $0x1c8] sm:$0xff]
        %v742 = vld [vmem:[#allocation10 + $0x1d0] sm:$0xf]
        %v743 = vld [vmem:[#allocation10 + $0x1d4] sm:$0xff]
        %v744 = vld [vmem:[#allocation10 + $0x1dc] sm:$0xf]
        %v745 = vld [vmem:[#allocation10 + $0x1e0] sm:$0xff]
        %v746 = vld [vmem:[#allocation10 + $0x1e8] sm:$0xf]
        %v747 = vld [vmem:[#allocation10 + $0x1ec] sm:$0xff]
        %v748 = vld [vmem:[#allocation10 + $0x1f4] sm:$0xf]
        %v749 = vld [vmem:[#allocation10 + $0x1f8] sm:$0xff]
        %v750 = vld [vmem:[#allocation10 + $0x200] sm:$0xf]
        %v751 = vld [vmem:[#allocation10 + $0x204] sm:$0xff]
        %v752 = vld [vmem:[#allocation10 + $0x20c] sm:$0xf]
        %v753 = vld [vmem:[#allocation10 + $0x210] sm:$0xff]
        %v754 = vld [vmem:[#allocation10 + $0x218] sm:$0xf]
        %v755 = vld [vmem:[#allocation10 + $0x21c] sm:$0xff]
        %v756 = vld [vmem:[#allocation10 + $0x224] sm:$0xf]
        %v757 = vld [vmem:[#allocation10 + $0x228] sm:$0xff]
        %v758 = vld [vmem:[#allocation10 + $0x230] sm:$0xf]
        %v759 = vld [vmem:[#allocation10 + $0x234] sm:$0xff]
        %v760 = vld [vmem:[#allocation10 + $0x23c] sm:$0xf]
        %v761 = vld [vmem:[#allocation10 + $0x240] sm:$0xff]
        %v762 = vld [vmem:[#allocation10 + $0x248] sm:$0xf]
        %v763 = vld [vmem:[#allocation10 + $0x24c] sm:$0xff]
        %v764 = vld [vmem:[#allocation10 + $0x254] sm:$0xf]
        %v765 = vld [vmem:[#allocation10 + $0x258] sm:$0xff]
        %v766 = vld [vmem:[#allocation10 + $0x260] sm:$0xf]
        %v767 = vld [vmem:[#allocation10 + $0x264] sm:$0xff]
        %v768 = vld [vmem:[#allocation10 + $0x26c] sm:$0xf]
        %v769 = vld [vmem:[#allocation10 + $0x270] sm:$0xff]
        %v770 = vld [vmem:[#allocation10 + $0x278] sm:$0xf]
        %v771 = vld [vmem:[#allocation10 + $0x27c] sm:$0xff]
        %v772 = vld [vmem:[#allocation10 + $0x284] sm:$0xf]
        %v773 = vld [vmem:[#allocation10 + $0x288] sm:$0xff]
        %v774 = vld [vmem:[#allocation10 + $0x290] sm:$0xf]
        %v775 = vld [vmem:[#allocation10 + $0x294] sm:$0xff]
        %v776 = vld [vmem:[#allocation10 + $0x29c] sm:$0xf]
        %v777 = vld [vmem:[#allocation10 + $0x2a0] sm:$0xff]
        %v778 = vld [vmem:[#allocation10 + $0x2a8] sm:$0xf]
        %v779 = vld [vmem:[#allocation10 + $0x2ac] sm:$0xff]
        %v780 = vld [vmem:[#allocation10 + $0x2b4] sm:$0xf]
        %v781 = vld [vmem:[#allocation10 + $0x2b8] sm:$0xff]
        %v782 = vld [vmem:[#allocation10 + $0x2c0] sm:$0xf]
        %v783 = vld [vmem:[#allocation10 + $0x2c4] sm:$0xff]
        %v784 = vld [vmem:[#allocation10 + $0x2cc] sm:$0xf]
        %v785 = vld [vmem:[#allocation10 + $0x2d0] sm:$0xff]
        %v786 = vld [vmem:[#allocation10 + $0x2d8] sm:$0xf]
        %v787 = vld [vmem:[#allocation10 + $0x2dc] sm:$0xff]
        %v788 = vld [vmem:[#allocation10 + $0x2e4] sm:$0xf]
        %v789 = vld [vmem:[#allocation10 + $0x2e8] sm:$0xff]
        %v790 = vld [vmem:[#allocation10 + $0x2f0] sm:$0xf]
        %v791 = vld [vmem:[#allocation10 + $0x2f4] sm:$0xff]
        %v792 = vld [vmem:[#allocation10 + $0x2fc] sm:$0xf]
        %v793 = vld [vmem:[#allocation16] sm:$0x7]
        %v795 = vlaneseq
        %v796 = vshrl.u32 %v795, 7
        %v797 = vsub.s32 0, %v796
        %v798 = vrot.slane %v793, %v797
        %v799 = vlaneseq
        %v800 = vshrl.u32 %v799, 7
        %v801 = vsub.s32 1, %v800
        %v802 = vrot.slane %v793, %v801
        %v803 = vlaneseq
        %v804 = vshrl.u32 %v803, 7
        %v805 = vsub.s32 2, %v804
        %v806 = vrot.slane %v793, %v805
        %v938 = vunpack.c.l.b16 %v665
        %v939 = vunpack.c.h.b16 %v665
        %v940 = vunpack.c.l.b16 %v666
        %v941 = vunpack.c.l.b16 %v667
        %v942 = vunpack.c.h.b16 %v667
        %v943 = vunpack.c.l.b16 %v668
        %v944 = vunpack.c.l.b16 %v669
        %v945 = vunpack.c.h.b16 %v669
        %v946 = vunpack.c.l.b16 %v670
        %v947 = vunpack.c.l.b16 %v671
        %v948 = vunpack.c.h.b16 %v671
        %v949 = vunpack.c.l.b16 %v672
        %v950 = vunpack.c.l.b16 %v673
        %v951 = vunpack.c.h.b16 %v673
        %v952 = vunpack.c.l.b16 %v674
        %v953 = vunpack.c.l.b16 %v675
        %v954 = vunpack.c.h.b16 %v675
        %v955 = vunpack.c.l.b16 %v676
        %v956 = vunpack.c.l.b16 %v677
        %v957 = vunpack.c.h.b16 %v677
        %v958 = vunpack.c.l.b16 %v678
        %v959 = vunpack.c.l.b16 %v679
        %v960 = vunpack.c.h.b16 %v679
        %v961 = vunpack.c.l.b16 %v680
        %v962 = vunpack.c.l.b16 %v681
        %v963 = vunpack.c.h.b16 %v681
        %v964 = vunpack.c.l.b16 %v682
        %v965 = vunpack.c.l.b16 %v683
        %v966 = vunpack.c.h.b16 %v683
        %v967 = vunpack.c.l.b16 %v684
        %v968 = vunpack.c.l.b16 %v685
        %v969 = vunpack.c.h.b16 %v685
        %v970 = vunpack.c.l.b16 %v686
        %v971 = vunpack.c.l.b16 %v687
        %v972 = vunpack.c.h.b16 %v687
        %v973 = vunpack.c.l.b16 %v688
        %v974 = vunpack.c.l.b16 %v689
        %v975 = vunpack.c.h.b16 %v689
        %v976 = vunpack.c.l.b16 %v690
        %v977 = vunpack.c.l.b16 %v691
        %v978 = vunpack.c.h.b16 %v691
        %v979 = vunpack.c.l.b16 %v692
        %v980 = vunpack.c.l.b16 %v693
        %v981 = vunpack.c.h.b16 %v693
        %v982 = vunpack.c.l.b16 %v694
        %v983 = vunpack.c.l.b16 %v695
        %v984 = vunpack.c.h.b16 %v695
        %v985 = vunpack.c.l.b16 %v696
        %v986 = vunpack.c.l.b16 %v697
        %v987 = vunpack.c.h.b16 %v697
        %v988 = vunpack.c.l.b16 %v698
        %v989 = vunpack.c.l.b16 %v699
        %v990 = vunpack.c.h.b16 %v699
        %v991 = vunpack.c.l.b16 %v700
        %v992 = vunpack.c.l.b16 %v701
        %v993 = vunpack.c.h.b16 %v701
        %v994 = vunpack.c.l.b16 %v702
        %v995 = vunpack.c.l.b16 %v703
        %v996 = vunpack.c.h.b16 %v703
        %v997 = vunpack.c.l.b16 %v704
        %v998 = vunpack.c.l.b16 %v705
        %v999 = vunpack.c.h.b16 %v705
        %v1000 = vunpack.c.l.b16 %v706
        %v1001 = vunpack.c.l.b16 %v707
        %v1002 = vunpack.c.h.b16 %v707
        %v1003 = vunpack.c.l.b16 %v708
        %v1004 = vunpack.c.l.b16 %v709
        %v1005 = vunpack.c.h.b16 %v709
        %v1006 = vunpack.c.l.b16 %v710
        %v1007 = vunpack.c.l.b16 %v711
        %v1008 = vunpack.c.h.b16 %v711
        %v1009 = vunpack.c.l.b16 %v712
        %v1010 = vunpack.c.l.b16 %v713
        %v1011 = vunpack.c.h.b16 %v713
        %v1012 = vunpack.c.l.b16 %v714
        %v1013 = vunpack.c.l.b16 %v715
        %v1014 = vunpack.c.h.b16 %v715
        %v1015 = vunpack.c.l.b16 %v716
        %v1016 = vunpack.c.l.b16 %v717
        %v1017 = vunpack.c.h.b16 %v717
        %v1018 = vunpack.c.l.b16 %v718
        %v1019 = vunpack.c.l.b16 %v719
        %v1020 = vunpack.c.h.b16 %v719
        %v1021 = vunpack.c.l.b16 %v720
        %v1022 = vunpack.c.l.b16 %v721
        %v1023 = vunpack.c.h.b16 %v721
        %v1024 = vunpack.c.l.b16 %v722
        %v1025 = vunpack.c.l.b16 %v723
        %v1026 = vunpack.c.h.b16 %v723
        %v1027 = vunpack.c.l.b16 %v724
        %v1028 = vunpack.c.l.b16 %v725
        %v1029 = vunpack.c.h.b16 %v725
        %v1030 = vunpack.c.l.b16 %v726
        %v1031 = vunpack.c.l.b16 %v727
        %v1032 = vunpack.c.h.b16 %v727
        %v1033 = vunpack.c.l.b16 %v728
        %v1034 = vunpack.c.l.b16 %v729
        %v1035 = vunpack.c.h.b16 %v729
        %v1036 = vunpack.c.l.b16 %v730
        %v1037 = vunpack.c.l.b16 %v731
        %v1038 = vunpack.c.h.b16 %v731
        %v1039 = vunpack.c.l.b16 %v732
        %v1040 = vunpack.c.l.b16 %v733
        %v1041 = vunpack.c.h.b16 %v733
        %v1042 = vunpack.c.l.b16 %v734
        %v1043 = vunpack.c.l.b16 %v735
        %v1044 = vunpack.c.h.b16 %v735
        %v1045 = vunpack.c.l.b16 %v736
        %v1046 = vunpack.c.l.b16 %v737
        %v1047 = vunpack.c.h.b16 %v737
        %v1048 = vunpack.c.l.b16 %v738
        %v1049 = vunpack.c.l.b16 %v739
        %v1050 = vunpack.c.h.b16 %v739
        %v1051 = vunpack.c.l.b16 %v740
        %v1052 = vunpack.c.l.b16 %v741
        %v1053 = vunpack.c.h.b16 %v741
        %v1054 = vunpack.c.l.b16 %v742
        %v1055 = vunpack.c.l.b16 %v743
        %v1056 = vunpack.c.h.b16 %v743
        %v1057 = vunpack.c.l.b16 %v744
        %v1058 = vunpack.c.l.b16 %v745
        %v1059 = vunpack.c.h.b16 %v745
        %v1060 = vunpack.c.l.b16 %v746
        %v1061 = vunpack.c.l.b16 %v747
        %v1062 = vunpack.c.h.b16 %v747
        %v1063 = vunpack.c.l.b16 %v748
        %v1064 = vunpack.c.l.b16 %v749
        %v1065 = vunpack.c.h.b16 %v749
        %v1066 = vunpack.c.l.b16 %v750
        %v1067 = vunpack.c.l.b16 %v751
        %v1068 = vunpack.c.h.b16 %v751
        %v1069 = vunpack.c.l.b16 %v752
        %v1070 = vunpack.c.l.b16 %v753
        %v1071 = vunpack.c.h.b16 %v753
        %v1072 = vunpack.c.l.b16 %v754
        %v1073 = vunpack.c.l.b16 %v755
        %v1074 = vunpack.c.h.b16 %v755
        %v1075 = vunpack.c.l.b16 %v756
        %v1076 = vunpack.c.l.b16 %v757
        %v1077 = vunpack.c.h.b16 %v757
        %v1078 = vunpack.c.l.b16 %v758
        %v1079 = vunpack.c.l.b16 %v759
        %v1080 = vunpack.c.h.b16 %v759
        %v1081 = vunpack.c.l.b16 %v760
        %v1082 = vunpack.c.l.b16 %v761
        %v1083 = vunpack.c.h.b16 %v761
        %v1084 = vunpack.c.l.b16 %v762
        %v1085 = vunpack.c.l.b16 %v763
        %v1086 = vunpack.c.h.b16 %v763
        %v1087 = vunpack.c.l.b16 %v764
        %v1088 = vunpack.c.l.b16 %v765
        %v1089 = vunpack.c.h.b16 %v765
        %v1090 = vunpack.c.l.b16 %v766
        %v1091 = vunpack.c.l.b16 %v767
        %v1092 = vunpack.c.h.b16 %v767
        %v1093 = vunpack.c.l.b16 %v768
        %v1094 = vunpack.c.l.b16 %v769
        %v1095 = vunpack.c.h.b16 %v769
        %v1096 = vunpack.c.l.b16 %v770
        %v1097 = vunpack.c.l.b16 %v771
        %v1098 = vunpack.c.h.b16 %v771
        %v1099 = vunpack.c.l.b16 %v772
        %v1100 = vunpack.c.l.b16 %v773
        %v1101 = vunpack.c.h.b16 %v773
        %v1102 = vunpack.c.l.b16 %v774
        %v1103 = vunpack.c.l.b16 %v775
        %v1104 = vunpack.c.h.b16 %v775
        %v1105 = vunpack.c.l.b16 %v776
        %v1106 = vunpack.c.l.b16 %v777
        %v1107 = vunpack.c.h.b16 %v777
        %v1108 = vunpack.c.l.b16 %v778
        %v1109 = vunpack.c.l.b16 %v779
        %v1110 = vunpack.c.h.b16 %v779
        %v1111 = vunpack.c.l.b16 %v780
        %v1112 = vunpack.c.l.b16 %v781
        %v1113 = vunpack.c.h.b16 %v781
        %v1114 = vunpack.c.l.b16 %v782
        %v1115 = vunpack.c.l.b16 %v783
        %v1116 = vunpack.c.h.b16 %v783
        %v1117 = vunpack.c.l.b16 %v784
        %v1118 = vunpack.c.l.b16 %v785
        %v1119 = vunpack.c.h.b16 %v785
        %v1120 = vunpack.c.l.b16 %v786
        %v1121 = vunpack.c.l.b16 %v787
        %v1122 = vunpack.c.h.b16 %v787
        %v1123 = vunpack.c.l.b16 %v788
        %v1124 = vunpack.c.l.b16 %v789
        %v1125 = vunpack.c.h.b16 %v789
        %v1126 = vunpack.c.l.b16 %v790
        %v1127 = vunpack.c.l.b16 %v791
        %v1128 = vunpack.c.h.b16 %v791
        %v1129 = vunpack.c.l.b16 %v792
        %v1130 = vpack.c.b16 %v941, %v938
        %v1131 = vpack.c.b16 %v942, %v939
        %v1132 = vpack.c.b16 %v943, %v940
        %v1133 = vpack.c.b16 %v947, %v944
        %v1134 = vpack.c.b16 %v948, %v945
        %v1135 = vpack.c.b16 %v949, %v946
        %v1136 = vpack.c.b16 %v953, %v950
        %v1137 = vpack.c.b16 %v954, %v951
        %v1138 = vpack.c.b16 %v955, %v952
        %v1139 = vpack.c.b16 %v959, %v956
        %v1140 = vpack.c.b16 %v960, %v957
        %v1141 = vpack.c.b16 %v961, %v958
        %v1142 = vpack.c.b16 %v965, %v962
        %v1143 = vpack.c.b16 %v966, %v963
        %v1144 = vpack.c.b16 %v967, %v964
        %v1145 = vpack.c.b16 %v971, %v968
        %v1146 = vpack.c.b16 %v972, %v969
        %v1147 = vpack.c.b16 %v973, %v970
        %v1148 = vpack.c.b16 %v977, %v974
        %v1149 = vpack.c.b16 %v978, %v975
        %v1150 = vpack.c.b16 %v979, %v976
        %v1151 = vpack.c.b16 %v983, %v980
        %v1152 = vpack.c.b16 %v984, %v981
        %v1153 = vpack.c.b16 %v985, %v982
        %v1154 = vpack.c.b16 %v989, %v986
        %v1155 = vpack.c.b16 %v990, %v987
        %v1156 = vpack.c.b16 %v991, %v988
        %v1157 = vpack.c.b16 %v995, %v992
        %v1158 = vpack.c.b16 %v996, %v993
        %v1159 = vpack.c.b16 %v997, %v994
        %v1160 = vpack.c.b16 %v1001, %v998
        %v1161 = vpack.c.b16 %v1002, %v999
        %v1162 = vpack.c.b16 %v1003, %v1000
        %v1163 = vpack.c.b16 %v1007, %v1004
        %v1164 = vpack.c.b16 %v1008, %v1005
        %v1165 = vpack.c.b16 %v1009, %v1006
        %v1166 = vpack.c.b16 %v1013, %v1010
        %v1167 = vpack.c.b16 %v1014, %v1011
        %v1168 = vpack.c.b16 %v1015, %v1012
        %v1169 = vpack.c.b16 %v1019, %v1016
        %v1170 = vpack.c.b16 %v1020, %v1017
        %v1171 = vpack.c.b16 %v1021, %v1018
        %v1172 = vpack.c.b16 %v1025, %v1022
        %v1173 = vpack.c.b16 %v1026, %v1023
        %v1174 = vpack.c.b16 %v1027, %v1024
        %v1175 = vpack.c.b16 %v1031, %v1028
        %v1176 = vpack.c.b16 %v1032, %v1029
        %v1177 = vpack.c.b16 %v1033, %v1030
        %v1178 = vpack.c.b16 %v1037, %v1034
        %v1179 = vpack.c.b16 %v1038, %v1035
        %v1180 = vpack.c.b16 %v1039, %v1036
        %v1181 = vpack.c.b16 %v1043, %v1040
        %v1182 = vpack.c.b16 %v1044, %v1041
        %v1183 = vpack.c.b16 %v1045, %v1042
        %v1184 = vpack.c.b16 %v1049, %v1046
        %v1185 = vpack.c.b16 %v1050, %v1047
        %v1186 = vpack.c.b16 %v1051, %v1048
        %v1187 = vpack.c.b16 %v1055, %v1052
        %v1188 = vpack.c.b16 %v1056, %v1053
        %v1189 = vpack.c.b16 %v1057, %v1054
        %v1190 = vpack.c.b16 %v1061, %v1058
        %v1191 = vpack.c.b16 %v1062, %v1059
        %v1192 = vpack.c.b16 %v1063, %v1060
        %v1193 = vpack.c.b16 %v1067, %v1064
        %v1194 = vpack.c.b16 %v1068, %v1065
        %v1195 = vpack.c.b16 %v1069, %v1066
        %v1196 = vpack.c.b16 %v1073, %v1070
        %v1197 = vpack.c.b16 %v1074, %v1071
        %v1198 = vpack.c.b16 %v1075, %v1072
        %v1199 = vpack.c.b16 %v1079, %v1076
        %v1200 = vpack.c.b16 %v1080, %v1077
        %v1201 = vpack.c.b16 %v1081, %v1078
        %v1202 = vpack.c.b16 %v1085, %v1082
        %v1203 = vpack.c.b16 %v1086, %v1083
        %v1204 = vpack.c.b16 %v1087, %v1084
        %v1205 = vpack.c.b16 %v1091, %v1088
        %v1206 = vpack.c.b16 %v1092, %v1089
        %v1207 = vpack.c.b16 %v1093, %v1090
        %v1208 = vpack.c.b16 %v1097, %v1094
        %v1209 = vpack.c.b16 %v1098, %v1095
        %v1210 = vpack.c.b16 %v1099, %v1096
        %v1211 = vpack.c.b16 %v1103, %v1100
        %v1212 = vpack.c.b16 %v1104, %v1101
        %v1213 = vpack.c.b16 %v1105, %v1102
        %v1214 = vpack.c.b16 %v1109, %v1106
        %v1215 = vpack.c.b16 %v1110, %v1107
        %v1216 = vpack.c.b16 %v1111, %v1108
        %v1217 = vpack.c.b16 %v1115, %v1112
        %v1218 = vpack.c.b16 %v1116, %v1113
        %v1219 = vpack.c.b16 %v1117, %v1114
        %v1220 = vpack.c.b16 %v1121, %v1118
        %v1221 = vpack.c.b16 %v1122, %v1119
        %v1222 = vpack.c.b16 %v1123, %v1120
        %v1223 = vpack.c.b16 %v1127, %v1124
        %v1224 = vpack.c.b16 %v1128, %v1125
        %v1225 = vpack.c.b16 %v1129, %v1126
        %1322 = vmatprep.subr.bf16.mxu0 %v1152
        %1323 = vmatpush1.bf16.msra.mxu0 %v1151
        %1324 = vmatprep.subr.bf16.mxu0 %v1149
        %1325 = vmatpush1.bf16.msra.mxu0 %v1148
        %1326 = vmatprep.subr.bf16.mxu0 %v1146
        %1327 = vmatpush1.bf16.msra.mxu0 %v1145
        %1328 = vmatprep.subr.bf16.mxu0 %v1143
        %1329 = vmatpush1.bf16.msra.mxu0 %v1142
        %1330 = vmatprep.subr.bf16.mxu0 %v1140
        %1331 = vmatpush1.bf16.msra.mxu0 %v1139
        %1332 = vmatprep.subr.bf16.mxu0 %v1137
        %1333 = vmatpush1.bf16.msra.mxu0 %v1136
        %1334 = vmatprep.subr.bf16.mxu0 %v1134
        %1335 = vmatpush1.bf16.msra.mxu0 %v1133
        %1336 = vmatprep.subr.bf16.mxu0 %v1131
        %1337 = vmatpush1.bf16.msra.mxu0 %v1130
        %1338 = vmatprep.subr.bf16.mxu0 %v1176
        %1339 = vmatpush2.bf16.msra.mxu0 %v1175
        %1340 = vmatprep.subr.bf16.mxu0 %v1173
        %1341 = vmatpush2.bf16.msra.mxu0 %v1172
        %1342 = vmatprep.subr.bf16.mxu0 %v1170
        %1343 = vmatpush2.bf16.msra.mxu0 %v1169
        %1344 = vmatprep.subr.bf16.mxu0 %v1167
        %1345 = vmatpush2.bf16.msra.mxu0 %v1166
        %1346 = vmatprep.subr.bf16.mxu0 %v1164
        %1347 = vmatpush2.bf16.msra.mxu0 %v1163
        %1348 = vmatprep.subr.bf16.mxu0 %v1161
        %1349 = vmatpush2.bf16.msra.mxu0 %v1160
        %1350 = vmatprep.subr.bf16.mxu0 %v1158
        %1351 = vmatpush2.bf16.msra.mxu0 %v1157
        %1352 = vmatprep.subr.bf16.mxu0 %v1155
        %1353 = vmatpush2.bf16.msra.mxu0 %v1154
        %1354 = vmatprep.mubr.bf16.mxu0 %v650
        %1355 = vmatmul.mubr.bf16.gmra.mxu0 %v649
        %v1356 = vpop.f32.mrf.mxu0
        %v1357 = vadd.f32 %v798, %v1356
        %v1358 = vpop.f32.mrf.mxu0
        %v1359 = vadd.f32 %v802, %v1358
        %v1360 = vpop.f32.mrf.mxu0
        %v1361 = vadd.f32 %v798, %v1360
        %v1362 = vpop.f32.mrf.mxu0
        %v1363 = vadd.f32 %v802, %v1362
        %1364 = vmatprep.mubr.bf16.mxu0 %v654
        %1365 = vmatmul.mubr.bf16.gmra.mxu0 %v653
        %v1366 = vpop.f32.mrf.mxu0
        %v1367 = vadd.f32 %v798, %v1366
        %v1368 = vpop.f32.mrf.mxu0
        %v1369 = vadd.f32 %v802, %v1368
        %v1370 = vpop.f32.mrf.mxu0
        %v1371 = vadd.f32 %v798, %v1370
        %v1372 = vpop.f32.mrf.mxu0
        %v1373 = vadd.f32 %v802, %v1372
        %1374 = vmatprep.mubr.bf16.mxu0 %v658
        %1375 = vmatmul.mubr.bf16.gmra.mxu0 %v657
        %v1376 = vpop.f32.mrf.mxu0
        %v1377 = vadd.f32 %v798, %v1376
        %v1378 = vpop.f32.mrf.mxu0
        %v1379 = vadd.f32 %v802, %v1378
        %v1380 = vpop.f32.mrf.mxu0
        %v1381 = vadd.f32 %v798, %v1380
        %v1382 = vpop.f32.mrf.mxu0
        %v1383 = vadd.f32 %v802, %v1382
        %1384 = vmatprep.mubr.bf16.mxu0 %v662
        %1385 = vmatmul.mubr.bf16.gmra.mxu0 %v661
        %v1386 = vpop.f32.mrf.mxu0
        %v1387 = vadd.f32 %v798, %v1386
        %v1388 = vpop.f32.mrf.mxu0
        %v1389 = vadd.f32 %v802, %v1388
        %v1390 = vpop.f32.mrf.mxu0
        %v1391 = vadd.f32 %v798, %v1390
        %v1392 = vpop.f32.mrf.mxu0
        %v1393 = vadd.f32 %v802, %v1392
        %1394 = vdwg.mxu0
        %1395 = vmatprep.subr.bf16.mxu0 %v1200
        %1396 = vmatpush1.bf16.msra.mxu0 %v1199
        %1397 = vmatprep.subr.bf16.mxu0 %v1197
        %1398 = vmatpush1.bf16.msra.mxu0 %v1196
        %1399 = vmatprep.subr.bf16.mxu0 %v1194
        %1400 = vmatpush1.bf16.msra.mxu0 %v1193
        %1401 = vmatprep.subr.bf16.mxu0 %v1191
        %1402 = vmatpush1.bf16.msra.mxu0 %v1190
        %1403 = vmatprep.subr.bf16.mxu0 %v1188
        %1404 = vmatpush1.bf16.msra.mxu0 %v1187
        %1405 = vmatprep.subr.bf16.mxu0 %v1185
        %1406 = vmatpush1.bf16.msra.mxu0 %v1184
        %1407 = vmatprep.subr.bf16.mxu0 %v1182
        %1408 = vmatpush1.bf16.msra.mxu0 %v1181
        %1409 = vmatprep.subr.bf16.mxu0 %v1179
        %1410 = vmatpush1.bf16.msra.mxu0 %v1178
        %1411 = vmatprep.subr.bf16.mxu0 %v1224
        %1412 = vmatpush2.bf16.msra.mxu0 %v1223
        %1413 = vmatprep.subr.bf16.mxu0 %v1221
        %1414 = vmatpush2.bf16.msra.mxu0 %v1220
        %1415 = vmatprep.subr.bf16.mxu0 %v1218
        %1416 = vmatpush2.bf16.msra.mxu0 %v1217
        %1417 = vmatprep.subr.bf16.mxu0 %v1215
        %1418 = vmatpush2.bf16.msra.mxu0 %v1214
        %1419 = vmatprep.subr.bf16.mxu0 %v1212
        %1420 = vmatpush2.bf16.msra.mxu0 %v1211
        %1421 = vmatprep.subr.bf16.mxu0 %v1209
        %1422 = vmatpush2.bf16.msra.mxu0 %v1208
        %1423 = vmatprep.subr.bf16.mxu0 %v1206
        %1424 = vmatpush2.bf16.msra.mxu0 %v1205
        %1425 = vmatprep.subr.bf16.mxu0 %v1203
        %1426 = vmatpush2.bf16.msra.mxu0 %v1202
        %1427 = vmatprep.mubr.bf16.mxu0 %v652
        %1428 = vmatmul.mubr.bf16.gmra.mxu0 %v651
        %v1429 = vpop.f32.mrf.mxu0
        %v1430 = vadd.f32 %v1357, %v1429
        %v1431 = vpop.f32.mrf.mxu0
        %v1432 = vadd.f32 %v1359, %v1431
        %v1433 = vpop.f32.mrf.mxu0
        %v1434 = vadd.f32 %v1361, %v1433
        %v1435 = vpop.f32.mrf.mxu0
        %v1436 = vadd.f32 %v1363, %v1435
        %1437 = vmatprep.mubr.bf16.mxu0 %v656
        %1438 = vmatmul.mubr.bf16.gmra.mxu0 %v655
        %v1439 = vpop.f32.mrf.mxu0
        %v1440 = vadd.f32 %v1367, %v1439
        %v1441 = vpop.f32.mrf.mxu0
        %v1442 = vadd.f32 %v1369, %v1441
        %v1443 = vpop.f32.mrf.mxu0
        %v1444 = vadd.f32 %v1371, %v1443
        %v1445 = vpop.f32.mrf.mxu0
        %v1446 = vadd.f32 %v1373, %v1445
        %1447 = vmatprep.mubr.bf16.mxu0 %v660
        %1448 = vmatmul.mubr.bf16.gmra.mxu0 %v659
        %v1449 = vpop.f32.mrf.mxu0
        %v1450 = vadd.f32 %v1377, %v1449
        %v1451 = vpop.f32.mrf.mxu0
        %v1452 = vadd.f32 %v1379, %v1451
        %v1453 = vpop.f32.mrf.mxu0
        %v1454 = vadd.f32 %v1381, %v1453
        %v1455 = vpop.f32.mrf.mxu0
        %v1456 = vadd.f32 %v1383, %v1455
        %1457 = vmatprep.mubr.bf16.mxu0 %v664
        %1458 = vmatmul.mubr.bf16.gmra.mxu0 %v663
        %v1459 = vpop.f32.mrf.mxu0
        %v1460 = vadd.f32 %v1387, %v1459
        %v1461 = vpop.f32.mrf.mxu0
        %v1462 = vadd.f32 %v1389, %v1461
        %v1463 = vpop.f32.mrf.mxu0
        %v1464 = vadd.f32 %v1391, %v1463
        %v1465 = vpop.f32.mrf.mxu0
        %v1466 = vadd.f32 %v1393, %v1465
        %1467 = vdwg.mxu0
        %1468 = vmatprep.subr.bf16.mxu0 0
        %1469 = vmatpush1.bf16.msra.mxu0 %v1153
        %1470 = vmatprep.subr.bf16.mxu0 0
        %1471 = vmatpush1.bf16.msra.mxu0 %v1150
        %1472 = vmatprep.subr.bf16.mxu0 0
        %1473 = vmatpush1.bf16.msra.mxu0 %v1147
        %1474 = vmatprep.subr.bf16.mxu0 0
        %1475 = vmatpush1.bf16.msra.mxu0 %v1144
        %1476 = vmatprep.subr.bf16.mxu0 0
        %1477 = vmatpush1.bf16.msra.mxu0 %v1141
        %1478 = vmatprep.subr.bf16.mxu0 0
        %1479 = vmatpush1.bf16.msra.mxu0 %v1138
        %1480 = vmatprep.subr.bf16.mxu0 0
        %1481 = vmatpush1.bf16.msra.mxu0 %v1135
        %1482 = vmatprep.subr.bf16.mxu0 0
        %1483 = vmatpush1.bf16.msra.mxu0 %v1132
        %1484 = vmatprep.subr.bf16.mxu0 0
        %1485 = vmatpush2.bf16.msra.mxu0 %v1177
        %1486 = vmatprep.subr.bf16.mxu0 0
        %1487 = vmatpush2.bf16.msra.mxu0 %v1174
        %1488 = vmatprep.subr.bf16.mxu0 0
        %1489 = vmatpush2.bf16.msra.mxu0 %v1171
        %1490 = vmatprep.subr.bf16.mxu0 0
        %1491 = vmatpush2.bf16.msra.mxu0 %v1168
        %1492 = vmatprep.subr.bf16.mxu0 0
        %1493 = vmatpush2.bf16.msra.mxu0 %v1165
        %1494 = vmatprep.subr.bf16.mxu0 0
        %1495 = vmatpush2.bf16.msra.mxu0 %v1162
        %1496 = vmatprep.subr.bf16.mxu0 0
        %1497 = vmatpush2.bf16.msra.mxu0 %v1159
        %1498 = vmatprep.subr.bf16.mxu0 0
        %1499 = vmatpush2.bf16.msra.mxu0 %v1156
        %1500 = vmatprep.mubr.bf16.mxu0 %v650
        %1501 = vmatmul.mubr.bf16.gmra.mxu0 %v649
        %v1502 = vpop.f32.mrf.mxu0
        %v1503 = vadd.f32 %v806, %v1502
        %v1504 = vpop.f32.mrf.mxu0
        %v1505 = vpop.f32.mrf.mxu0
        %v1506 = vadd.f32 %v806, %v1505
        %v1507 = vpop.f32.mrf.mxu0
        %1508 = vmatprep.mubr.bf16.mxu0 %v654
        %1509 = vmatmul.mubr.bf16.gmra.mxu0 %v653
        %v1510 = vpop.f32.mrf.mxu0
        %v1511 = vadd.f32 %v806, %v1510
        %v1512 = vpop.f32.mrf.mxu0
        %v1513 = vpop.f32.mrf.mxu0
        %v1514 = vadd.f32 %v806, %v1513
        %v1515 = vpop.f32.mrf.mxu0
        %1516 = vmatprep.mubr.bf16.mxu0 %v658
        %1517 = vmatmul.mubr.bf16.gmra.mxu0 %v657
        %v1518 = vpop.f32.mrf.mxu0
        %v1519 = vadd.f32 %v806, %v1518
        %v1520 = vpop.f32.mrf.mxu0
        %v1521 = vpop.f32.mrf.mxu0
        %v1522 = vadd.f32 %v806, %v1521
        %v1523 = vpop.f32.mrf.mxu0
        %1524 = vmatprep.mubr.bf16.mxu0 %v662
        %1525 = vmatmul.mubr.bf16.gmra.mxu0 %v661
        %v1526 = vpop.f32.mrf.mxu0
        %v1527 = vadd.f32 %v806, %v1526
        %v1528 = vpop.f32.mrf.mxu0
        %v1529 = vpop.f32.mrf.mxu0
        %v1530 = vadd.f32 %v806, %v1529
        %v1531 = vpop.f32.mrf.mxu0
        %1532 = vdwg.mxu0
        %1533 = vmatprep.subr.bf16.mxu0 0
        %1534 = vmatpush1.bf16.msra.mxu0 %v1201
        %1535 = vmatprep.subr.bf16.mxu0 0
        %1536 = vmatpush1.bf16.msra.mxu0 %v1198
        %1537 = vmatprep.subr.bf16.mxu0 0
        %1538 = vmatpush1.bf16.msra.mxu0 %v1195
        %1539 = vmatprep.subr.bf16.mxu0 0
        %1540 = vmatpush1.bf16.msra.mxu0 %v1192
        %1541 = vmatprep.subr.bf16.mxu0 0
        %1542 = vmatpush1.bf16.msra.mxu0 %v1189
        %1543 = vmatprep.subr.bf16.mxu0 0
        %1544 = vmatpush1.bf16.msra.mxu0 %v1186
        %1545 = vmatprep.subr.bf16.mxu0 0
        %1546 = vmatpush1.bf16.msra.mxu0 %v1183
        %1547 = vmatprep.subr.bf16.mxu0 0
        %1548 = vmatpush1.bf16.msra.mxu0 %v1180
        %1549 = vmatprep.subr.bf16.mxu0 0
        %1550 = vmatpush2.bf16.msra.mxu0 %v1225
        %1551 = vmatprep.subr.bf16.mxu0 0
        %1552 = vmatpush2.bf16.msra.mxu0 %v1222
        %1553 = vmatprep.subr.bf16.mxu0 0
        %1554 = vmatpush2.bf16.msra.mxu0 %v1219
        %1555 = vmatprep.subr.bf16.mxu0 0
        %1556 = vmatpush2.bf16.msra.mxu0 %v1216
        %1557 = vmatprep.subr.bf16.mxu0 0
        %1558 = vmatpush2.bf16.msra.mxu0 %v1213
        %1559 = vmatprep.subr.bf16.mxu0 0
        %1560 = vmatpush2.bf16.msra.mxu0 %v1210
        %1561 = vmatprep.subr.bf16.mxu0 0
        %1562 = vmatpush2.bf16.msra.mxu0 %v1207
        %1563 = vmatprep.subr.bf16.mxu0 0
        %1564 = vmatpush2.bf16.msra.mxu0 %v1204
        %1565 = vmatprep.mubr.bf16.mxu0 %v652
        %1566 = vmatmul.mubr.bf16.gmra.mxu0 %v651
        %v1567 = vpop.f32.mrf.mxu0
        %v1568 = vadd.f32 %v1503, %v1567
        %v1569 = vpop.f32.mrf.mxu0
        %v1570 = vpop.f32.mrf.mxu0
        %v1571 = vadd.f32 %v1506, %v1570
        %v1572 = vpop.f32.mrf.mxu0
        %1573 = vmatprep.mubr.bf16.mxu0 %v656
        %1574 = vmatmul.mubr.bf16.gmra.mxu0 %v655
        %v1575 = vpop.f32.mrf.mxu0
        %v1576 = vadd.f32 %v1511, %v1575
        %v1577 = vpop.f32.mrf.mxu0
        %v1578 = vpop.f32.mrf.mxu0
        %v1579 = vadd.f32 %v1514, %v1578
        %v1580 = vpop.f32.mrf.mxu0
        %1581 = vmatprep.mubr.bf16.mxu0 %v660
        %1582 = vmatmul.mubr.bf16.gmra.mxu0 %v659
        %v1583 = vpop.f32.mrf.mxu0
        %v1584 = vadd.f32 %v1519, %v1583
        %v1585 = vpop.f32.mrf.mxu0
        %v1586 = vpop.f32.mrf.mxu0
        %v1587 = vadd.f32 %v1522, %v1586
        %v1588 = vpop.f32.mrf.mxu0
        %1589 = vmatprep.mubr.bf16.mxu0 %v664
        %1590 = vmatmul.mubr.bf16.gmra.mxu0 %v663
        %v1591 = vpop.f32.mrf.mxu0
        %v1592 = vadd.f32 %v1527, %v1591
        %v1593 = vpop.f32.mrf.mxu0
        %v1594 = vpop.f32.mrf.mxu0
        %v1595 = vadd.f32 %v1530, %v1594
        %v1596 = vpop.f32.mrf.mxu0
        %1597 = vdwg.mxu0
        %v1598 = vmax.f32 %v1430, 0.0
        %v1599 = vmax.f32 %v1432, 0.0
        %v1600 = vmax.f32 %v1568, 0.0
        %v1601 = vmax.f32 %v1434, 0.0
        %v1602 = vmax.f32 %v1436, 0.0
        %v1603 = vmax.f32 %v1571, 0.0
        %v1604 = vmax.f32 %v1440, 0.0
        %v1605 = vmax.f32 %v1442, 0.0
        %v1606 = vmax.f32 %v1576, 0.0
        %v1607 = vmax.f32 %v1444, 0.0
        %v1608 = vmax.f32 %v1446, 0.0
        %v1609 = vmax.f32 %v1579, 0.0
        %v1610 = vmax.f32 %v1450, 0.0
        %v1611 = vmax.f32 %v1452, 0.0
        %v1612 = vmax.f32 %v1584, 0.0
        %v1613 = vmax.f32 %v1454, 0.0
        %v1614 = vmax.f32 %v1456, 0.0
        %v1615 = vmax.f32 %v1587, 0.0
        %v1616 = vmax.f32 %v1460, 0.0
        %v1617 = vmax.f32 %v1462, 0.0
        %v1618 = vmax.f32 %v1592, 0.0
        %v1619 = vmax.f32 %v1464, 0.0
        %v1620 = vmax.f32 %v1466, 0.0
        %v1621 = vmax.f32 %v1595, 0.0
        %v1622 = vpack.c.bf16 %v1601, %v1598
        %v1623 = vpack.c.bf16 %v1602, %v1599
        %v1624 = vpack.c.bf16 %v1603, %v1600
        %v1625 = vpack.c.bf16 %v1607, %v1604
        %v1626 = vpack.c.bf16 %v1608, %v1605
        %v1627 = vpack.c.bf16 %v1609, %v1606
        %v1628 = vpack.c.bf16 %v1613, %v1610
        %v1629 = vpack.c.bf16 %v1614, %v1611
        %v1630 = vpack.c.bf16 %v1615, %v1612
        %v1631 = vpack.c.bf16 %v1619, %v1616
        %v1632 = vpack.c.bf16 %v1620, %v1617
        %v1633 = vpack.c.bf16 %v1621, %v1618
        %v1634 = vld [vmem:[%s3] sm:$0xff]
        %v1635 = vld [vmem:[%s3 + $0x8] sm:$0xff]
        %v1636 = vld [vmem:[%s3 + $0x10] sm:$0xff]
        %v1637 = vld [vmem:[%s3 + $0x18] sm:$0xff]
        %v1638 = vld [vmem:[%s3 + $0x20] sm:$0xff]
        %v1639 = vld [vmem:[%s3 + $0x28] sm:$0xff]
        %v1640 = vld [vmem:[%s3 + $0x30] sm:$0xff]
        %v1641 = vld [vmem:[%s3 + $0x38] sm:$0xff]
        %v1642 = vld [vmem:[%s3 + $0x40] sm:$0xff]
        %v1643 = vld [vmem:[%s3 + $0x48] sm:$0xff]
        %v1644 = vld [vmem:[%s3 + $0x50] sm:$0xff]
        %v1645 = vld [vmem:[%s3 + $0x58] sm:$0xff]
        %v1646 = vld [vmem:[%s3 + $0x60] sm:$0xff]
        %v1647 = vld [vmem:[%s3 + $0x68] sm:$0xff]
        %v1648 = vld [vmem:[%s3 + $0x70] sm:$0xff]
        %v1649 = vld [vmem:[%s3 + $0x78] sm:$0xff]
        %v1650 = vld [vmem:[%s3 + $0x80] sm:$0xff]
        %v1651 = vld [vmem:[%s3 + $0x88] sm:$0xff]
        %v1652 = vld [vmem:[%s3 + $0x90] sm:$0xff]
        %v1653 = vld [vmem:[%s3 + $0x98] sm:$0xff]
        %v1654 = vld [vmem:[%s3 + $0xa0] sm:$0xff]
        %v1655 = vld [vmem:[%s3 + $0xa8] sm:$0xff]
        %v1656 = vld [vmem:[%s3 + $0xb0] sm:$0xff]
        %v1657 = vld [vmem:[%s3 + $0xb8] sm:$0xff]
        %v1658 = vld [vmem:[%s3 + $0xc0] sm:$0xff]
        %v1659 = vld [vmem:[%s3 + $0xc8] sm:$0xff]
        %v1660 = vld [vmem:[%s3 + $0xd0] sm:$0xff]
        %v1661 = vld [vmem:[%s3 + $0xd8] sm:$0xff]
        %v1662 = vld [vmem:[%s3 + $0xe0] sm:$0xff]
        %v1663 = vld [vmem:[%s3 + $0xe8] sm:$0xff]
        %v1664 = vld [vmem:[%s3 + $0xf0] sm:$0xff]
        %v1665 = vld [vmem:[%s3 + $0xf8] sm:$0xff]
        %v1666 = vld [vmem:[%s3 + $0x100] sm:$0xff]
        %v1667 = vld [vmem:[%s3 + $0x108] sm:$0xff]
        %v1668 = vld [vmem:[%s3 + $0x110] sm:$0xff]
        %v1669 = vld [vmem:[%s3 + $0x118] sm:$0xff]
        %v1670 = vld [vmem:[%s3 + $0x120] sm:$0xff]
        %v1671 = vld [vmem:[%s3 + $0x128] sm:$0xff]
        %v1672 = vld [vmem:[%s3 + $0x130] sm:$0xff]
        %v1673 = vld [vmem:[%s3 + $0x138] sm:$0xff]
        %v1674 = vld [vmem:[%s3 + $0x140] sm:$0xff]
        %v1675 = vld [vmem:[%s3 + $0x148] sm:$0xff]
        %v1676 = vld [vmem:[%s3 + $0x150] sm:$0xff]
        %v1677 = vld [vmem:[%s3 + $0x158] sm:$0xff]
        %v1678 = vld [vmem:[%s3 + $0x160] sm:$0xff]
        %v1679 = vld [vmem:[%s3 + $0x168] sm:$0xff]
        %v1680 = vld [vmem:[%s3 + $0x170] sm:$0xff]
        %v1681 = vld [vmem:[%s3 + $0x178] sm:$0xff]
        %v1682 = vld [vmem:[#allocation16 + $0x3] sm:$0x3]
        %v1684 = vlaneseq
        %v1685 = vshrl.u32 %v1684, 7
        %v1686 = vsub.s32 0, %v1685
        %v1687 = vrot.slane %v1682, %v1686
        %v1688 = vlaneseq
        %v1689 = vshrl.u32 %v1688, 7
        %v1690 = vsub.s32 1, %v1689
        %v1691 = vrot.slane %v1682, %v1690
        %v1742 = vunpack.c.l.b16 %v1634
        %v1743 = vunpack.c.h.b16 %v1634
        %v1744 = vunpack.c.l.b16 %v1635
        %v1745 = vunpack.c.h.b16 %v1635
        %v1746 = vunpack.c.l.b16 %v1636
        %v1747 = vunpack.c.h.b16 %v1636
        %v1748 = vunpack.c.l.b16 %v1637
        %v1749 = vunpack.c.h.b16 %v1637
        %v1750 = vunpack.c.l.b16 %v1638
        %v1751 = vunpack.c.h.b16 %v1638
        %v1752 = vunpack.c.l.b16 %v1639
        %v1753 = vunpack.c.h.b16 %v1639
        %v1754 = vunpack.c.l.b16 %v1640
        %v1755 = vunpack.c.h.b16 %v1640
        %v1756 = vunpack.c.l.b16 %v1641
        %v1757 = vunpack.c.h.b16 %v1641
        %v1758 = vunpack.c.l.b16 %v1642
        %v1759 = vunpack.c.h.b16 %v1642
        %v1760 = vunpack.c.l.b16 %v1643
        %v1761 = vunpack.c.h.b16 %v1643
        %v1762 = vunpack.c.l.b16 %v1644
        %v1763 = vunpack.c.h.b16 %v1644
        %v1764 = vunpack.c.l.b16 %v1645
        %v1765 = vunpack.c.h.b16 %v1645
        %v1766 = vunpack.c.l.b16 %v1646
        %v1767 = vunpack.c.h.b16 %v1646
        %v1768 = vunpack.c.l.b16 %v1647
        %v1769 = vunpack.c.h.b16 %v1647
        %v1770 = vunpack.c.l.b16 %v1648
        %v1771 = vunpack.c.h.b16 %v1648
        %v1772 = vunpack.c.l.b16 %v1649
        %v1773 = vunpack.c.h.b16 %v1649
        %v1774 = vunpack.c.l.b16 %v1650
        %v1775 = vunpack.c.h.b16 %v1650
        %v1776 = vunpack.c.l.b16 %v1651
        %v1777 = vunpack.c.h.b16 %v1651
        %v1778 = vunpack.c.l.b16 %v1652
        %v1779 = vunpack.c.h.b16 %v1652
        %v1780 = vunpack.c.l.b16 %v1653
        %v1781 = vunpack.c.h.b16 %v1653
        %v1782 = vunpack.c.l.b16 %v1654
        %v1783 = vunpack.c.h.b16 %v1654
        %v1784 = vunpack.c.l.b16 %v1655
        %v1785 = vunpack.c.h.b16 %v1655
        %v1786 = vunpack.c.l.b16 %v1656
        %v1787 = vunpack.c.h.b16 %v1656
        %v1788 = vunpack.c.l.b16 %v1657
        %v1789 = vunpack.c.h.b16 %v1657
        %v1790 = vunpack.c.l.b16 %v1658
        %v1791 = vunpack.c.h.b16 %v1658
        %v1792 = vunpack.c.l.b16 %v1659
        %v1793 = vunpack.c.h.b16 %v1659
        %v1794 = vunpack.c.l.b16 %v1660
        %v1795 = vunpack.c.h.b16 %v1660
        %v1796 = vunpack.c.l.b16 %v1661
        %v1797 = vunpack.c.h.b16 %v1661
        %v1798 = vunpack.c.l.b16 %v1662
        %v1799 = vunpack.c.h.b16 %v1662
        %v1800 = vunpack.c.l.b16 %v1663
        %v1801 = vunpack.c.h.b16 %v1663
        %v1802 = vunpack.c.l.b16 %v1664
        %v1803 = vunpack.c.h.b16 %v1664
        %v1804 = vunpack.c.l.b16 %v1665
        %v1805 = vunpack.c.h.b16 %v1665
        %v1806 = vunpack.c.l.b16 %v1666
        %v1807 = vunpack.c.h.b16 %v1666
        %v1808 = vunpack.c.l.b16 %v1667
        %v1809 = vunpack.c.h.b16 %v1667
        %v1810 = vunpack.c.l.b16 %v1668
        %v1811 = vunpack.c.h.b16 %v1668
        %v1812 = vunpack.c.l.b16 %v1669
        %v1813 = vunpack.c.h.b16 %v1669
        %v1814 = vunpack.c.l.b16 %v1670
        %v1815 = vunpack.c.h.b16 %v1670
        %v1816 = vunpack.c.l.b16 %v1671
        %v1817 = vunpack.c.h.b16 %v1671
        %v1818 = vunpack.c.l.b16 %v1672
        %v1819 = vunpack.c.h.b16 %v1672
        %v1820 = vunpack.c.l.b16 %v1673
        %v1821 = vunpack.c.h.b16 %v1673
        %v1822 = vunpack.c.l.b16 %v1674
        %v1823 = vunpack.c.h.b16 %v1674
        %v1824 = vunpack.c.l.b16 %v1675
        %v1825 = vunpack.c.h.b16 %v1675
        %v1826 = vunpack.c.l.b16 %v1676
        %v1827 = vunpack.c.h.b16 %v1676
        %v1828 = vunpack.c.l.b16 %v1677
        %v1829 = vunpack.c.h.b16 %v1677
        %v1830 = vunpack.c.l.b16 %v1678
        %v1831 = vunpack.c.h.b16 %v1678
        %v1832 = vunpack.c.l.b16 %v1679
        %v1833 = vunpack.c.h.b16 %v1679
        %v1834 = vunpack.c.l.b16 %v1680
        %v1835 = vunpack.c.h.b16 %v1680
        %v1836 = vunpack.c.l.b16 %v1681
        %v1837 = vunpack.c.h.b16 %v1681
        %v1838 = vpack.c.b16 %v1744, %v1742
        %v1839 = vpack.c.b16 %v1745, %v1743
        %v1840 = vpack.c.b16 %v1748, %v1746
        %v1841 = vpack.c.b16 %v1749, %v1747
        %v1842 = vpack.c.b16 %v1752, %v1750
        %v1843 = vpack.c.b16 %v1753, %v1751
        %v1844 = vpack.c.b16 %v1756, %v1754
        %v1845 = vpack.c.b16 %v1757, %v1755
        %v1846 = vpack.c.b16 %v1760, %v1758
        %v1847 = vpack.c.b16 %v1761, %v1759
        %v1848 = vpack.c.b16 %v1764, %v1762
        %v1849 = vpack.c.b16 %v1765, %v1763
        %v1850 = vpack.c.b16 %v1768, %v1766
        %v1851 = vpack.c.b16 %v1769, %v1767
        %v1852 = vpack.c.b16 %v1772, %v1770
        %v1853 = vpack.c.b16 %v1773, %v1771
        %v1854 = vpack.c.b16 %v1776, %v1774
        %v1855 = vpack.c.b16 %v1777, %v1775
        %v1856 = vpack.c.b16 %v1780, %v1778
        %v1857 = vpack.c.b16 %v1781, %v1779
        %v1858 = vpack.c.b16 %v1784, %v1782
        %v1859 = vpack.c.b16 %v1785, %v1783
        %v1860 = vpack.c.b16 %v1788, %v1786
        %v1861 = vpack.c.b16 %v1789, %v1787
        %v1862 = vpack.c.b16 %v1792, %v1790
        %v1863 = vpack.c.b16 %v1793, %v1791
        %v1864 = vpack.c.b16 %v1796, %v1794
        %v1865 = vpack.c.b16 %v1797, %v1795
        %v1866 = vpack.c.b16 %v1800, %v1798
        %v1867 = vpack.c.b16 %v1801, %v1799
        %v1868 = vpack.c.b16 %v1804, %v1802
        %v1869 = vpack.c.b16 %v1805, %v1803
        %v1870 = vpack.c.b16 %v1808, %v1806
        %v1871 = vpack.c.b16 %v1809, %v1807
        %v1872 = vpack.c.b16 %v1812, %v1810
        %v1873 = vpack.c.b16 %v1813, %v1811
        %v1874 = vpack.c.b16 %v1816, %v1814
        %v1875 = vpack.c.b16 %v1817, %v1815
        %v1876 = vpack.c.b16 %v1820, %v1818
        %v1877 = vpack.c.b16 %v1821, %v1819
        %v1878 = vpack.c.b16 %v1824, %v1822
        %v1879 = vpack.c.b16 %v1825, %v1823
        %v1880 = vpack.c.b16 %v1828, %v1826
        %v1881 = vpack.c.b16 %v1829, %v1827
        %v1882 = vpack.c.b16 %v1832, %v1830
        %v1883 = vpack.c.b16 %v1833, %v1831
        %v1884 = vpack.c.b16 %v1836, %v1834
        %v1885 = vpack.c.b16 %v1837, %v1835
        %1934 = vmatprep.subr.bf16.mxu0 %v1853
        %1935 = vmatpush1.bf16.msra.mxu0 %v1852
        %1936 = vmatprep.subr.bf16.mxu0 %v1851
        %1937 = vmatpush1.bf16.msra.mxu0 %v1850
        %1938 = vmatprep.subr.bf16.mxu0 %v1849
        %1939 = vmatpush1.bf16.msra.mxu0 %v1848
        %1940 = vmatprep.subr.bf16.mxu0 %v1847
        %1941 = vmatpush1.bf16.msra.mxu0 %v1846
        %1942 = vmatprep.subr.bf16.mxu0 %v1845
        %1943 = vmatpush1.bf16.msra.mxu0 %v1844
        %1944 = vmatprep.subr.bf16.mxu0 %v1843
        %1945 = vmatpush1.bf16.msra.mxu0 %v1842
        %1946 = vmatprep.subr.bf16.mxu0 %v1841
        %1947 = vmatpush1.bf16.msra.mxu0 %v1840
        %1948 = vmatprep.subr.bf16.mxu0 %v1839
        %1949 = vmatpush1.bf16.msra.mxu0 %v1838
        %1950 = vmatprep.subr.bf16.mxu0 %v1869
        %1951 = vmatpush2.bf16.msra.mxu0 %v1868
        %1952 = vmatprep.subr.bf16.mxu0 %v1867
        %1953 = vmatpush2.bf16.msra.mxu0 %v1866
        %1954 = vmatprep.subr.bf16.mxu0 %v1865
        %1955 = vmatpush2.bf16.msra.mxu0 %v1864
        %1956 = vmatprep.subr.bf16.mxu0 %v1863
        %1957 = vmatpush2.bf16.msra.mxu0 %v1862
        %1958 = vmatprep.subr.bf16.mxu0 %v1861
        %1959 = vmatpush2.bf16.msra.mxu0 %v1860
        %1960 = vmatprep.subr.bf16.mxu0 %v1859
        %1961 = vmatpush2.bf16.msra.mxu0 %v1858
        %1962 = vmatprep.subr.bf16.mxu0 %v1857
        %1963 = vmatpush2.bf16.msra.mxu0 %v1856
        %1964 = vmatprep.subr.bf16.mxu0 %v1855
        %1965 = vmatpush2.bf16.msra.mxu0 %v1854
        %1966 = vmatprep.mubr.bf16.mxu0 %v1623
        %1967 = vmatmul.mubr.bf16.gmra.mxu0 %v1622
        %v1968 = vpop.f32.mrf.mxu0
        %v1969 = vadd.f32 %v1687, %v1968
        %v1970 = vpop.f32.mrf.mxu0
        %v1971 = vadd.f32 %v1691, %v1970
        %v1972 = vpop.f32.mrf.mxu0
        %v1973 = vadd.f32 %v1687, %v1972
        %v1974 = vpop.f32.mrf.mxu0
        %v1975 = vadd.f32 %v1691, %v1974
        %1976 = vmatprep.mubr.bf16.mxu0 %v1626
        %1977 = vmatmul.mubr.bf16.gmra.mxu0 %v1625
        %v1978 = vpop.f32.mrf.mxu0
        %v1979 = vadd.f32 %v1687, %v1978
        %v1980 = vpop.f32.mrf.mxu0
        %v1981 = vadd.f32 %v1691, %v1980
        %v1982 = vpop.f32.mrf.mxu0
        %v1983 = vadd.f32 %v1687, %v1982
        %v1984 = vpop.f32.mrf.mxu0
        %v1985 = vadd.f32 %v1691, %v1984
        %1986 = vmatprep.mubr.bf16.mxu0 %v1629
        %1987 = vmatmul.mubr.bf16.gmra.mxu0 %v1628
        %v1988 = vpop.f32.mrf.mxu0
        %v1989 = vadd.f32 %v1687, %v1988
        %v1990 = vpop.f32.mrf.mxu0
        %v1991 = vadd.f32 %v1691, %v1990
        %v1992 = vpop.f32.mrf.mxu0
        %v1993 = vadd.f32 %v1687, %v1992
        %v1994 = vpop.f32.mrf.mxu0
        %v1995 = vadd.f32 %v1691, %v1994
        %1996 = vmatprep.mubr.bf16.mxu0 %v1632
        %1997 = vmatmul.mubr.bf16.gmra.mxu0 %v1631
        %v1998 = vpop.f32.mrf.mxu0
        %v1999 = vadd.f32 %v1687, %v1998
        %v2000 = vpop.f32.mrf.mxu0
        %v2001 = vadd.f32 %v1691, %v2000
        %v2002 = vpop.f32.mrf.mxu0
        %v2003 = vadd.f32 %v1687, %v2002
        %v2004 = vpop.f32.mrf.mxu0
        %v2005 = vadd.f32 %v1691, %v2004
        %2006 = vdwg.mxu0
        %2007 = vmatprep.subr.bf16.mxu0 %v1885
        %2008 = vmatpush1.bf16.msra.mxu0 %v1884
        %2009 = vmatprep.subr.bf16.mxu0 %v1883
        %2010 = vmatpush1.bf16.msra.mxu0 %v1882
        %2011 = vmatprep.subr.bf16.mxu0 %v1881
        %2012 = vmatpush1.bf16.msra.mxu0 %v1880
        %2013 = vmatprep.subr.bf16.mxu0 %v1879
        %2014 = vmatpush1.bf16.msra.mxu0 %v1878
        %2015 = vmatprep.subr.bf16.mxu0 %v1877
        %2016 = vmatpush1.bf16.msra.mxu0 %v1876
        %2017 = vmatprep.subr.bf16.mxu0 %v1875
        %2018 = vmatpush1.bf16.msra.mxu0 %v1874
        %2019 = vmatprep.subr.bf16.mxu0 %v1873
        %2020 = vmatpush1.bf16.msra.mxu0 %v1872
        %2021 = vmatprep.subr.bf16.mxu0 %v1871
        %2022 = vmatpush1.bf16.msra.mxu0 %v1870
        %2023 = vmatprep.subr.bf16.mxu0 0
        %2024 = vmatpush2.bf16.msra.mxu0 0
        %2025 = vmatprep.subr.bf16.mxu0 0
        %2026 = vmatpush2.bf16.msra.mxu0 0
        %2027 = vmatprep.subr.bf16.mxu0 0
        %2028 = vmatpush2.bf16.msra.mxu0 0
        %2029 = vmatprep.subr.bf16.mxu0 0
        %2030 = vmatpush2.bf16.msra.mxu0 0
        %2031 = vmatprep.subr.bf16.mxu0 0
        %2032 = vmatpush2.bf16.msra.mxu0 0
        %2033 = vmatprep.subr.bf16.mxu0 0
        %2034 = vmatpush2.bf16.msra.mxu0 0
        %2035 = vmatprep.subr.bf16.mxu0 0
        %2036 = vmatpush2.bf16.msra.mxu0 0
        %2037 = vmatprep.subr.bf16.mxu0 0
        %2038 = vmatpush2.bf16.msra.mxu0 0
        %2039 = vmatprep.mubr.bf16.mxu0 0
        %2040 = vmatmul.mubr.bf16.gmra.mxu0 %v1624
        %v2041 = vpop.f32.mrf.mxu0
        %v2042 = vadd.f32 %v1969, %v2041
        %v2043 = vpop.f32.mrf.mxu0
        %v2044 = vadd.f32 %v1971, %v2043
        %v2045 = vpop.f32.mrf.mxu0
        %v2046 = vadd.f32 %v1973, %v2045
        %v2047 = vpop.f32.mrf.mxu0
        %v2048 = vadd.f32 %v1975, %v2047
        %2049 = vmatprep.mubr.bf16.mxu0 0
        %2050 = vmatmul.mubr.bf16.gmra.mxu0 %v1627
        %v2051 = vpop.f32.mrf.mxu0
        %v2052 = vadd.f32 %v1979, %v2051
        %v2053 = vpop.f32.mrf.mxu0
        %v2054 = vadd.f32 %v1981, %v2053
        %v2055 = vpop.f32.mrf.mxu0
        %v2056 = vadd.f32 %v1983, %v2055
        %v2057 = vpop.f32.mrf.mxu0
        %v2058 = vadd.f32 %v1985, %v2057
        %2059 = vmatprep.mubr.bf16.mxu0 0
        %2060 = vmatmul.mubr.bf16.gmra.mxu0 %v1630
        %v2061 = vpop.f32.mrf.mxu0
        %v2062 = vadd.f32 %v1989, %v2061
        %v2063 = vpop.f32.mrf.mxu0
        %v2064 = vadd.f32 %v1991, %v2063
        %v2065 = vpop.f32.mrf.mxu0
        %v2066 = vadd.f32 %v1993, %v2065
        %v2067 = vpop.f32.mrf.mxu0
        %v2068 = vadd.f32 %v1995, %v2067
        %2069 = vmatprep.mubr.bf16.mxu0 0
        %2070 = vmatmul.mubr.bf16.gmra.mxu0 %v1633
        %v2071 = vpop.f32.mrf.mxu0
        %v2072 = vadd.f32 %v1999, %v2071
        %v2073 = vpop.f32.mrf.mxu0
        %v2074 = vadd.f32 %v2001, %v2073
        %v2075 = vpop.f32.mrf.mxu0
        %v2076 = vadd.f32 %v2003, %v2075
        %v2077 = vpop.f32.mrf.mxu0
        %v2078 = vadd.f32 %v2005, %v2077
        %2079 = vdwg.mxu0
        %v2080 = vmax.f32 %v2042, 0.0
        %v2081 = vmax.f32 %v2044, 0.0
        %v2082 = vmax.f32 %v2046, 0.0
        %v2083 = vmax.f32 %v2048, 0.0
        %v2084 = vmax.f32 %v2052, 0.0
        %v2085 = vmax.f32 %v2054, 0.0
        %v2086 = vmax.f32 %v2056, 0.0
        %v2087 = vmax.f32 %v2058, 0.0
        %v2088 = vmax.f32 %v2062, 0.0
        %v2089 = vmax.f32 %v2064, 0.0
        %v2090 = vmax.f32 %v2066, 0.0
        %v2091 = vmax.f32 %v2068, 0.0
        %v2092 = vmax.f32 %v2072, 0.0
        %v2093 = vmax.f32 %v2074, 0.0
        %v2094 = vmax.f32 %v2076, 0.0
        %v2095 = vmax.f32 %v2078, 0.0
        %v2096 = vpack.c.bf16 %v2082, %v2080
        %v2097 = vpack.c.bf16 %v2083, %v2081
        %v2098 = vpack.c.bf16 %v2086, %v2084
        %v2099 = vpack.c.bf16 %v2087, %v2085
        %v2100 = vpack.c.bf16 %v2090, %v2088
        %v2101 = vpack.c.bf16 %v2091, %v2089
        %v2102 = vpack.c.bf16 %v2094, %v2092
        %v2103 = vpack.c.bf16 %v2095, %v2093
        %v2104 = vld [vmem:[%s4] sm:$0xf]
        %v2105 = vld [vmem:[%s4 + $0x4] sm:$0xf]
        %v2106 = vld [vmem:[%s4 + $0x8] sm:$0xf]
        %v2107 = vld [vmem:[%s4 + $0xc] sm:$0xf]
        %v2108 = vld [vmem:[%s4 + $0x10] sm:$0xf]
        %v2109 = vld [vmem:[%s4 + $0x14] sm:$0xf]
        %v2110 = vld [vmem:[%s4 + $0x18] sm:$0xf]
        %v2111 = vld [vmem:[%s4 + $0x1c] sm:$0xf]
        %v2112 = vld [vmem:[%s4 + $0x20] sm:$0xf]
        %v2113 = vld [vmem:[%s4 + $0x24] sm:$0xf]
        %v2114 = vld [vmem:[%s4 + $0x28] sm:$0xf]
        %v2115 = vld [vmem:[%s4 + $0x2c] sm:$0xf]
        %v2116 = vld [vmem:[%s4 + $0x30] sm:$0xf]
        %v2117 = vld [vmem:[%s4 + $0x34] sm:$0xf]
        %v2118 = vld [vmem:[%s4 + $0x38] sm:$0xf]
        %v2119 = vld [vmem:[%s4 + $0x3c] sm:$0xf]
        %v2120 = vld [vmem:[%s4 + $0x40] sm:$0xf]
        %v2121 = vld [vmem:[%s4 + $0x44] sm:$0xf]
        %v2122 = vld [vmem:[%s4 + $0x48] sm:$0xf]
        %v2123 = vld [vmem:[%s4 + $0x4c] sm:$0xf]
        %v2124 = vld [vmem:[%s4 + $0x50] sm:$0xf]
        %v2125 = vld [vmem:[%s4 + $0x54] sm:$0xf]
        %v2126 = vld [vmem:[%s4 + $0x58] sm:$0xf]
        %v2127 = vld [vmem:[%s4 + $0x5c] sm:$0xf]
        %v2128 = vld [vmem:[%s4 + $0x60] sm:$0xf]
        %v2129 = vld [vmem:[%s4 + $0x64] sm:$0xf]
        %v2130 = vld [vmem:[%s4 + $0x68] sm:$0xf]
        %v2131 = vld [vmem:[%s4 + $0x6c] sm:$0xf]
        %v2132 = vld [vmem:[%s4 + $0x70] sm:$0xf]
        %v2133 = vld [vmem:[%s4 + $0x74] sm:$0xf]
        %v2134 = vld [vmem:[%s4 + $0x78] sm:$0xf]
        %v2135 = vld [vmem:[%s4 + $0x7c] sm:$0xf]
        %v2136 = vld [vmem:[#allocation16 + $0x5] sm:$0x1]
        %v2138 = vlaneseq
        %v2139 = vshrl.u32 %v2138, 7
        %v2140 = vsub.s32 0, %v2139
        %v2141 = vrot.slane %v2136, %v2140
        %v2175 = vunpack.c.l.b16 %v2104
        %v2176 = vunpack.c.l.b16 %v2105
        %v2177 = vunpack.c.l.b16 %v2106
        %v2178 = vunpack.c.l.b16 %v2107
        %v2179 = vunpack.c.l.b16 %v2108
        %v2180 = vunpack.c.l.b16 %v2109
        %v2181 = vunpack.c.l.b16 %v2110
        %v2182 = vunpack.c.l.b16 %v2111
        %v2183 = vunpack.c.l.b16 %v2112
        %v2184 = vunpack.c.l.b16 %v2113
        %v2185 = vunpack.c.l.b16 %v2114
        %v2186 = vunpack.c.l.b16 %v2115
        %v2187 = vunpack.c.l.b16 %v2116
        %v2188 = vunpack.c.l.b16 %v2117
        %v2189 = vunpack.c.l.b16 %v2118
        %v2190 = vunpack.c.l.b16 %v2119
        %v2191 = vunpack.c.l.b16 %v2120
        %v2192 = vunpack.c.l.b16 %v2121
        %v2193 = vunpack.c.l.b16 %v2122
        %v2194 = vunpack.c.l.b16 %v2123
        %v2195 = vunpack.c.l.b16 %v2124
        %v2196 = vunpack.c.l.b16 %v2125
        %v2197 = vunpack.c.l.b16 %v2126
        %v2198 = vunpack.c.l.b16 %v2127
        %v2199 = vunpack.c.l.b16 %v2128
        %v2200 = vunpack.c.l.b16 %v2129
        %v2201 = vunpack.c.l.b16 %v2130
        %v2202 = vunpack.c.l.b16 %v2131
        %v2203 = vunpack.c.l.b16 %v2132
        %v2204 = vunpack.c.l.b16 %v2133
        %v2205 = vunpack.c.l.b16 %v2134
        %v2206 = vunpack.c.l.b16 %v2135
        %v2207 = vpack.c.b16 %v2176, %v2175
        %v2208 = vpack.c.b16 %v2178, %v2177
        %v2209 = vpack.c.b16 %v2180, %v2179
        %v2210 = vpack.c.b16 %v2182, %v2181
        %v2211 = vpack.c.b16 %v2184, %v2183
        %v2212 = vpack.c.b16 %v2186, %v2185
        %v2213 = vpack.c.b16 %v2188, %v2187
        %v2214 = vpack.c.b16 %v2190, %v2189
        %v2215 = vpack.c.b16 %v2192, %v2191
        %v2216 = vpack.c.b16 %v2194, %v2193
        %v2217 = vpack.c.b16 %v2196, %v2195
        %v2218 = vpack.c.b16 %v2198, %v2197
        %v2219 = vpack.c.b16 %v2200, %v2199
        %v2220 = vpack.c.b16 %v2202, %v2201
        %v2221 = vpack.c.b16 %v2204, %v2203
        %v2222 = vpack.c.b16 %v2206, %v2205
        %2239 = vmatprep.subr.bf16.mxu0 0
        %2240 = vmatpush1.bf16.msra.mxu0 %v2214
        %2241 = vmatprep.subr.bf16.mxu0 0
        %2242 = vmatpush1.bf16.msra.mxu0 %v2213
        %2243 = vmatprep.subr.bf16.mxu0 0
        %2244 = vmatpush1.bf16.msra.mxu0 %v2212
        %2245 = vmatprep.subr.bf16.mxu0 0
        %2246 = vmatpush1.bf16.msra.mxu0 %v2211
        %2247 = vmatprep.subr.bf16.mxu0 0
        %2248 = vmatpush1.bf16.msra.mxu0 %v2210
        %2249 = vmatprep.subr.bf16.mxu0 0
        %2250 = vmatpush1.bf16.msra.mxu0 %v2209
        %2251 = vmatprep.subr.bf16.mxu0 0
        %2252 = vmatpush1.bf16.msra.mxu0 %v2208
        %2253 = vmatprep.subr.bf16.mxu0 0
        %2254 = vmatpush1.bf16.msra.mxu0 %v2207
        %2255 = vmatprep.subr.bf16.mxu0 0
        %2256 = vmatpush2.bf16.msra.mxu0 %v2222
        %2257 = vmatprep.subr.bf16.mxu0 0
        %2258 = vmatpush2.bf16.msra.mxu0 %v2221
        %2259 = vmatprep.subr.bf16.mxu0 0
        %2260 = vmatpush2.bf16.msra.mxu0 %v2220
        %2261 = vmatprep.subr.bf16.mxu0 0
        %2262 = vmatpush2.bf16.msra.mxu0 %v2219
        %2263 = vmatprep.subr.bf16.mxu0 0
        %2264 = vmatpush2.bf16.msra.mxu0 %v2218
        %2265 = vmatprep.subr.bf16.mxu0 0
        %2266 = vmatpush2.bf16.msra.mxu0 %v2217
        %2267 = vmatprep.subr.bf16.mxu0 0
        %2268 = vmatpush2.bf16.msra.mxu0 %v2216
        %2269 = vmatprep.subr.bf16.mxu0 0
        %2270 = vmatpush2.bf16.msra.mxu0 %v2215
        %2271 = vmatprep.mubr.bf16.mxu0 %v2097
        %2272 = vmatmul.mubr.bf16.gmra.mxu0 %v2096
        %v2273 = vpop.f32.mrf.mxu0
        %v2274 = vadd.f32 %v2141, %v2273
        %v2275 = vpop.f32.mrf.mxu0
        %v2276 = vpop.f32.mrf.mxu0
        %v2277 = vadd.f32 %v2141, %v2276
        %v2278 = vpop.f32.mrf.mxu0
        %2279 = vmatprep.mubr.bf16.mxu0 %v2099
        %2280 = vmatmul.mubr.bf16.gmra.mxu0 %v2098
        %v2281 = vpop.f32.mrf.mxu0
        %v2282 = vadd.f32 %v2141, %v2281
        %v2283 = vpop.f32.mrf.mxu0
        %v2284 = vpop.f32.mrf.mxu0
        %v2285 = vadd.f32 %v2141, %v2284
        %v2286 = vpop.f32.mrf.mxu0
        %2287 = vmatprep.mubr.bf16.mxu0 %v2101
        %2288 = vmatmul.mubr.bf16.gmra.mxu0 %v2100
        %v2289 = vpop.f32.mrf.mxu0
        %v2290 = vadd.f32 %v2141, %v2289
        %v2291 = vpop.f32.mrf.mxu0
        %v2292 = vpop.f32.mrf.mxu0
        %v2293 = vadd.f32 %v2141, %v2292
        %v2294 = vpop.f32.mrf.mxu0
        %2295 = vmatprep.mubr.bf16.mxu0 %v2103
        %2296 = vmatmul.mubr.bf16.gmra.mxu0 %v2102
        %v2297 = vpop.f32.mrf.mxu0
        %v2298 = vadd.f32 %v2141, %v2297
        %v2299 = vpop.f32.mrf.mxu0
        %v2300 = vpop.f32.mrf.mxu0
        %v2301 = vadd.f32 %v2141, %v2300
        %v2302 = vpop.f32.mrf.mxu0
        %2303 = vdwg.mxu0
        %v2304 = vmax.f32 %v2274, 0.0
        %v2305 = vmax.f32 %v2277, 0.0
        %v2306 = vmax.f32 %v2282, 0.0
        %v2307 = vmax.f32 %v2285, 0.0
        %v2308 = vmax.f32 %v2290, 0.0
        %v2309 = vmax.f32 %v2293, 0.0
        %v2310 = vmax.f32 %v2298, 0.0
        %v2311 = vmax.f32 %v2301, 0.0
        %v2312 = vpack.c.bf16 %v2305, %v2304
        %v2313 = vpack.c.bf16 %v2307, %v2306
        %v2314 = vpack.c.bf16 %v2309, %v2308
        %v2315 = vpack.c.bf16 %v2311, %v2310
        %v2316 = vld [vmem:[%s5] sm:$0xf]
        %v2317 = vld [vmem:[%s5 + $0x4] sm:$0xf]
        %v2318 = vld [vmem:[%s5 + $0x8] sm:$0xf]
        %v2319 = vld [vmem:[%s5 + $0xc] sm:$0xf]
        %v2320 = vld [vmem:[%s5 + $0x10] sm:$0xf]
        %v2321 = vld [vmem:[%s5 + $0x14] sm:$0xf]
        %v2322 = vld [vmem:[%s5 + $0x18] sm:$0xf]
        %v2323 = vld [vmem:[%s5 + $0x1c] sm:$0xf]
        %v2324 = vld [vmem:[#allocation16 + $0x6] sm:$0x1]
        %v2326 = vlaneseq
        %v2327 = vshrl.u32 %v2326, 7
        %v2328 = vsub.s32 0, %v2327
        %v2329 = vrot.slane %v2324, %v2328
        %v2339 = vunpack.c.l.b16 %v2316
        %v2340 = vunpack.c.l.b16 %v2317
        %v2341 = vunpack.c.l.b16 %v2318
        %v2342 = vunpack.c.l.b16 %v2319
        %v2343 = vunpack.c.l.b16 %v2320
        %v2344 = vunpack.c.l.b16 %v2321
        %v2345 = vunpack.c.l.b16 %v2322
        %v2346 = vunpack.c.l.b16 %v2323
        %v2347 = vpack.c.b16 %v2340, %v2339
        %v2348 = vpack.c.b16 %v2342, %v2341
        %v2349 = vpack.c.b16 %v2344, %v2343
        %v2350 = vpack.c.b16 %v2346, %v2345
        %vm2355 = vcmask 523264
        %v2357 = vsel %vm2355, %v2312, 0
        %v2360 = vsel %vm2355, %v2313, 0
        %v2363 = vsel %vm2355, %v2314, 0
        %v2366 = vsel %vm2355, %v2315, 0
        %2368 = vmatprep.subr.bf16.mxu0 0
        %2369 = vmatpush1.bf16.msra.mxu0 0
        %2370 = vmatprep.subr.bf16.mxu0 0
        %2371 = vmatpush1.bf16.msra.mxu0 0
        %2372 = vmatprep.subr.bf16.mxu0 0
        %2373 = vmatpush1.bf16.msra.mxu0 0
        %2374 = vmatprep.subr.bf16.mxu0 0
        %2375 = vmatpush1.bf16.msra.mxu0 0
        %2376 = vmatprep.subr.bf16.mxu0 0
        %2377 = vmatpush1.bf16.msra.mxu0 %v2350
        %2378 = vmatprep.subr.bf16.mxu0 0
        %2379 = vmatpush1.bf16.msra.mxu0 %v2349
        %2380 = vmatprep.subr.bf16.mxu0 0
        %2381 = vmatpush1.bf16.msra.mxu0 %v2348
        %2382 = vmatprep.subr.bf16.mxu0 0
        %2383 = vmatpush1.bf16.msra.mxu0 %v2347
        %2384 = vmatprep.subr.bf16.mxu0 0
        %2385 = vmatpush2.bf16.msra.mxu0 0
        %2386 = vmatprep.subr.bf16.mxu0 0
        %2387 = vmatpush2.bf16.msra.mxu0 0
        %2388 = vmatprep.subr.bf16.mxu0 0
        %2389 = vmatpush2.bf16.msra.mxu0 0
        %2390 = vmatprep.subr.bf16.mxu0 0
        %2391 = vmatpush2.bf16.msra.mxu0 0
        %2392 = vmatprep.subr.bf16.mxu0 0
        %2393 = vmatpush2.bf16.msra.mxu0 0
        %2394 = vmatprep.subr.bf16.mxu0 0
        %2395 = vmatpush2.bf16.msra.mxu0 0
        %2396 = vmatprep.subr.bf16.mxu0 0
        %2397 = vmatpush2.bf16.msra.mxu0 0
        %2398 = vmatprep.subr.bf16.mxu0 0
        %2399 = vmatpush2.bf16.msra.mxu0 0
        %2400 = vmatprep.mubr.bf16.mxu0 0
        %2401 = vmatmul.mubr.bf16.gmra.mxu0 %v2357
        %v2402 = vpop.f32.mrf.mxu0
        %v2403 = vadd.f32 %v2329, %v2402
        %v2404 = vpop.f32.mrf.mxu0
        %v2405 = vpop.f32.mrf.mxu0
        %v2406 = vadd.f32 %v2329, %v2405
        %v2407 = vpop.f32.mrf.mxu0
        %2408 = vmatprep.mubr.bf16.mxu0 0
        %2409 = vmatmul.mubr.bf16.gmra.mxu0 %v2360
        %v2410 = vpop.f32.mrf.mxu0
        %v2411 = vadd.f32 %v2329, %v2410
        %v2412 = vpop.f32.mrf.mxu0
        %v2413 = vpop.f32.mrf.mxu0
        %v2414 = vadd.f32 %v2329, %v2413
        %v2415 = vpop.f32.mrf.mxu0
        %2416 = vmatprep.mubr.bf16.mxu0 0
        %2417 = vmatmul.mubr.bf16.gmra.mxu0 %v2363
        %v2418 = vpop.f32.mrf.mxu0
        %v2419 = vadd.f32 %v2329, %v2418
        %v2420 = vpop.f32.mrf.mxu0
        %v2421 = vpop.f32.mrf.mxu0
        %v2422 = vadd.f32 %v2329, %v2421
        %v2423 = vpop.f32.mrf.mxu0
        %2424 = vmatprep.mubr.bf16.mxu0 0
        %2425 = vmatmul.mubr.bf16.gmra.mxu0 %v2366
        %v2426 = vpop.f32.mrf.mxu0
        %v2427 = vadd.f32 %v2329, %v2426
        %v2428 = vpop.f32.mrf.mxu0
        %v2429 = vpop.f32.mrf.mxu0
        %v2430 = vadd.f32 %v2329, %v2429
        %v2431 = vpop.f32.mrf.mxu0
        %2432 = vdwg.mxu0
        %v2433 = vtanh.pop %v2403
        %v2434 = vtanh.pop %v2406
        %v2435 = vtanh.pop %v2411
        %v2436 = vtanh.pop %v2414
        %v2437 = vtanh.pop %v2419
        %v2438 = vtanh.pop %v2422
        %v2439 = vtanh.pop %v2427
        %v2440 = vtanh.pop %v2430
        %v2441 = vxor.u32 %v2403, 2147483648
        %v2442 = vxor.u32 %v2406, 2147483648
        %v2443 = vxor.u32 %v2411, 2147483648
        %v2444 = vxor.u32 %v2414, 2147483648
        %v2445 = vxor.u32 %v2419, 2147483648
        %v2446 = vxor.u32 %v2422, 2147483648
        %v2447 = vxor.u32 %v2427, 2147483648
        %v2448 = vxor.u32 %v2430, 2147483648
        %v2449 = vmul.f32 %v2441, 1.442695
        %v2450 = vpow.pop %v2449
        %v2451 = vmul.f32 %v2442, 1.442695
        %v2452 = vpow.pop %v2451
        %v2453 = vmul.f32 %v2443, 1.442695
        %v2454 = vpow.pop %v2453
        %v2455 = vmul.f32 %v2444, 1.442695
        %v2456 = vpow.pop %v2455
        %v2457 = vmul.f32 %v2445, 1.442695
        %v2458 = vpow.pop %v2457
        %v2459 = vmul.f32 %v2446, 1.442695
        %v2460 = vpow.pop %v2459
        %v2461 = vmul.f32 %v2447, 1.442695
        %v2462 = vpow.pop %v2461
        %v2463 = vmul.f32 %v2448, 1.442695
        %v2464 = vpow.pop %v2463
        %v2465 = vadd.f32 %v2450, 1.0
        %v2466 = vadd.f32 %v2452, 1.0
        %v2467 = vadd.f32 %v2454, 1.0
        %v2468 = vadd.f32 %v2456, 1.0
        %v2469 = vadd.f32 %v2458, 1.0
        %v2470 = vadd.f32 %v2460, 1.0
        %v2471 = vadd.f32 %v2462, 1.0
        %v2472 = vadd.f32 %v2464, 1.0
        %v2473 = vrcp.pop %v2465
        %v2474 = vmul.f32 1.0, %v2473
        %v2475 = vrcp.pop %v2466
        %v2476 = vmul.f32 1.0, %v2475
        %v2477 = vrcp.pop %v2467
        %v2478 = vmul.f32 1.0, %v2477
        %v2479 = vrcp.pop %v2468
        %v2480 = vmul.f32 1.0, %v2479
        %v2481 = vrcp.pop %v2469
        %v2482 = vmul.f32 1.0, %v2481
        %v2483 = vrcp.pop %v2470
        %v2484 = vmul.f32 1.0, %v2483
        %v2485 = vrcp.pop %v2471
        %v2486 = vmul.f32 1.0, %v2485
        %v2487 = vrcp.pop %v2472
        %v2488 = vmul.f32 1.0, %v2487
        %2497 = vrot.lane.b32.xlu0 %v2474, 112
        %v2498 = vpop.permute.xlu0 %2497
        %2499 = vrot.lane.b32.xlu0 %v2476, 112
        %v2500 = vpop.permute.xlu0 %2499
        %2501 = vrot.lane.b32.xlu0 %v2478, 112
        %v2502 = vpop.permute.xlu0 %2501
        %2503 = vrot.lane.b32.xlu0 %v2480, 112
        %v2504 = vpop.permute.xlu0 %2503
        %2505 = vrot.lane.b32.xlu0 %v2482, 112
        %v2506 = vpop.permute.xlu0 %2505
        %2507 = vrot.lane.b32.xlu0 %v2484, 112
        %v2508 = vpop.permute.xlu0 %2507
        %2509 = vrot.lane.b32.xlu0 %v2486, 112
        %v2510 = vpop.permute.xlu0 %2509
        %2511 = vrot.lane.b32.xlu0 %v2488, 112
        %v2512 = vpop.permute.xlu0 %2511
        %v2521 = vmul.f32 %v2433, %v2498
        %v2522 = vmul.f32 %v2434, %v2500
        %v2523 = vmul.f32 %v2435, %v2502
        %v2524 = vmul.f32 %v2436, %v2504
        %v2525 = vmul.f32 %v2437, %v2506
        %v2526 = vmul.f32 %v2438, %v2508
        %v2527 = vmul.f32 %v2439, %v2510
        %v2528 = vmul.f32 %v2440, %v2512
        %v2529 = vld [vmem:[#allocation16 + $0x8] sm:$0x1]
        %v2531 = vlaneseq
        %v2532 = vshrl.u32 %v2531, 7
        %v2533 = vsub.s32 0, %v2532
        %v2534 = vrot.slane %v2529, %v2533
        %v2536 = vmul.f32 %v2521, %v2534
        %v2537 = vmul.f32 %v2522, %v2534
        %v2538 = vmul.f32 %v2523, %v2534
        %v2539 = vmul.f32 %v2524, %v2534
        %v2540 = vmul.f32 %v2525, %v2534
        %v2541 = vmul.f32 %v2526, %v2534
        %v2542 = vmul.f32 %v2527, %v2534
        %v2543 = vmul.f32 %v2528, %v2534
        %vm2544 = vcmask 130048
        %v2545 = vsel %vm2544, %v2536, 0.0
        %2546 = vadd.xlane.f32.xlu0 %v2545
        %v2547 = vpop.xlane.xlu0 %2546
        %v2548 = vsel %vm2544, %v2537, 0.0
        %2549 = vadd.xlane.f32.xlu0 %v2548
        %v2550 = vpop.xlane.xlu0 %2549
        %v2551 = vsel %vm2544, %v2538, 0.0
        %2552 = vadd.xlane.f32.xlu0 %v2551
        %v2553 = vpop.xlane.xlu0 %2552
        %v2554 = vsel %vm2544, %v2539, 0.0
        %2555 = vadd.xlane.f32.xlu0 %v2554
        %v2556 = vpop.xlane.xlu0 %2555
        %v2557 = vsel %vm2544, %v2540, 0.0
        %2558 = vadd.xlane.f32.xlu0 %v2557
        %v2559 = vpop.xlane.xlu0 %2558
        %v2560 = vsel %vm2544, %v2541, 0.0
        %2561 = vadd.xlane.f32.xlu0 %v2560
        %v2562 = vpop.xlane.xlu0 %2561
        %v2563 = vsel %vm2544, %v2542, 0.0
        %2564 = vadd.xlane.f32.xlu0 %v2563
        %v2565 = vpop.xlane.xlu0 %2564
        %v2566 = vsel %vm2544, %v2543, 0.0
        %2567 = vadd.xlane.f32.xlu0 %v2566
        %v2568 = vpop.xlane.xlu0 %2567
        %v2569 = vld [vmem:[#allocation16 + $0x7] sm:$0x1]
        %v2571 = vlaneseq
        %v2572 = vshrl.u32 %v2571, 7
        %v2573 = vsub.s32 0, %v2572
        %v2574 = vrot.slane %v2569, %v2573
        %v2576 = vadd.f32 %v2547, %v2574
        %v2577 = vadd.f32 %v2550, %v2574
        %v2578 = vadd.f32 %v2553, %v2574
        %v2579 = vadd.f32 %v2556, %v2574
        %v2580 = vadd.f32 %v2559, %v2574
        %v2581 = vadd.f32 %v2562, %v2574
        %v2582 = vadd.f32 %v2565, %v2574
        %v2583 = vadd.f32 %v2568, %v2574
        %v2584 = vld [vmem:[#allocation2] sm:$0x1]
        %vm2585 = vcmask 7168
        %v2586 = vsel %vm2585, %v2576, -inf
        %v2587 = vsel %vm2585, %v2577, -inf
        %v2588 = vsel %vm2585, %v2578, -inf
        %v2589 = vsel %vm2585, %v2579, -inf
        %v2590 = vsel %vm2585, %v2580, -inf
        %v2591 = vmax.f32 %v2586, %v2590
        %v2592 = vsel %vm2585, %v2581, -inf
        %v2593 = vmax.f32 %v2587, %v2592
        %v2594 = vsel %vm2585, %v2582, -inf
        %v2595 = vmax.f32 %v2588, %v2594
        %v2596 = vsel %vm2585, %v2583, -inf
        %v2597 = vmax.f32 %v2589, %v2596
        %v2598 = vmax.f32 %v2591, %v2593
        %v2599 = vmax.f32 %v2595, %v2597
        %v2600 = vmax.f32 %v2598, %v2599
        %v2601 = vrot.slane %v2600, 4
        %v2602 = vmax.f32 %v2600, %v2601
        %v2603 = vrot.slane %v2602, 2
        %v2604 = vmax.f32 %v2602, %v2603
        %v2605 = vrot.slane %v2604, 1
        %v2606 = vmax.f32 %v2604, %v2605
        %v2607 = vmax.f32 %v2584, %v2606
        %v2608 = vsub.f32 %v2584, %v2607
        %v2609 = vmul.f32 %v2608, 1.442695
        %v2610 = vpow.pop %v2609
        %v2612 = vlaneseq
        %v2613 = vshrl.u32 %v2612, 7
        %v2614 = vsub.s32 0, %v2613
        %v2615 = vrot.slane %v2607, %v2614
        %v2617 = vsub.f32 %v2576, %v2615
        %v2618 = vsub.f32 %v2577, %v2615
        %v2619 = vsub.f32 %v2578, %v2615
        %v2620 = vsub.f32 %v2579, %v2615
        %v2621 = vsub.f32 %v2580, %v2615
        %v2622 = vsub.f32 %v2581, %v2615
        %v2623 = vsub.f32 %v2582, %v2615
        %v2624 = vsub.f32 %v2583, %v2615
        %v2625 = vmul.f32 %v2617, 1.442695
        %v2626 = vpow.pop %v2625
        %v2627 = vmul.f32 %v2618, 1.442695
        %v2628 = vpow.pop %v2627
        %v2629 = vmul.f32 %v2619, 1.442695
        %v2630 = vpow.pop %v2629
        %v2631 = vmul.f32 %v2620, 1.442695
        %v2632 = vpow.pop %v2631
        %v2633 = vmul.f32 %v2621, 1.442695
        %v2634 = vpow.pop %v2633
        %v2635 = vmul.f32 %v2622, 1.442695
        %v2636 = vpow.pop %v2635
        %v2637 = vmul.f32 %v2623, 1.442695
        %v2638 = vpow.pop %v2637
        %v2639 = vmul.f32 %v2624, 1.442695
        %v2640 = vpow.pop %v2639
        %v2641 = vld [vmem:[#allocation3] sm:$0x1]
        %v2642 = vmul.f32 %v2610, %v2641
        %v2643 = vsel %vm2585, %v2626, 0.0
        %v2644 = vsel %vm2585, %v2628, 0.0
        %v2645 = vadd.f32 %v2643, %v2644
        %v2646 = vsel %vm2585, %v2630, 0.0
        %v2647 = vadd.f32 %v2645, %v2646
        %v2648 = vsel %vm2585, %v2632, 0.0
        %v2649 = vadd.f32 %v2647, %v2648
        %v2650 = vsel %vm2585, %v2634, 0.0
        %v2651 = vadd.f32 %v2649, %v2650
        %v2652 = vsel %vm2585, %v2636, 0.0
        %v2653 = vadd.f32 %v2651, %v2652
        %v2654 = vsel %vm2585, %v2638, 0.0
        %v2655 = vadd.f32 %v2653, %v2654
        %v2656 = vsel %vm2585, %v2640, 0.0
        %v2657 = vadd.f32 %v2655, %v2656
        %v2658 = vrot.slane %v2657, 4
        %v2659 = vadd.f32 %v2657, %v2658
        %v2660 = vrot.slane %v2659, 2
        %v2661 = vadd.f32 %v2659, %v2660
        %v2662 = vrot.slane %v2661, 1
        %v2663 = vadd.f32 %v2661, %v2662
        %v2664 = vadd.f32 %v2642, %v2663
        %vm2665 = vcmask 0
        %2666 = vst.msk [vmem:[#allocation3] sm:$0x1] %vm2665, %v2664
        %2668 = vset.pattern.permute.xlu0 0
        %2669 = vperm.xlu0 %2668, %v2626
        %v2670 = vpop.permute.xlu0 %2669
        %2673 = vset.pattern.permute.xlu0 0
        %2674 = vperm.xlu0 %2673, %v2628
        %v2675 = vpop.permute.xlu0 %2674
        %2678 = vset.pattern.permute.xlu0 0
        %2679 = vperm.xlu0 %2678, %v2630
        %v2680 = vpop.permute.xlu0 %2679
        %2683 = vset.pattern.permute.xlu0 0
        %2684 = vperm.xlu0 %2683, %v2632
        %v2685 = vpop.permute.xlu0 %2684
        %2688 = vset.pattern.permute.xlu0 0
        %2689 = vperm.xlu0 %2688, %v2634
        %v2690 = vpop.permute.xlu0 %2689
        %2693 = vset.pattern.permute.xlu0 0
        %2694 = vperm.xlu0 %2693, %v2636
        %v2695 = vpop.permute.xlu0 %2694
        %2698 = vset.pattern.permute.xlu0 0
        %2699 = vperm.xlu0 %2698, %v2638
        %v2700 = vpop.permute.xlu0 %2699
        %2703 = vset.pattern.permute.xlu0 0
        %2704 = vperm.xlu0 %2703, %v2640
        %v2705 = vpop.permute.xlu0 %2704
        %v2707 = vmul.f32 %v2670, %v2304
        %v2708 = vmul.f32 %v2675, %v2305
        %v2709 = vmul.f32 %v2680, %v2306
        %v2710 = vmul.f32 %v2685, %v2307
        %v2711 = vmul.f32 %v2690, %v2308
        %v2712 = vmul.f32 %v2695, %v2309
        %v2713 = vmul.f32 %v2700, %v2310
        %v2714 = vmul.f32 %v2705, %v2311
        %v2716 = vsel %vm2355, 1.0, 0
        %2718 = vmatprep.subr.mxu0 0.0
        %2719 = vmatpush1.msra.mxu0 0.0
        %2720 = vmatprep.subr.mxu0 0.0
        %2721 = vmatpush1.msra.mxu0 0.0
        %2722 = vmatprep.subr.mxu0 0.0
        %2723 = vmatpush1.msra.mxu0 0.0
        %2724 = vmatprep.subr.mxu0 0.0
        %2725 = vmatpush1.msra.mxu0 0.0
        %2726 = vmatprep.subr.mxu0 0.0
        %2727 = vmatpush1.msra.mxu0 0.0
        %2728 = vmatprep.subr.mxu0 0.0
        %2729 = vmatpush1.msra.mxu0 0.0
        %2730 = vmatprep.subr.mxu0 0.0
        %2731 = vmatpush1.msra.mxu0 0.0
        %2732 = vmatprep.subr.mxu0 0.0
        %2733 = vmatpush1.msra.mxu0 0.0
        %2734 = vmatprep.subr.mxu0 0.0
        %2735 = vmatpush1.msra.mxu0 %v2714
        %2736 = vmatprep.subr.mxu0 0.0
        %2737 = vmatpush1.msra.mxu0 %v2713
        %2738 = vmatprep.subr.mxu0 0.0
        %2739 = vmatpush1.msra.mxu0 %v2712
        %2740 = vmatprep.subr.mxu0 0.0
        %2741 = vmatpush1.msra.mxu0 %v2711
        %2742 = vmatprep.subr.mxu0 0.0
        %2743 = vmatpush1.msra.mxu0 %v2710
        %2744 = vmatprep.subr.mxu0 0.0
        %2745 = vmatpush1.msra.mxu0 %v2709
        %2746 = vmatprep.subr.mxu0 0.0
        %2747 = vmatpush1.msra.mxu0 %v2708
        %2748 = vmatprep.subr.mxu0 0.0
        %2749 = vmatpush1.msra.mxu0 %v2707
        %2750 = vmatprep.subr.mxu0 0.0
        %2751 = vmatpush2.msra.mxu0 0.0
        %2752 = vmatprep.subr.mxu0 0.0
        %2753 = vmatpush2.msra.mxu0 0.0
        %2754 = vmatprep.subr.mxu0 0.0
        %2755 = vmatpush2.msra.mxu0 0.0
        %2756 = vmatprep.subr.mxu0 0.0
        %2757 = vmatpush2.msra.mxu0 0.0
        %2758 = vmatprep.subr.mxu0 0.0
        %2759 = vmatpush2.msra.mxu0 0.0
        %2760 = vmatprep.subr.mxu0 0.0
        %2761 = vmatpush2.msra.mxu0 0.0
        %2762 = vmatprep.subr.mxu0 0.0
        %2763 = vmatpush2.msra.mxu0 0.0
        %2764 = vmatprep.subr.mxu0 0.0
        %2765 = vmatpush2.msra.mxu0 0.0
        %2766 = vmatprep.subr.mxu0 0.0
        %2767 = vmatpush2.msra.mxu0 0.0
        %2768 = vmatprep.subr.mxu0 0.0
        %2769 = vmatpush2.msra.mxu0 0.0
        %2770 = vmatprep.subr.mxu0 0.0
        %2771 = vmatpush2.msra.mxu0 0.0
        %2772 = vmatprep.subr.mxu0 0.0
        %2773 = vmatpush2.msra.mxu0 0.0
        %2774 = vmatprep.subr.mxu0 0.0
        %2775 = vmatpush2.msra.mxu0 0.0
        %2776 = vmatprep.subr.mxu0 0.0
        %2777 = vmatpush2.msra.mxu0 0.0
        %2778 = vmatprep.subr.mxu0 0.0
        %2779 = vmatpush2.msra.mxu0 0.0
        %2780 = vmatprep.subr.mxu0 0.0
        %2781 = vmatpush2.msra.mxu0 0.0
        %2782 = vmatprep.mubr.f32.mxu0 0.0
        %2783 = vmatmul.mubr.f32.gmra.mxu0 %v2716
        %v2784 = vpop.f32.mrf.mxu0
        %v2785 = vadd.f32 0.0, %v2784
        %v2786 = vpop.f32.mrf.mxu0
        %2787 = vdwg.mxu0
        %v2788 = vld [vmem:[#allocation4] sm:$0x1]
        %2790 = vset.pattern.permute.xlu0 0
        %2791 = vperm.xlu0 %2790, %v2610
        %v2792 = vpop.permute.xlu0 %2791
        %v2794 = vlaneseq
        %v2795 = vshrl.u32 %v2794, 7
        %v2796 = vsub.s32 0, %v2795
        %v2797 = vrot.slane %v2792, %v2796
        %v2798 = vmul.f32 %v2797, %v2788
        %v2799 = vadd.f32 %v2798, %v2785
        %vm2800 = vcmask 516096
        %2801 = vst.msk [vmem:[#allocation4] sm:$0x1] %vm2800, %v2799
        %2802 = vst.msk [vmem:[#allocation2] sm:$0x1] %vm2665, %v2607
        %p2803 = scmp.eq.s32.totalorder %s41, 3
        // Predicated region
        $region109: #{tpu_custom_call.1} parent=75 // pred_check
          %p2804 = pneg %p2803
        $region110: #{tpu_custom_call.1} parent=75 // pred_check_branch
          %2806 = sbr.rel (%p2804) target = $region112
        $region111: #{tpu_custom_call.1} parent=75 // pred_region
          %v2807 = vld [vmem:[#allocation4] sm:$0x1]
          %v2808 = vld [vmem:[#allocation3] sm:$0x1]
          %2810 = vset.pattern.permute.xlu0 0
          %2811 = vperm.xlu0 %2810, %v2808
          %v2812 = vpop.permute.xlu0 %2811
          %v2814 = vlaneseq
          %v2815 = vshrl.u32 %v2814, 7
          %v2816 = vsub.s32 0, %v2815
          %v2817 = vrot.slane %v2812, %v2816
          %v2818 = vrcp.pop %v2817
          %v2819 = vmul.f32 %v2807, %v2818
          %v2820 = vld [vmem:[%s538] sm:$0x1]
          %v2821 = vld [vmem:[#allocation11] sm:$0xff]
          %v2822 = vld [vmem:[#allocation11 + $0x8] sm:$0xff]
          %v2823 = vld [vmem:[#allocation16 + $0x9] sm:$0x1]
          %v2825 = vsel %vm2544, %v2820, 0
          %2827 = vmatprep.subr.mxu0 0.0
          %2828 = vmatpush1.msra.mxu0 0.0
          %2829 = vmatprep.subr.mxu0 0.0
          %2830 = vmatpush1.msra.mxu0 0.0
          %2831 = vmatprep.subr.mxu0 0.0
          %2832 = vmatpush1.msra.mxu0 0.0
          %2833 = vmatprep.subr.mxu0 0.0
          %2834 = vmatpush1.msra.mxu0 0.0
          %2835 = vmatprep.subr.mxu0 0.0
          %2836 = vmatpush1.msra.mxu0 0.0
          %2837 = vmatprep.subr.mxu0 0.0
          %2838 = vmatpush1.msra.mxu0 0.0
          %2839 = vmatprep.subr.mxu0 0.0
          %2840 = vmatpush1.msra.mxu0 0.0
          %2841 = vmatprep.subr.mxu0 0.0
          %2842 = vmatpush1.msra.mxu0 0.0
          %2843 = vmatprep.subr.mxu0 0.0
          %2844 = vmatpush1.msra.mxu0 0.0
          %2845 = vmatprep.subr.mxu0 0.0
          %2846 = vmatpush1.msra.mxu0 0.0
          %2847 = vmatprep.subr.mxu0 0.0
          %2848 = vmatpush1.msra.mxu0 0.0
          %2849 = vmatprep.subr.mxu0 0.0
          %2850 = vmatpush1.msra.mxu0 0.0
          %2851 = vmatprep.subr.mxu0 0.0
          %2852 = vmatpush1.msra.mxu0 0.0
          %2853 = vmatprep.subr.mxu0 0.0
          %2854 = vmatpush1.msra.mxu0 0.0
          %2855 = vmatprep.subr.mxu0 0.0
          %2856 = vmatpush1.msra.mxu0 %v2822
          %2857 = vmatprep.subr.mxu0 0.0
          %2858 = vmatpush1.msra.mxu0 %v2821
          %2859 = vmatprep.subr.mxu0 0.0
          %2860 = vmatpush2.msra.mxu0 0.0
          %2861 = vmatprep.subr.mxu0 0.0
          %2862 = vmatpush2.msra.mxu0 0.0
          %2863 = vmatprep.subr.mxu0 0.0
          %2864 = vmatpush2.msra.mxu0 0.0
          %2865 = vmatprep.subr.mxu0 0.0
          %2866 = vmatpush2.msra.mxu0 0.0
          %2867 = vmatprep.subr.mxu0 0.0
          %2868 = vmatpush2.msra.mxu0 0.0
          %2869 = vmatprep.subr.mxu0 0.0
          %2870 = vmatpush2.msra.mxu0 0.0
          %2871 = vmatprep.subr.mxu0 0.0
          %2872 = vmatpush2.msra.mxu0 0.0
          %2873 = vmatprep.subr.mxu0 0.0
          %2874 = vmatpush2.msra.mxu0 0.0
          %2875 = vmatprep.subr.mxu0 0.0
          %2876 = vmatpush2.msra.mxu0 0.0
          %2877 = vmatprep.subr.mxu0 0.0
          %2878 = vmatpush2.msra.mxu0 0.0
          %2879 = vmatprep.subr.mxu0 0.0
          %2880 = vmatpush2.msra.mxu0 0.0
          %2881 = vmatprep.subr.mxu0 0.0
          %2882 = vmatpush2.msra.mxu0 0.0
          %2883 = vmatprep.subr.mxu0 0.0
          %2884 = vmatpush2.msra.mxu0 0.0
          %2885 = vmatprep.subr.mxu0 0.0
          %2886 = vmatpush2.msra.mxu0 0.0
          %2887 = vmatprep.subr.mxu0 0.0
          %2888 = vmatpush2.msra.mxu0 0.0
          %2889 = vmatprep.subr.mxu0 0.0
          %2890 = vmatpush2.msra.mxu0 0.0
          %2891 = vmatprep.mubr.f32.mxu0 0.0
          %2892 = vmatmul.mubr.f32.gmra.mxu0 %v2825
          %v2893 = vpop.f32.mrf.mxu0
          %v2894 = vadd.f32 %v2823, %v2893
          %v2895 = vpop.f32.mrf.mxu0
          %2896 = vdwg.mxu0
          %v2897 = vmax.f32 %v2894, 0.0
          %v2898 = vld [vmem:[#allocation13] sm:$0xff]
          %v2899 = vld [vmem:[#allocation13 + $0x8] sm:$0xff]
          %v2900 = vld [vmem:[#allocation13 + $0x10] sm:$0xff]
          %v2901 = vld [vmem:[#allocation13 + $0x18] sm:$0xff]
          %v2902 = vld [vmem:[#allocation16 + $0xa] sm:$0x1]
          %vm2903 = vcmask 261120
          %v2905 = vsel %vm2903, %v2897, 0
          %2907 = vmatprep.subr.mxu0 0.0
          %2908 = vmatpush1.msra.mxu0 0.0
          %2909 = vmatprep.subr.mxu0 0.0
          %2910 = vmatpush1.msra.mxu0 0.0
          %2911 = vmatprep.subr.mxu0 0.0
          %2912 = vmatpush1.msra.mxu0 0.0
          %2913 = vmatprep.subr.mxu0 0.0
          %2914 = vmatpush1.msra.mxu0 0.0
          %2915 = vmatprep.subr.mxu0 0.0
          %2916 = vmatpush1.msra.mxu0 0.0
          %2917 = vmatprep.subr.mxu0 0.0
          %2918 = vmatpush1.msra.mxu0 0.0
          %2919 = vmatprep.subr.mxu0 0.0
          %2920 = vmatpush1.msra.mxu0 0.0
          %2921 = vmatprep.subr.mxu0 0.0
          %2922 = vmatpush1.msra.mxu0 0.0
          %2923 = vmatprep.subr.mxu0 0.0
          %2924 = vmatpush1.msra.mxu0 0.0
          %2925 = vmatprep.subr.mxu0 0.0
          %2926 = vmatpush1.msra.mxu0 0.0
          %2927 = vmatprep.subr.mxu0 0.0
          %2928 = vmatpush1.msra.mxu0 0.0
          %2929 = vmatprep.subr.mxu0 0.0
          %2930 = vmatpush1.msra.mxu0 0.0
          %2931 = vmatprep.subr.mxu0 0.0
          %2932 = vmatpush1.msra.mxu0 %v2901
          %2933 = vmatprep.subr.mxu0 0.0
          %2934 = vmatpush1.msra.mxu0 %v2900
          %2935 = vmatprep.subr.mxu0 0.0
          %2936 = vmatpush1.msra.mxu0 %v2899
          %2937 = vmatprep.subr.mxu0 0.0
          %2938 = vmatpush1.msra.mxu0 %v2898
          %2939 = vmatprep.subr.mxu0 0.0
          %2940 = vmatpush2.msra.mxu0 0.0
          %2941 = vmatprep.subr.mxu0 0.0
          %2942 = vmatpush2.msra.mxu0 0.0
          %2943 = vmatprep.subr.mxu0 0.0
          %2944 = vmatpush2.msra.mxu0 0.0
          %2945 = vmatprep.subr.mxu0 0.0
          %2946 = vmatpush2.msra.mxu0 0.0
          %2947 = vmatprep.subr.mxu0 0.0
          %2948 = vmatpush2.msra.mxu0 0.0
          %2949 = vmatprep.subr.mxu0 0.0
          %2950 = vmatpush2.msra.mxu0 0.0
          %2951 = vmatprep.subr.mxu0 0.0
          %2952 = vmatpush2.msra.mxu0 0.0
          %2953 = vmatprep.subr.mxu0 0.0
          %2954 = vmatpush2.msra.mxu0 0.0
          %2955 = vmatprep.subr.mxu0 0.0
          %2956 = vmatpush2.msra.mxu0 0.0
          %2957 = vmatprep.subr.mxu0 0.0
          %2958 = vmatpush2.msra.mxu0 0.0
          %2959 = vmatprep.subr.mxu0 0.0
          %2960 = vmatpush2.msra.mxu0 0.0
          %2961 = vmatprep.subr.mxu0 0.0
          %2962 = vmatpush2.msra.mxu0 0.0
          %2963 = vmatprep.subr.mxu0 0.0
          %2964 = vmatpush2.msra.mxu0 0.0
          %2965 = vmatprep.subr.mxu0 0.0
          %2966 = vmatpush2.msra.mxu0 0.0
          %2967 = vmatprep.subr.mxu0 0.0
          %2968 = vmatpush2.msra.mxu0 0.0
          %2969 = vmatprep.subr.mxu0 0.0
          %2970 = vmatpush2.msra.mxu0 0.0
          %2971 = vmatprep.mubr.f32.mxu0 0.0
          %2972 = vmatmul.mubr.f32.gmra.mxu0 %v2905
          %v2973 = vpop.f32.mrf.mxu0
          %v2974 = vadd.f32 %v2902, %v2973
          %v2975 = vpop.f32.mrf.mxu0
          %2976 = vdwg.mxu0
          %v2977 = vmax.f32 %v2974, 0.0
          %2979 = vrot.lane.b32.xlu0 %v2977, 64
          %v2980 = vpop.permute.xlu0 %2979
          %v2982 = vsel %vm2355, %v2819, %v2980
          %v2983 = vld [vmem:[#allocation14] sm:$0xff]
          %v2984 = vld [vmem:[#allocation14 + $0x8] sm:$0xff]
          %v2985 = vld [vmem:[#allocation14 + $0x10] sm:$0xff]
          %v2986 = vld [vmem:[#allocation14 + $0x18] sm:$0xff]
          %v2987 = vld [vmem:[#allocation14 + $0x20] sm:$0xff]
          %v2988 = vld [vmem:[#allocation14 + $0x28] sm:$0xff]
          %v2989 = vld [vmem:[#allocation14 + $0x30] sm:$0xff]
          %v2990 = vld [vmem:[#allocation14 + $0x38] sm:$0xff]
          %v2991 = vld [vmem:[#allocation14 + $0x40] sm:$0xff]
          %v2992 = vld [vmem:[#allocation14 + $0x48] sm:$0xff]
          %v2993 = vld [vmem:[#allocation14 + $0x50] sm:$0xff]
          %v2994 = vld [vmem:[#allocation14 + $0x58] sm:$0xff]
          %v2995 = vld [vmem:[#allocation14 + $0x60] sm:$0xff]
          %v2996 = vld [vmem:[#allocation14 + $0x68] sm:$0xff]
          %v2997 = vld [vmem:[#allocation14 + $0x70] sm:$0xff]
          %v2998 = vld [vmem:[#allocation14 + $0x78] sm:$0xff]
          %v2999 = vld [vmem:[#allocation14 + $0x80] sm:$0xff]
          %v3000 = vld [vmem:[#allocation14 + $0x88] sm:$0xff]
          %v3001 = vld [vmem:[#allocation14 + $0x90] sm:$0xff]
          %v3002 = vld [vmem:[#allocation14 + $0x98] sm:$0xff]
          %v3003 = vld [vmem:[#allocation14 + $0xa0] sm:$0xff]
          %v3004 = vld [vmem:[#allocation14 + $0xa8] sm:$0xff]
          %v3005 = vld [vmem:[#allocation14 + $0xb0] sm:$0xff]
          %v3006 = vld [vmem:[#allocation14 + $0xb8] sm:$0xff]
          %v3007 = vld [vmem:[#allocation14 + $0xc0] sm:$0xff]
          %v3008 = vld [vmem:[#allocation14 + $0xc8] sm:$0xff]
          %v3009 = vld [vmem:[#allocation14 + $0xd0] sm:$0xff]
          %v3010 = vld [vmem:[#allocation14 + $0xd8] sm:$0xff]
          %v3011 = vld [vmem:[#allocation14 + $0xe0] sm:$0xff]
          %v3012 = vld [vmem:[#allocation14 + $0xe8] sm:$0xff]
          %v3013 = vld [vmem:[#allocation14 + $0xf0] sm:$0xff]
          %v3014 = vld [vmem:[#allocation14 + $0xf8] sm:$0xff]
          %v3015 = vld [vmem:[#allocation16 + $0xb] sm:$0x3]
          %v3017 = vlaneseq
          %v3018 = vshrl.u32 %v3017, 7
          %v3019 = vsub.s32 0, %v3018
          %v3020 = vrot.slane %v3015, %v3019
          %v3021 = vlaneseq
          %v3022 = vshrl.u32 %v3021, 7
          %v3023 = vsub.s32 1, %v3022
          %v3024 = vrot.slane %v3015, %v3023
          %3027 = vmatprep.subr.mxu0 %v3014
          %3028 = vmatpush1.msra.mxu0 %v3013
          %3029 = vmatprep.subr.mxu0 %v3012
          %3030 = vmatpush1.msra.mxu0 %v3011
          %3031 = vmatprep.subr.mxu0 %v3010
          %3032 = vmatpush1.msra.mxu0 %v3009
          %3033 = vmatprep.subr.mxu0 %v3008
          %3034 = vmatpush1.msra.mxu0 %v3007
          %3035 = vmatprep.subr.mxu0 %v3006
          %3036 = vmatpush1.msra.mxu0 %v3005
          %3037 = vmatprep.subr.mxu0 %v3004
          %3038 = vmatpush1.msra.mxu0 %v3003
          %3039 = vmatprep.subr.mxu0 %v3002
          %3040 = vmatpush1.msra.mxu0 %v3001
          %3041 = vmatprep.subr.mxu0 %v3000
          %3042 = vmatpush1.msra.mxu0 %v2999
          %3043 = vmatprep.subr.mxu0 %v2998
          %3044 = vmatpush1.msra.mxu0 %v2997
          %3045 = vmatprep.subr.mxu0 %v2996
          %3046 = vmatpush1.msra.mxu0 %v2995
          %3047 = vmatprep.subr.mxu0 %v2994
          %3048 = vmatpush1.msra.mxu0 %v2993
          %3049 = vmatprep.subr.mxu0 %v2992
          %3050 = vmatpush1.msra.mxu0 %v2991
          %3051 = vmatprep.subr.mxu0 %v2990
          %3052 = vmatpush1.msra.mxu0 %v2989
          %3053 = vmatprep.subr.mxu0 %v2988
          %3054 = vmatpush1.msra.mxu0 %v2987
          %3055 = vmatprep.subr.mxu0 %v2986
          %3056 = vmatpush1.msra.mxu0 %v2985
          %3057 = vmatprep.subr.mxu0 %v2984
          %3058 = vmatpush1.msra.mxu0 %v2983
          %3059 = vmatprep.subr.mxu0 0.0
          %3060 = vmatpush2.msra.mxu0 0.0
          %3061 = vmatprep.subr.mxu0 0.0
          %3062 = vmatpush2.msra.mxu0 0.0
          %3063 = vmatprep.subr.mxu0 0.0
          %3064 = vmatpush2.msra.mxu0 0.0
          %3065 = vmatprep.subr.mxu0 0.0
          %3066 = vmatpush2.msra.mxu0 0.0
          %3067 = vmatprep.subr.mxu0 0.0
          %3068 = vmatpush2.msra.mxu0 0.0
          %3069 = vmatprep.subr.mxu0 0.0
          %3070 = vmatpush2.msra.mxu0 0.0
          %3071 = vmatprep.subr.mxu0 0.0
          %3072 = vmatpush2.msra.mxu0 0.0
          %3073 = vmatprep.subr.mxu0 0.0
          %3074 = vmatpush2.msra.mxu0 0.0
          %3075 = vmatprep.subr.mxu0 0.0
          %3076 = vmatpush2.msra.mxu0 0.0
          %3077 = vmatprep.subr.mxu0 0.0
          %3078 = vmatpush2.msra.mxu0 0.0
          %3079 = vmatprep.subr.mxu0 0.0
          %3080 = vmatpush2.msra.mxu0 0.0
          %3081 = vmatprep.subr.mxu0 0.0
          %3082 = vmatpush2.msra.mxu0 0.0
          %3083 = vmatprep.subr.mxu0 0.0
          %3084 = vmatpush2.msra.mxu0 0.0
          %3085 = vmatprep.subr.mxu0 0.0
          %3086 = vmatpush2.msra.mxu0 0.0
          %3087 = vmatprep.subr.mxu0 0.0
          %3088 = vmatpush2.msra.mxu0 0.0
          %3089 = vmatprep.subr.mxu0 0.0
          %3090 = vmatpush2.msra.mxu0 0.0
          %3091 = vmatprep.mubr.f32.mxu0 0.0
          %3092 = vmatmul.mubr.f32.gmra.mxu0 %v2982
          %v3093 = vpop.f32.mrf.mxu0
          %v3094 = vadd.f32 %v3020, %v3093
          %v3095 = vpop.f32.mrf.mxu0
          %v3096 = vadd.f32 %v3024, %v3095
          %3097 = vdwg.mxu0
          %v3098 = vxor.u32 %v3094, 2147483648
          %v3099 = vmul.f32 %v3098, 1.442695
          %v3100 = vpow.pop %v3099
          %v3101 = vadd.f32 %v3100, 1.0
          %v3102 = vrcp.pop %v3101
          %v3103 = vmul.f32 1.0, %v3102
          %v3104 = vmax.f32 %v3096, 0.0
          %v3105 = vmul.f32 %v3103, %v3104
          %v3107 = vrot.slane %v3105, 7
          %3108 = vrot.lane.b32.xlu0 %v3107, 64
          %v3109 = vpop.permute.xlu0 %3108
          %vm3111 = vcmask 1040384
          %v3112 = vsel %vm3111, %v3105, %v3109
          %v3113 = vld [vmem:[%s9] sm:$0xff]
          %v3114 = vld [vmem:[%s9 + $0x8] sm:$0xff]
          %v3115 = vld [vmem:[%s9 + $0x10] sm:$0xff]
          %v3116 = vld [vmem:[%s9 + $0x18] sm:$0xff]
          %v3117 = vld [vmem:[%s9 + $0x20] sm:$0xff]
          %v3118 = vld [vmem:[%s9 + $0x28] sm:$0xff]
          %v3119 = vld [vmem:[%s9 + $0x30] sm:$0xff]
          %v3120 = vld [vmem:[%s9 + $0x38] sm:$0xff]
          %v3121 = vld [vmem:[#allocation16 + $0xd] sm:$0x1]
          %v3123 = vlaneseq
          %v3124 = vshrl.u32 %v3123, 7
          %v3125 = vsub.s32 0, %v3124
          %v3126 = vrot.slane %v3121, %v3125
          %v3129 = vsel %vm2355, %v3112, 0
          %3131 = vmatprep.subr.mxu0 0.0
          %3132 = vmatpush1.msra.mxu0 0.0
          %3133 = vmatprep.subr.mxu0 0.0
          %3134 = vmatpush1.msra.mxu0 0.0
          %3135 = vmatprep.subr.mxu0 0.0
          %3136 = vmatpush1.msra.mxu0 0.0
          %3137 = vmatprep.subr.mxu0 0.0
          %3138 = vmatpush1.msra.mxu0 0.0
          %3139 = vmatprep.subr.mxu0 0.0
          %3140 = vmatpush1.msra.mxu0 0.0
          %3141 = vmatprep.subr.mxu0 0.0
          %3142 = vmatpush1.msra.mxu0 0.0
          %3143 = vmatprep.subr.mxu0 0.0
          %3144 = vmatpush1.msra.mxu0 0.0
          %3145 = vmatprep.subr.mxu0 0.0
          %3146 = vmatpush1.msra.mxu0 0.0
          %3147 = vmatprep.subr.mxu0 0.0
          %3148 = vmatpush1.msra.mxu0 %v3120
          %3149 = vmatprep.subr.mxu0 0.0
          %3150 = vmatpush1.msra.mxu0 %v3119
          %3151 = vmatprep.subr.mxu0 0.0
          %3152 = vmatpush1.msra.mxu0 %v3118
          %3153 = vmatprep.subr.mxu0 0.0
          %3154 = vmatpush1.msra.mxu0 %v3117
          %3155 = vmatprep.subr.mxu0 0.0
          %3156 = vmatpush1.msra.mxu0 %v3116
          %3157 = vmatprep.subr.mxu0 0.0
          %3158 = vmatpush1.msra.mxu0 %v3115
          %3159 = vmatprep.subr.mxu0 0.0
          %3160 = vmatpush1.msra.mxu0 %v3114
          %3161 = vmatprep.subr.mxu0 0.0
          %3162 = vmatpush1.msra.mxu0 %v3113
          %3163 = vmatprep.subr.mxu0 0.0
          %3164 = vmatpush2.msra.mxu0 0.0
          %3165 = vmatprep.subr.mxu0 0.0
          %3166 = vmatpush2.msra.mxu0 0.0
          %3167 = vmatprep.subr.mxu0 0.0
          %3168 = vmatpush2.msra.mxu0 0.0
          %3169 = vmatprep.subr.mxu0 0.0
          %3170 = vmatpush2.msra.mxu0 0.0
          %3171 = vmatprep.subr.mxu0 0.0
          %3172 = vmatpush2.msra.mxu0 0.0
          %3173 = vmatprep.subr.mxu0 0.0
          %3174 = vmatpush2.msra.mxu0 0.0
          %3175 = vmatprep.subr.mxu0 0.0
          %3176 = vmatpush2.msra.mxu0 0.0
          %3177 = vmatprep.subr.mxu0 0.0
          %3178 = vmatpush2.msra.mxu0 0.0
          %3179 = vmatprep.subr.mxu0 0.0
          %3180 = vmatpush2.msra.mxu0 0.0
          %3181 = vmatprep.subr.mxu0 0.0
          %3182 = vmatpush2.msra.mxu0 0.0
          %3183 = vmatprep.subr.mxu0 0.0
          %3184 = vmatpush2.msra.mxu0 0.0
          %3185 = vmatprep.subr.mxu0 0.0
          %3186 = vmatpush2.msra.mxu0 0.0
          %3187 = vmatprep.subr.mxu0 0.0
          %3188 = vmatpush2.msra.mxu0 0.0
          %3189 = vmatprep.subr.mxu0 0.0
          %3190 = vmatpush2.msra.mxu0 0.0
          %3191 = vmatprep.subr.mxu0 0.0
          %3192 = vmatpush2.msra.mxu0 0.0
          %3193 = vmatprep.subr.mxu0 0.0
          %3194 = vmatpush2.msra.mxu0 0.0
          %3195 = vmatprep.mubr.f32.mxu0 0.0
          %3196 = vmatmul.mubr.f32.gmra.mxu0 %v3129
          %v3197 = vpop.f32.mrf.mxu0
          %v3198 = vadd.f32 %v3126, %v3197
          %v3199 = vpop.f32.mrf.mxu0
          %3200 = vdwg.mxu0
          %v3201 = vmax.f32 %v3198, 0.0
          %v3203 = vrot.slane %v3201, 1
          %3204 = vrot.lane.b32.xlu0 %v3203, 64
          %v3205 = vpop.permute.xlu0 %3204
          %v3207 = vsel %vm2355, %v3201, %v3205
          %v3208 = vld [vmem:[%s10] sm:$0xff]
          %v3209 = vld [vmem:[%s10 + $0x8] sm:$0xff]
          %v3210 = vld [vmem:[%s10 + $0x10] sm:$0xff]
          %v3211 = vld [vmem:[%s10 + $0x18] sm:$0xff]
          %v3212 = vld [vmem:[%s10 + $0x20] sm:$0xff]
          %v3213 = vld [vmem:[%s10 + $0x28] sm:$0xff]
          %v3214 = vld [vmem:[%s10 + $0x30] sm:$0xff]
          %v3215 = vld [vmem:[%s10 + $0x38] sm:$0xff]
          %v3216 = vld [vmem:[%s10 + $0x40] sm:$0xff]
          %v3217 = vld [vmem:[%s10 + $0x48] sm:$0xff]
          %v3218 = vld [vmem:[%s10 + $0x50] sm:$0xff]
          %v3219 = vld [vmem:[%s10 + $0x58] sm:$0xff]
          %v3220 = vld [vmem:[%s10 + $0x60] sm:$0xff]
          %v3221 = vld [vmem:[%s10 + $0x68] sm:$0xff]
          %v3222 = vld [vmem:[%s10 + $0x70] sm:$0xff]
          %v3223 = vld [vmem:[%s10 + $0x78] sm:$0xff]
          %v3224 = vld [vmem:[#allocation16 + $0xe] sm:$0x1]
          %3225 = vmatprep.subr.mxu0 0.0
          %3226 = vmatpush1.msra.mxu0 %v3223
          %3227 = vmatprep.subr.mxu0 0.0
          %3228 = vmatpush1.msra.mxu0 %v3222
          %3229 = vmatprep.subr.mxu0 0.0
          %3230 = vmatpush1.msra.mxu0 %v3221
          %3231 = vmatprep.subr.mxu0 0.0
          %3232 = vmatpush1.msra.mxu0 %v3220
          %3233 = vmatprep.subr.mxu0 0.0
          %3234 = vmatpush1.msra.mxu0 %v3219
          %3235 = vmatprep.subr.mxu0 0.0
          %3236 = vmatpush1.msra.mxu0 %v3218
          %3237 = vmatprep.subr.mxu0 0.0
          %3238 = vmatpush1.msra.mxu0 %v3217
          %3239 = vmatprep.subr.mxu0 0.0
          %3240 = vmatpush1.msra.mxu0 %v3216
          %3241 = vmatprep.subr.mxu0 0.0
          %3242 = vmatpush1.msra.mxu0 %v3215
          %3243 = vmatprep.subr.mxu0 0.0
          %3244 = vmatpush1.msra.mxu0 %v3214
          %3245 = vmatprep.subr.mxu0 0.0
          %3246 = vmatpush1.msra.mxu0 %v3213
          %3247 = vmatprep.subr.mxu0 0.0
          %3248 = vmatpush1.msra.mxu0 %v3212
          %3249 = vmatprep.subr.mxu0 0.0
          %3250 = vmatpush1.msra.mxu0 %v3211
          %3251 = vmatprep.subr.mxu0 0.0
          %3252 = vmatpush1.msra.mxu0 %v3210
          %3253 = vmatprep.subr.mxu0 0.0
          %3254 = vmatpush1.msra.mxu0 %v3209
          %3255 = vmatprep.subr.mxu0 0.0
          %3256 = vmatpush1.msra.mxu0 %v3208
          %3257 = vmatprep.subr.mxu0 0.0
          %3258 = vmatpush2.msra.mxu0 0.0
          %3259 = vmatprep.subr.mxu0 0.0
          %3260 = vmatpush2.msra.mxu0 0.0
          %3261 = vmatprep.subr.mxu0 0.0
          %3262 = vmatpush2.msra.mxu0 0.0
          %3263 = vmatprep.subr.mxu0 0.0
          %3264 = vmatpush2.msra.mxu0 0.0
          %3265 = vmatprep.subr.mxu0 0.0
          %3266 = vmatpush2.msra.mxu0 0.0
          %3267 = vmatprep.subr.mxu0 0.0
          %3268 = vmatpush2.msra.mxu0 0.0
          %3269 = vmatprep.subr.mxu0 0.0
          %3270 = vmatpush2.msra.mxu0 0.0
          %3271 = vmatprep.subr.mxu0 0.0
          %3272 = vmatpush2.msra.mxu0 0.0
          %3273 = vmatprep.subr.mxu0 0.0
          %3274 = vmatpush2.msra.mxu0 0.0
          %3275 = vmatprep.subr.mxu0 0.0
          %3276 = vmatpush2.msra.mxu0 0.0
          %3277 = vmatprep.subr.mxu0 0.0
          %3278 = vmatpush2.msra.mxu0 0.0
          %3279 = vmatprep.subr.mxu0 0.0
          %3280 = vmatpush2.msra.mxu0 0.0
          %3281 = vmatprep.subr.mxu0 0.0
          %3282 = vmatpush2.msra.mxu0 0.0
          %3283 = vmatprep.subr.mxu0 0.0
          %3284 = vmatpush2.msra.mxu0 0.0
          %3285 = vmatprep.subr.mxu0 0.0
          %3286 = vmatpush2.msra.mxu0 0.0
          %3287 = vmatprep.subr.mxu0 0.0
          %3288 = vmatpush2.msra.mxu0 0.0
          %3289 = vmatprep.mubr.f32.mxu0 0.0
          %3290 = vmatmul.mubr.f32.gmra.mxu0 %v3207
          %v3291 = vpop.f32.mrf.mxu0
          %v3292 = vadd.f32 %v3224, %v3291
          %v3293 = vpop.f32.mrf.mxu0
          %3294 = vdwg.mxu0
          %v3295 = vmax.f32 %v3292, 0.0
          %v3296 = vld [vmem:[%s11] sm:$0xff]
          %v3297 = vld [vmem:[%s11 + $0x8] sm:$0xff]
          %v3298 = vld [vmem:[%s11 + $0x10] sm:$0xff]
          %v3299 = vld [vmem:[%s11 + $0x18] sm:$0xff]
          %v3300 = vld [vmem:[%s11 + $0x20] sm:$0xff]
          %v3301 = vld [vmem:[%s11 + $0x28] sm:$0xff]
          %v3302 = vld [vmem:[%s11 + $0x30] sm:$0xff]
          %v3303 = vld [vmem:[%s11 + $0x38] sm:$0xff]
          %v3304 = vld [vmem:[#allocation16 + $0xf] sm:$0x1]
          %v3306 = vsel %vm2355, %v3295, 0
          %3308 = vmatprep.subr.mxu0 0.0
          %3309 = vmatpush1.msra.mxu0 0.0
          %3310 = vmatprep.subr.mxu0 0.0
          %3311 = vmatpush1.msra.mxu0 0.0
          %3312 = vmatprep.subr.mxu0 0.0
          %3313 = vmatpush1.msra.mxu0 0.0
          %3314 = vmatprep.subr.mxu0 0.0
          %3315 = vmatpush1.msra.mxu0 0.0
          %3316 = vmatprep.subr.mxu0 0.0
          %3317 = vmatpush1.msra.mxu0 0.0
          %3318 = vmatprep.subr.mxu0 0.0
          %3319 = vmatpush1.msra.mxu0 0.0
          %3320 = vmatprep.subr.mxu0 0.0
          %3321 = vmatpush1.msra.mxu0 0.0
          %3322 = vmatprep.subr.mxu0 0.0
          %3323 = vmatpush1.msra.mxu0 0.0
          %3324 = vmatprep.subr.mxu0 0.0
          %3325 = vmatpush1.msra.mxu0 %v3303
          %3326 = vmatprep.subr.mxu0 0.0
          %3327 = vmatpush1.msra.mxu0 %v3302
          %3328 = vmatprep.subr.mxu0 0.0
          %3329 = vmatpush1.msra.mxu0 %v3301
          %3330 = vmatprep.subr.mxu0 0.0
          %3331 = vmatpush1.msra.mxu0 %v3300
          %3332 = vmatprep.subr.mxu0 0.0
          %3333 = vmatpush1.msra.mxu0 %v3299
          %3334 = vmatprep.subr.mxu0 0.0
          %3335 = vmatpush1.msra.mxu0 %v3298
          %3336 = vmatprep.subr.mxu0 0.0
          %3337 = vmatpush1.msra.mxu0 %v3297
          %3338 = vmatprep.subr.mxu0 0.0
          %3339 = vmatpush1.msra.mxu0 %v3296
          %3340 = vmatprep.subr.mxu0 0.0
          %3341 = vmatpush2.msra.mxu0 0.0
          %3342 = vmatprep.subr.mxu0 0.0
          %3343 = vmatpush2.msra.mxu0 0.0
          %3344 = vmatprep.subr.mxu0 0.0
          %3345 = vmatpush2.msra.mxu0 0.0
          %3346 = vmatprep.subr.mxu0 0.0
          %3347 = vmatpush2.msra.mxu0 0.0
          %3348 = vmatprep.subr.mxu0 0.0
          %3349 = vmatpush2.msra.mxu0 0.0
          %3350 = vmatprep.subr.mxu0 0.0
          %3351 = vmatpush2.msra.mxu0 0.0
          %3352 = vmatprep.subr.mxu0 0.0
          %3353 = vmatpush2.msra.mxu0 0.0
          %3354 = vmatprep.subr.mxu0 0.0
          %3355 = vmatpush2.msra.mxu0 0.0
          %3356 = vmatprep.subr.mxu0 0.0
          %3357 = vmatpush2.msra.mxu0 0.0
          %3358 = vmatprep.subr.mxu0 0.0
          %3359 = vmatpush2.msra.mxu0 0.0
          %3360 = vmatprep.subr.mxu0 0.0
          %3361 = vmatpush2.msra.mxu0 0.0
          %3362 = vmatprep.subr.mxu0 0.0
          %3363 = vmatpush2.msra.mxu0 0.0
          %3364 = vmatprep.subr.mxu0 0.0
          %3365 = vmatpush2.msra.mxu0 0.0
          %3366 = vmatprep.subr.mxu0 0.0
          %3367 = vmatpush2.msra.mxu0 0.0
          %3368 = vmatprep.subr.mxu0 0.0
          %3369 = vmatpush2.msra.mxu0 0.0
          %3370 = vmatprep.subr.mxu0 0.0
          %3371 = vmatpush2.msra.mxu0 0.0
          %3372 = vmatprep.mubr.f32.mxu0 0.0
          %3373 = vmatmul.mubr.f32.gmra.mxu0 %v3306
          %v3374 = vpop.f32.mrf.mxu0
          %v3375 = vadd.f32 %v3304, %v3374
          %v3376 = vpop.f32.mrf.mxu0
          %3377 = vdwg.mxu0
          %v3378 = vmax.f32 %v3375, 0.0
          %v3379 = vld [vmem:[%s12] sm:$0xff]
          %v3380 = vld [vmem:[%s12 + $0x8] sm:$0xff]
          %v3381 = vld [vmem:[%s12 + $0x10] sm:$0xff]
          %v3382 = vld [vmem:[%s12 + $0x18] sm:$0xff]
          %v3383 = vld [vmem:[#allocation16 + $0x10] sm:$0x1]
          %v3385 = vsel %vm2903, %v3378, 0
          %3387 = vmatprep.subr.mxu0 0.0
          %3388 = vmatpush1.msra.mxu0 0.0
          %3389 = vmatprep.subr.mxu0 0.0
          %3390 = vmatpush1.msra.mxu0 0.0
          %3391 = vmatprep.subr.mxu0 0.0
          %3392 = vmatpush1.msra.mxu0 0.0
          %3393 = vmatprep.subr.mxu0 0.0
          %3394 = vmatpush1.msra.mxu0 0.0
          %3395 = vmatprep.subr.mxu0 0.0
          %3396 = vmatpush1.msra.mxu0 0.0
          %3397 = vmatprep.subr.mxu0 0.0
          %3398 = vmatpush1.msra.mxu0 0.0
          %3399 = vmatprep.subr.mxu0 0.0
          %3400 = vmatpush1.msra.mxu0 0.0
          %3401 = vmatprep.subr.mxu0 0.0
          %3402 = vmatpush1.msra.mxu0 0.0
          %3403 = vmatprep.subr.mxu0 0.0
          %3404 = vmatpush1.msra.mxu0 0.0
          %3405 = vmatprep.subr.mxu0 0.0
          %3406 = vmatpush1.msra.mxu0 0.0
          %3407 = vmatprep.subr.mxu0 0.0
          %3408 = vmatpush1.msra.mxu0 0.0
          %3409 = vmatprep.subr.mxu0 0.0
          %3410 = vmatpush1.msra.mxu0 0.0
          %3411 = vmatprep.subr.mxu0 0.0
          %3412 = vmatpush1.msra.mxu0 %v3382
          %3413 = vmatprep.subr.mxu0 0.0
          %3414 = vmatpush1.msra.mxu0 %v3381
          %3415 = vmatprep.subr.mxu0 0.0
          %3416 = vmatpush1.msra.mxu0 %v3380
          %3417 = vmatprep.subr.mxu0 0.0
          %3418 = vmatpush1.msra.mxu0 %v3379
          %3419 = vmatprep.subr.mxu0 0.0
          %3420 = vmatpush2.msra.mxu0 0.0
          %3421 = vmatprep.subr.mxu0 0.0
          %3422 = vmatpush2.msra.mxu0 0.0
          %3423 = vmatprep.subr.mxu0 0.0
          %3424 = vmatpush2.msra.mxu0 0.0
          %3425 = vmatprep.subr.mxu0 0.0
          %3426 = vmatpush2.msra.mxu0 0.0
          %3427 = vmatprep.subr.mxu0 0.0
          %3428 = vmatpush2.msra.mxu0 0.0
          %3429 = vmatprep.subr.mxu0 0.0
          %3430 = vmatpush2.msra.mxu0 0.0
          %3431 = vmatprep.subr.mxu0 0.0
          %3432 = vmatpush2.msra.mxu0 0.0
          %3433 = vmatprep.subr.mxu0 0.0
          %3434 = vmatpush2.msra.mxu0 0.0
          %3435 = vmatprep.subr.mxu0 0.0
          %3436 = vmatpush2.msra.mxu0 0.0
          %3437 = vmatprep.subr.mxu0 0.0
          %3438 = vmatpush2.msra.mxu0 0.0
          %3439 = vmatprep.subr.mxu0 0.0
          %3440 = vmatpush2.msra.mxu0 0.0
          %3441 = vmatprep.subr.mxu0 0.0
          %3442 = vmatpush2.msra.mxu0 0.0
          %3443 = vmatprep.subr.mxu0 0.0
          %3444 = vmatpush2.msra.mxu0 0.0
          %3445 = vmatprep.subr.mxu0 0.0
          %3446 = vmatpush2.msra.mxu0 0.0
          %3447 = vmatprep.subr.mxu0 0.0
          %3448 = vmatpush2.msra.mxu0 0.0
          %3449 = vmatprep.subr.mxu0 0.0
          %3450 = vmatpush2.msra.mxu0 0.0
          %3451 = vmatprep.mubr.f32.mxu0 0.0
          %3452 = vmatmul.mubr.f32.gmra.mxu0 %v3385
          %v3453 = vpop.f32.mrf.mxu0
          %v3454 = vadd.f32 %v3383, %v3453
          %v3455 = vpop.f32.mrf.mxu0
          %3456 = vdwg.mxu0
          %vm3457 = vcmask 8192
          %3458 = vst.msk [vmem:[%s605] sm:$0x1] %vm3457, %v3454
        $region112: #{tpu_custom_call.1} parent=75 // pred_fallthru
          _
        %s3459 = sand.u32 %s362, 1
        %s3460 = scalar_lea.sflag [#allocation7], %s3459
        %s3461 = sand.u32 %s362, 1
        %s3462 = scalar_lea.vmem [#allocation17], %s3461
        // Predicated region
        $region113: #{tpu_custom_call.1} parent=75 // pred_check
          %p3463 = pneg %p372
        $region114: #{tpu_custom_call.1} parent=75 // pred_check_branch
          %3465 = sbr.rel (%p3463) target = $region116
        $region115: #{tpu_custom_call.1} parent=75 // pred_region
          %s3467 = ssub.s32 16, 16
          %3468 = vsyncadd %s3460, %s3467
          %s3469 = smul.addr %s40, 16
          %s3470 = scalar_lea.hbm %s14, %s3469
          %s3472 = sshll.u32 %s3462, 4
          %s3473 = int_to_ptr.vmem [resolvable:$true] %s3472
          %3475 = dma.vmem_to_hbm [thread:$0]  %s3473, 16, %s3470, %s3460
        $region116: #{tpu_custom_call.1} parent=75 // pred_fallthru
          _
      $region76: #{tpu_custom_call.1} parent=5 // pred_fallthru
        _
      %p3476 = scmp.le.s32.totalorder 2, %s31
      // Predicated region
      $region117: #{tpu_custom_call.1} parent=5 // pred_check
        %p3477 = pneg %p3476
      $region118: #{tpu_custom_call.1} parent=5 // pred_check_branch
        %3479 = sbr.rel (%p3477) target = $region120
      $region119: #{tpu_custom_call.1} parent=5 // pred_region
        %s3480 = ssub.s32 %s31, 2
        // Predicated region
        $region121: #{tpu_custom_call.1} parent=119 // pred_check
          %p3481 = pneg %p378
        $region122: #{tpu_custom_call.1} parent=119 // pred_check_branch
          %3483 = sbr.rel (%p3481) target = $region124
        $region123: #{tpu_custom_call.1} parent=119 // pred_region
          %s3484 = sand.u32 %s363, 1
          %s3485 = scalar_lea.sflag [#allocation7], %s3484
          %s3486 = sand.u32 %s363, 1
          %s3487 = scalar_lea.vmem [#allocation17], %s3486
          %3488 = dma.done %s3485, 16
        $region124: #{tpu_custom_call.1} parent=119 // pred_fallthru
          _
      $region120: #{tpu_custom_call.1} parent=5 // pred_fallthru
        _
    $region6: #{tpu_custom_call.1} parent=1 // loop_footer
      %s35 = sadd.s32 1, %s31
    $region7: #{tpu_custom_call.1} parent=1 // loop_footer_branch
      %30 = sbr.rel target = $region3
    $region8: #{tpu_custom_call.1} parent=1 // loop_exit
      _
    %3489 = vsyncpa [#allocation6], 1
    %s3490 = scalar_lea.sflag [#allocation6], 1
    %3491 = vsyncpa %s3490, 1
    %3492 = vsyncpa [#allocation9], 1
    %s3493 = scalar_lea.sflag [#allocation9], 1
    %3494 = vsyncpa %s3493, 1
    %3495 = vsyncpa [#allocation12], 1
    %3496 = vsyncpa [#allocation15], 1
    %3497 = vsyncpa [#allocation7], 1
    %s3498 = scalar_lea.sflag [#allocation7], 1
    %3499 = vsyncpa %s3498, 1

</llo_original>
